<compile_context>
chip_gen: v5e
topology: v5e:2x2
jax: 0.10.0
libtpu: 0.0.40
codegen_flags: <defaults>
</compile_context>

<pallas_src>
import jax
import jax.numpy as jnp
from jax.experimental import pallas as pl
from jax.experimental.pallas import tpu as pltpu

_LANE = 128                 # TPU vreg lane width
_VMEM_BUDGET = 48 << 20     # conservative ceiling so the kernel fits v7x's 64 MiB VMEM


def _head_kernel(x_ref, w1_ref, b1_ref, w2_ref, b2_ref, *out_refs):
    # out_refs = (hid_ref, logits_ref) or (logits_ref,)
    emit_hidden = len(out_refs) == 2
    logits_ref = out_refs[-1]

    # Dropout(0.1) is identity at inference time.
    # Cast the LHS to the weight dtype (bf16) so the MXU runs at bf16 rate;
    # accumulation is f32 via preferred_element_type.
    x = x_ref[...].astype(w1_ref.dtype)

    # dense: [tm, H] @ [H, H] -> f32; bias-add + tanh in f32.
    h = jnp.dot(x, w1_ref[...], preferred_element_type=jnp.float32)
    last_hidden = jnp.tanh(h + b1_ref[...].astype(jnp.float32))
    if emit_hidden:
        out_refs[0][...] = last_hidden.astype(out_refs[0].dtype)

    # out_proj: [tm, H] @ [H, Lp] (L padded to one full 128-lane vreg), f32 accum.
    logits = jnp.dot(
        last_hidden.astype(w2_ref.dtype), w2_ref[...],
        preferred_element_type=jnp.float32,
    )
    logits_ref[...] = (logits + b2_ref[...].astype(jnp.float32)).astype(logits_ref.dtype)


def roberta_classification_head(features, w_dense, b_dense, w_out, b_out, *,
                                block_m=512, weight_dtype=jnp.bfloat16,
                                return_last_hidden=True):
    """features: [B, H]; w_dense: [H, H] ([in, out] layout); b_dense: [H];
    w_out: [H, L] ([in, out] layout); b_out: [L].
    Returns (last_hidden [B, H], logits [B, L]) or just logits [B, L]."""
    B, H = features.shape
    L = w_out.shape[1]

    # --- Weights to bf16 (HBM-bound regime: halves the dominant DMA). -------
    w_dense_c = w_dense.astype(weight_dtype)
    w_out_c = w_out.astype(weight_dtype)

    # --- Pad num_labels to exactly one 128-lane vreg (lane-dense store). ----
    Lp = max(_LANE, pl.cdiv(L, _LANE) * _LANE)
    if Lp != L:
        w_out_p = jnp.zeros((H, Lp), w_out_c.dtype).at[:, :L].set(w_out_c)
        b_out_p = jnp.zeros((Lp,), b_out.dtype).at[:L].set(b_out)
    else:
        w_out_p, b_out_p = w_out_c, b_out

    # Biases as 2-D rows (kept f32) for TPU-friendly broadcast in the kernel.
    b_dense2 = b_dense.reshape(1, H)
    b_out2 = b_out_p.reshape(1, Lp)

    # --- Batch tiling, rounded to the dtype sublane pack. --------------------
    isz = jnp.dtype(features.dtype).itemsize
    wsz = jnp.dtype(w_dense_c.dtype).itemsize
    bsz = jnp.dtype(b_dense.dtype).itemsize
    pack = {1: 32, 2: 16, 4: 8}[isz]

    if B <= block_m:
        if B >= 4 * _LANE:
            # Compute-bound-ish small batch: two tiles so both v7x TCs run.
            tm = ((pl.cdiv(B, 2) + pack - 1) // pack) * pack
        else:
            # Tiny batch is weight-DMA-bound: one full-extent tile (always legal),
            # splitting would only duplicate the weight DMA per core.
            tm = B
    else:
        tm = max(pack, (block_m // pack) * pack)

    # --- VMEM working set: x / outputs double-buffered, weights single. ------
    def working_bytes(t):
        return (
            2 * t * H * isz                                   # x tile (Buffered(2))
            + H * H * wsz + H * bsz                           # dense W + b (resident)
            + H * Lp * wsz + Lp * bsz                         # out_proj W + b (resident)
            + (2 * t * H * isz if return_last_hidden else 0)  # last_hidden tile
            + 2 * t * Lp * isz                                # logits tile
        )

    while tm > pack and working_bytes(tm) > _VMEM_BUDGET:
        tm = max(pack, ((tm // 2) // pack) * pack)
    # TODO(synk): if H grows so large that the resident weights alone exceed
    # VMEM (H ~ 4k+ even in bf16 on v7x), add a second grid axis tiling the
    # dense output columns with an f32 VMEM accumulator instead of keeping
    # W_dense fully resident.

    grid_m = pl.cdiv(B, tm)
    vmem_limit = int(working_bytes(tm) * 1.3) + (4 << 20)

    cost = pl.CostEstimate(
        flops=2 * B * H * (H + Lp),
        transcendentals=B * H,  # tanh
        bytes_accessed=(
            B * H * isz + H * H * wsz + H * bsz + H * Lp * wsz + Lp * bsz
            + (B * H * isz if return_last_hidden else 0) + B * Lp * isz
        ),
    )

    resident = pl.Buffered(1)   # constant index_map -> no double-buffering needed
    in_specs = [
        pl.BlockSpec((tm, H), lambda i: (i, 0)),                            # features
        pl.BlockSpec((H, H), lambda i: (0, 0), pipeline_mode=resident),     # dense W
        pl.BlockSpec((1, H), lambda i: (0, 0), pipeline_mode=resident),     # dense b
        pl.BlockSpec((H, Lp), lambda i: (0, 0), pipeline_mode=resident),    # out W
        pl.BlockSpec((1, Lp), lambda i: (0, 0), pipeline_mode=resident),    # out b
    ]

    logits_shape = jax.ShapeDtypeStruct((B, Lp), features.dtype)
    logits_spec = pl.BlockSpec((tm, Lp), lambda i: (i, 0))
    if return_last_hidden:
        out_shape = (jax.ShapeDtypeStruct((B, H), features.dtype), logits_shape)
        out_specs = (pl.BlockSpec((tm, H), lambda i: (i, 0)), logits_spec)
    else:
        out_shape = (logits_shape,)
        out_specs = (logits_spec,)

    results = pl.pallas_call(
        _head_kernel,
        out_shape=out_shape,
        grid=(grid_m,),
        in_specs=in_specs,
        out_specs=out_specs,
        compiler_params=pltpu.CompilerParams(
            dimension_semantics=("parallel",),
            vmem_limit_bytes=vmem_limit,
        ),
        cost_estimate=cost,
    )(features, w_dense_c, b_dense2, w_out_p, b_out2)

    if return_last_hidden:
        last_hidden, logits_p = results
        return last_hidden, logits_p[:, :L]
    return results[0][:, :L]


if __name__ == "__main__":
    # Shapes consistent with the module (bert_hidden_dim=1024), small batch.
    B, H, L = 16, 1024, 3

    key = jax.random.PRNGKey(0)
    k_x, k_w1, k_b1, k_w2, k_b2 = jax.random.split(key, 5)

    features = jax.random.normal(k_x, (B, H), dtype=jnp.float32)

    # PyTorch Linear weight is [out, in]; we generate directly in the kernel's
    # [in, out] layout.
    w_dense = jax.random.normal(k_w1, (H, H), dtype=jnp.float32) * 0.02
    b_dense = jax.random.normal(k_b1, (H,), dtype=jnp.float32) * 0.02
    w_out = jax.random.normal(k_w2, (H, L), dtype=jnp.float32) * 0.02
    b_out = jax.random.normal(k_b2, (L,), dtype=jnp.float32) * 0.02

    last_hidden, logits = roberta_classification_head(
        features, w_dense, b_dense, w_out, b_out
    )
    jax.block_until_ready((last_hidden, logits))

    # Reference in plain JAX, mirroring the kernel's bf16 operand rounding
    # (weights and matmul inputs in bf16, f32 accumulation, f32 bias/tanh).
    bf = jnp.bfloat16
    xq = features.astype(bf).astype(jnp.float32)
    w1q = w_dense.astype(bf).astype(jnp.float32)
    w2q = w_out.astype(bf).astype(jnp.float32)
    ref_hidden = jnp.tanh(xq @ w1q + b_dense)
    ref_logits = ref_hidden.astype(bf).astype(jnp.float32) @ w2q + b_out

    assert last_hidden.shape == (B, H) and logits.shape == (B, L)
    assert jnp.allclose(last_hidden, ref_hidden, atol=1e-2, rtol=1e-2)
    assert jnp.allclose(logits, ref_logits, atol=1e-2, rtol=1e-2)

    # Also exercise the logits-only path (drops the last_hidden writeback).
    logits_only = roberta_classification_head(
        features, w_dense, b_dense, w_out, b_out, return_last_hidden=False
    )
    jax.block_until_ready(logits_only)
    assert jnp.allclose(logits_only, ref_logits, atol=1e-2, rtol=1e-2)

    print("KERNEL_OK")
</pallas_src>

<mosaic_0001>
module attributes {stable_mosaic.version = 11 : i64} {
  func.func @_head_kernel(%arg0: i32, %arg1: memref<16x1024xf32, #tpu.memory_space<vmem>>, %arg2: memref<1024x1024xbf16, #tpu.memory_space<vmem>>, %arg3: memref<1x1024xf32, #tpu.memory_space<vmem>>, %arg4: memref<1024x128xbf16, #tpu.memory_space<vmem>>, %arg5: memref<1x128xf32, #tpu.memory_space<vmem>>, %arg6: memref<16x1024xf32, #tpu.memory_space<vmem>>, %arg7: memref<16x128xf32, #tpu.memory_space<vmem>>) attributes {dimension_semantics = [#tpu.dimension_semantics<parallel>], iteration_bounds = array<i64: 1>, scalar_prefetch = 0 : i64, scratch_operands = 0 : i64, tpu.core_type = #tpu.core_type<tc>, window_params = [{transform_indices = @transform_0, window_bounds = array<i64: 16, 1024>}, {pipeline_mode = #tpu.pipeline_mode<synchronous>, transform_indices = @transform_1, window_bounds = array<i64: 1024, 1024>}, {pipeline_mode = #tpu.pipeline_mode<synchronous>, transform_indices = @transform_2, window_bounds = array<i64: 1, 1024>}, {pipeline_mode = #tpu.pipeline_mode<synchronous>, transform_indices = @transform_3, window_bounds = array<i64: 1024, 128>}, {pipeline_mode = #tpu.pipeline_mode<synchronous>, transform_indices = @transform_4, window_bounds = array<i64: 1, 128>}, {transform_indices = @transform_5, window_bounds = array<i64: 16, 1024>}, {transform_indices = @transform_6, window_bounds = array<i64: 16, 128>}]} {
    %c0 = arith.constant 0 : index
    %c0_0 = arith.constant 0 : index
    %0 = vector.load %arg1[%c0, %c0_0] : memref<16x1024xf32, #tpu.memory_space<vmem>>, vector<16x1024xf32>
    %1 = arith.truncf %0 : vector<16x1024xf32> to vector<16x1024xbf16>
    %c0_1 = arith.constant 0 : index
    %c0_2 = arith.constant 0 : index
    %2 = vector.load %arg2[%c0_1, %c0_2] : memref<1024x1024xbf16, #tpu.memory_space<vmem>>, vector<1024x1024xbf16>
    %cst = arith.constant dense<0.000000e+00> : vector<16x1024xf32>
    %3 = tpu.matmul %1, %2, %cst {dimension_numbers = #tpu.dot_dimension_numbers<[1], [0], [0], [1], [0, 0, 1, 1], [], []>} : vector<16x1024xbf16>, vector<1024x1024xbf16>, vector<16x1024xf32> -> vector<16x1024xf32>
    %c0_3 = arith.constant 0 : index
    %c0_4 = arith.constant 0 : index
    %4 = vector.load %arg3[%c0_3, %c0_4] : memref<1x1024xf32, #tpu.memory_space<vmem>>, vector<1x1024xf32>
    %5 = vector.broadcast %4 : vector<1x1024xf32> to vector<16x1024xf32>
    %6 = arith.addf %3, %5 : vector<16x1024xf32>
    %7 = math.tanh %6 : vector<16x1024xf32>
    %c0_5 = arith.constant 0 : index
    %c0_6 = arith.constant 0 : index
    %8 = vector.load %arg6[%c0_5, %c0_6] : memref<16x1024xf32, #tpu.memory_space<vmem>>, vector<16x1024xf32>
    tpu.vector_store %arg6[%c0_5, %c0_6], %7 {strides = array<i32>} : memref<16x1024xf32, #tpu.memory_space<vmem>>, vector<16x1024xf32>,
    %9 = arith.truncf %7 : vector<16x1024xf32> to vector<16x1024xbf16>
    %c0_7 = arith.constant 0 : index
    %c0_8 = arith.constant 0 : index
    %10 = vector.load %arg4[%c0_7, %c0_8] : memref<1024x128xbf16, #tpu.memory_space<vmem>>, vector<1024x128xbf16>
    %cst_9 = arith.constant dense<0.000000e+00> : vector<16x128xf32>
    %11 = tpu.matmul %9, %10, %cst_9 {dimension_numbers = #tpu.dot_dimension_numbers<[1], [0], [0], [1], [0, 0, 1, 1], [], []>} : vector<16x1024xbf16>, vector<1024x128xbf16>, vector<16x128xf32> -> vector<16x128xf32>
    %c0_10 = arith.constant 0 : index
    %c0_11 = arith.constant 0 : index
    %12 = vector.load %arg5[%c0_10, %c0_11] : memref<1x128xf32, #tpu.memory_space<vmem>>, vector<1x128xf32>
    %13 = vector.broadcast %12 : vector<1x128xf32> to vector<16x128xf32>
    %14 = arith.addf %11, %13 : vector<16x128xf32>
    %c0_12 = arith.constant 0 : index
    %c0_13 = arith.constant 0 : index
    %15 = vector.load %arg7[%c0_12, %c0_13] : memref<16x128xf32, #tpu.memory_space<vmem>>, vector<16x128xf32>
    tpu.vector_store %arg7[%c0_12, %c0_13], %14 {strides = array<i32>} : memref<16x128xf32, #tpu.memory_space<vmem>>, vector<16x128xf32>,
    return
  }
  func.func @transform_0(%arg0: i32) -> (i32, i32) {
    %c0_i32 = arith.constant 0 : i32
    %c0_i32_0 = arith.constant 0 : i32
    return %arg0, %c0_i32 : i32, i32
  }
  func.func @transform_1(%arg0: i32) -> (i32, i32) {
    %c0_i32 = arith.constant 0 : i32
    %c0_i32_0 = arith.constant 0 : i32
    %c0_i32_1 = arith.constant 0 : i32
    return %c0_i32, %c0_i32_0 : i32, i32
  }
  func.func @transform_2(%arg0: i32) -> (i32, i32) {
    %c0_i32 = arith.constant 0 : i32
    %c0_i32_0 = arith.constant 0 : i32
    %c0_i32_1 = arith.constant 0 : i32
    return %c0_i32, %c0_i32_0 : i32, i32
  }
  func.func @transform_3(%arg0: i32) -> (i32, i32) {
    %c0_i32 = arith.constant 0 : i32
    %c0_i32_0 = arith.constant 0 : i32
    %c0_i32_1 = arith.constant 0 : i32
    return %c0_i32, %c0_i32_0 : i32, i32
  }
  func.func @transform_4(%arg0: i32) -> (i32, i32) {
    %c0_i32 = arith.constant 0 : i32
    %c0_i32_0 = arith.constant 0 : i32
    %c0_i32_1 = arith.constant 0 : i32
    return %c0_i32, %c0_i32_0 : i32, i32
  }
  func.func @transform_5(%arg0: i32) -> (i32, i32) {
    %c0_i32 = arith.constant 0 : i32
    %c0_i32_0 = arith.constant 0 : i32
    return %arg0, %c0_i32 : i32, i32
  }
  func.func @transform_6(%arg0: i32) -> (i32, i32) {
    %c0_i32 = arith.constant 0 : i32
    %c0_i32_0 = arith.constant 0 : i32
    return %arg0, %c0_i32 : i32, i32
  }
}

</mosaic_0001>

<llo_original>
// kernel: tpu_custom_call.1
$region0: #{tpu_custom_call.1}
  #allocation0 [shape = 'u32[]', space=smem, size = 0x4, offset = 0x4, fixed_abs, tag = 'smem constant byte address 0x4 - core index']
  #allocation1 [shape = 'u32[72,128]{1,0:T(1,128)}', space=vmem, size = 0x9000, scoped, tag = 'internal scratch']
  %s0 = inlined_call_operand.hbm [shape: f32[16,1024], index: 0, kind: input, shape index: {}]
  %s1 = inlined_call_operand.hbm [shape: bf16[1024,1024], index: 1, kind: input, shape index: {}]
  %s2 = inlined_call_operand.hbm [shape: f32[1,1024], index: 2, kind: input, shape index: {}]
  %s3 = inlined_call_operand.hbm [shape: bf16[1024,128], index: 3, kind: input, shape index: {}]
  %s4 = inlined_call_operand.hbm [shape: f32[1,128], index: 4, kind: input, shape index: {}]
  %s5 = inlined_call_operand.hbm [shape: f32[16,1024], index: 5, kind: output, shape index: {0}]
  %s6 = inlined_call_operand.hbm [shape: f32[16,128], index: 6, kind: output, shape index: {1}]
  %7 = xla_tuple %s5, %s6
  %s8 = sld [smem:[#allocation0]]
  $region58: #{tpu_custom_call.1} parent=0
    _
  %s10 = ssub.s32 1, %s8
  %s11 = scalar_select 0, %s10, %s8
  $region1: #{tpu_custom_call.1} parent=0
    #allocation2 [shape = 'u8[65536]{0}', space=vmem, size = 0x10000, scoped, tag = 'input window, operand 0, single buffered']
    #allocation3 [shape = 's32[1]{0}', space=sflag, size = 0x4, scoped, tag = 'scoped memory for tpu_custom_call.1']
    #allocation4 [shape = 's32[1]{0}', space=sflag, size = 0x4, scoped, tag = 'scoped memory for tpu_custom_call.1']
    #allocation5 [shape = 'u8[2097152]{0}', space=vmem, size = 0x200000, scoped, tag = 'input window, operand 1, single buffered']
    #allocation6 [shape = 's32[1]{0}', space=sflag, size = 0x4, scoped, tag = 'scoped memory for tpu_custom_call.1']
    #allocation7 [shape = 'u8[4096]{0}', space=vmem, size = 0x1000, scoped, tag = 'input window, operand 2, single buffered']
    #allocation8 [shape = 'u8[262144]{0}', space=vmem, size = 0x40000, scoped, tag = 'input window, operand 3, single buffered']
    #allocation9 [shape = 's32[1]{0}', space=sflag, size = 0x4, scoped, tag = 'scoped memory for tpu_custom_call.1']
    #allocation10 [shape = 'u8[512]{0}', space=vmem, size = 0x400, scoped, tag = 'input window, operand 4, single buffered']
    #allocation11 [shape = 'u8[65536]{0}', space=vmem, size = 0x10000, scoped, tag = 'output window, operand 0, single buffered']
    #allocation12 [shape = 'u8[8192]{0}', space=vmem, size = 0x2000, scoped, tag = 'output window, operand 1, single buffered']
    #allocation13 [shape = 's32[1]{0}', space=sflag, size = 0x4, scoped, tag = 'scoped memory for tpu_custom_call.1']
    %12 = vsyncpa [#allocation3], 0
    %13 = vsyncpa [#allocation6], 0
    %14 = vsyncpa [#allocation9], 0
    %15 = vsyncpa [#allocation4], 0
    %16 = vsyncpa [#allocation13], 0
    // Predicated region
    $region2: #{tpu_custom_call.1} parent=1 // pred_check
      _
    $region3: #{tpu_custom_call.1} parent=1 // pred_check_branch
      %18 = sbr.rel (0) target = $region5
    $region4: #{tpu_custom_call.1} parent=1 // pred_region
      %20 = vsyncadd [#allocation3], 0
      %s21 = sshll.u32 %s0, 4
      %s22 = int_to_ptr.hbm [resolvable:$true] %s21
      %s23 = sshll.u32 [#allocation2], 4
      %s24 = int_to_ptr.vmem [resolvable:$true] %s23
      %29 = dma.hbm_to_vmem [thread:$0]  %s22, 2048, %s24, [#allocation3], 1024, 1024, 64
    $region5: #{tpu_custom_call.1} parent=1 // pred_fallthru
      _
    // Predicated region
    $region6: #{tpu_custom_call.1} parent=1 // pred_check
      _
    $region7: #{tpu_custom_call.1} parent=1 // pred_check_branch
      %31 = sbr.rel (0) target = $region9
    $region8: #{tpu_custom_call.1} parent=1 // pred_region
      %33 = vsyncadd [#allocation6], 0
      %s34 = sshll.u32 %s1, 4
      %s35 = int_to_ptr.hbm [resolvable:$true] %s34
      %s36 = sshll.u32 [#allocation5], 4
      %s37 = int_to_ptr.vmem [resolvable:$true] %s36
      %42 = dma.hbm_to_vmem [thread:$0]  %s35, 65536, %s37, [#allocation6], 512, 512, 32
    $region9: #{tpu_custom_call.1} parent=1 // pred_fallthru
      _
    // Predicated region
    $region10: #{tpu_custom_call.1} parent=1 // pred_check
      _
    $region11: #{tpu_custom_call.1} parent=1 // pred_check_branch
      %44 = sbr.rel (0) target = $region13
    $region12: #{tpu_custom_call.1} parent=1 // pred_region
      %46 = vsyncadd [#allocation6], 0
      %s48 = sshll.u32 %s2, 4
      %s49 = int_to_ptr.hbm [resolvable:$true] %s48
      %s50 = sshll.u32 [#allocation7], 4
      %s51 = int_to_ptr.vmem [resolvable:$true] %s50
      %53 = dma.hbm_to_vmem [thread:$0]  %s49, 128, %s51, [#allocation6]
    $region13: #{tpu_custom_call.1} parent=1 // pred_fallthru
      _
    // Predicated region
    $region14: #{tpu_custom_call.1} parent=1 // pred_check
      _
    $region15: #{tpu_custom_call.1} parent=1 // pred_check_branch
      %55 = sbr.rel (0) target = $region17
    $region16: #{tpu_custom_call.1} parent=1 // pred_region
      %57 = vsyncadd [#allocation9], 0
      %s58 = sshll.u32 %s3, 4
      %s59 = int_to_ptr.hbm [resolvable:$true] %s58
      %s60 = sshll.u32 [#allocation8], 4
      %s61 = int_to_ptr.vmem [resolvable:$true] %s60
      %66 = dma.hbm_to_vmem [thread:$0]  %s59, 8192, %s61, [#allocation9], 64, 64, 4
    $region17: #{tpu_custom_call.1} parent=1 // pred_fallthru
      _
    // Predicated region
    $region18: #{tpu_custom_call.1} parent=1 // pred_check
      _
    $region19: #{tpu_custom_call.1} parent=1 // pred_check_branch
      %68 = sbr.rel (0) target = $region21
    $region20: #{tpu_custom_call.1} parent=1 // pred_region
      %70 = vsyncadd [#allocation9], 0
      %s72 = sshll.u32 %s4, 4
      %s73 = int_to_ptr.hbm [resolvable:$true] %s72
      %s74 = sshll.u32 [#allocation10], 4
      %s75 = int_to_ptr.vmem [resolvable:$true] %s74
      %77 = dma.hbm_to_vmem [thread:$0]  %s73, 16, %s75, [#allocation9]
    $region21: #{tpu_custom_call.1} parent=1 // pred_fallthru
      _
    // Predicated region
    $region22: #{tpu_custom_call.1} parent=1 // pred_check
      _
    $region23: #{tpu_custom_call.1} parent=1 // pred_check_branch
      %79 = sbr.rel (0) target = $region25
    $region24: #{tpu_custom_call.1} parent=1 // pred_region
      %81 = dma.done [#allocation3], 2048
    $region25: #{tpu_custom_call.1} parent=1 // pred_fallthru
      _
    // Predicated region
    $region26: #{tpu_custom_call.1} parent=1 // pred_check
      _
    $region27: #{tpu_custom_call.1} parent=1 // pred_check_branch
      %83 = sbr.rel (0) target = $region29
    $region28: #{tpu_custom_call.1} parent=1 // pred_region
      %85 = dma.done [#allocation6], 65536
    $region29: #{tpu_custom_call.1} parent=1 // pred_fallthru
      _
    // Predicated region
    $region30: #{tpu_custom_call.1} parent=1 // pred_check
      _
    $region31: #{tpu_custom_call.1} parent=1 // pred_check_branch
      %87 = sbr.rel (0) target = $region33
    $region32: #{tpu_custom_call.1} parent=1 // pred_region
      %89 = dma.done [#allocation6], 128
    $region33: #{tpu_custom_call.1} parent=1 // pred_fallthru
      _
    // Predicated region
    $region34: #{tpu_custom_call.1} parent=1 // pred_check
      _
    $region35: #{tpu_custom_call.1} parent=1 // pred_check_branch
      %91 = sbr.rel (0) target = $region37
    $region36: #{tpu_custom_call.1} parent=1 // pred_region
      %93 = dma.done [#allocation9], 8192
    $region37: #{tpu_custom_call.1} parent=1 // pred_fallthru
      _
    // Predicated region
    $region38: #{tpu_custom_call.1} parent=1 // pred_check
      _
    $region39: #{tpu_custom_call.1} parent=1 // pred_check_branch
      %95 = sbr.rel (0) target = $region41
    $region40: #{tpu_custom_call.1} parent=1 // pred_region
      %97 = dma.done [#allocation9], 16
    $region41: #{tpu_custom_call.1} parent=1 // pred_fallthru
      _
    %v98 = vld [vmem:[#allocation2] sm:$0xff]
    %v99 = vld [vmem:[#allocation2 + $0x8] sm:$0xff]
    %v100 = vld [vmem:[#allocation2 + $0x10] sm:$0xff]
    %v101 = vld [vmem:[#allocation2 + $0x18] sm:$0xff]
    %v102 = vld [vmem:[#allocation2 + $0x20] sm:$0xff]
    %v103 = vld [vmem:[#allocation2 + $0x28] sm:$0xff]
    %v104 = vld [vmem:[#allocation2 + $0x30] sm:$0xff]
    %v105 = vld [vmem:[#allocation2 + $0x38] sm:$0xff]
    %v106 = vld [vmem:[#allocation2 + $0x40] sm:$0xff]
    %v107 = vld [vmem:[#allocation2 + $0x48] sm:$0xff]
    %v108 = vld [vmem:[#allocation2 + $0x50] sm:$0xff]
    %v109 = vld [vmem:[#allocation2 + $0x58] sm:$0xff]
    %v110 = vld [vmem:[#allocation2 + $0x60] sm:$0xff]
    %v111 = vld [vmem:[#allocation2 + $0x68] sm:$0xff]
    %v112 = vld [vmem:[#allocation2 + $0x70] sm:$0xff]
    %v113 = vld [vmem:[#allocation2 + $0x78] sm:$0xff]
    %v114 = vpack.c.bf16 %v106, %v98
    %v115 = vpack.c.bf16 %v107, %v99
    %v116 = vpack.c.bf16 %v108, %v100
    %v117 = vpack.c.bf16 %v109, %v101
    %v118 = vpack.c.bf16 %v110, %v102
    %v119 = vpack.c.bf16 %v111, %v103
    %v120 = vpack.c.bf16 %v112, %v104
    %v121 = vpack.c.bf16 %v113, %v105
    %v122 = vld [vmem:[#allocation5] sm:$0xff]
    %v123 = vld [vmem:[#allocation5 + $0x8] sm:$0xff]
    %v124 = vld [vmem:[#allocation5 + $0x10] sm:$0xff]
    %v125 = vld [vmem:[#allocation5 + $0x18] sm:$0xff]
    %v126 = vld [vmem:[#allocation5 + $0x20] sm:$0xff]
    %v127 = vld [vmem:[#allocation5 + $0x28] sm:$0xff]
    %v128 = vld [vmem:[#allocation5 + $0x30] sm:$0xff]
    %v129 = vld [vmem:[#allocation5 + $0x38] sm:$0xff]
    %v130 = vld [vmem:[#allocation5 + $0x40] sm:$0xff]
    %v131 = vld [vmem:[#allocation5 + $0x48] sm:$0xff]
    %v132 = vld [vmem:[#allocation5 + $0x50] sm:$0xff]
    %v133 = vld [vmem:[#allocation5 + $0x58] sm:$0xff]
    %v134 = vld [vmem:[#allocation5 + $0x60] sm:$0xff]
    %v135 = vld [vmem:[#allocation5 + $0x68] sm:$0xff]
    %v136 = vld [vmem:[#allocation5 + $0x70] sm:$0xff]
    %v137 = vld [vmem:[#allocation5 + $0x78] sm:$0xff]
    %v138 = vld [vmem:[#allocation5 + $0x80] sm:$0xff]
    %v139 = vld [vmem:[#allocation5 + $0x88] sm:$0xff]
    %v140 = vld [vmem:[#allocation5 + $0x90] sm:$0xff]
    %v141 = vld [vmem:[#allocation5 + $0x98] sm:$0xff]
    %v142 = vld [vmem:[#allocation5 + $0xa0] sm:$0xff]
    %v143 = vld [vmem:[#allocation5 + $0xa8] sm:$0xff]
    %v144 = vld [vmem:[#allocation5 + $0xb0] sm:$0xff]
    %v145 = vld [vmem:[#allocation5 + $0xb8] sm:$0xff]
    %v146 = vld [vmem:[#allocation5 + $0xc0] sm:$0xff]
    %v147 = vld [vmem:[#allocation5 + $0xc8] sm:$0xff]
    %v148 = vld [vmem:[#allocation5 + $0xd0] sm:$0xff]
    %v149 = vld [vmem:[#allocation5 + $0xd8] sm:$0xff]
    %v150 = vld [vmem:[#allocation5 + $0xe0] sm:$0xff]
    %v151 = vld [vmem:[#allocation5 + $0xe8] sm:$0xff]
    %v152 = vld [vmem:[#allocation5 + $0xf0] sm:$0xff]
    %v153 = vld [vmem:[#allocation5 + $0xf8] sm:$0xff]
    %v154 = vld [vmem:[#allocation5 + $0x100] sm:$0xff]
    %v155 = vld [vmem:[#allocation5 + $0x108] sm:$0xff]
    %v156 = vld [vmem:[#allocation5 + $0x110] sm:$0xff]
    %v157 = vld [vmem:[#allocation5 + $0x118] sm:$0xff]
    %v158 = vld [vmem:[#allocation5 + $0x120] sm:$0xff]
    %v159 = vld [vmem:[#allocation5 + $0x128] sm:$0xff]
    %v160 = vld [vmem:[#allocation5 + $0x130] sm:$0xff]
    %v161 = vld [vmem:[#allocation5 + $0x138] sm:$0xff]
    %v162 = vld [vmem:[#allocation5 + $0x140] sm:$0xff]
    %v163 = vld [vmem:[#allocation5 + $0x148] sm:$0xff]
    %v164 = vld [vmem:[#allocation5 + $0x150] sm:$0xff]
    %v165 = vld [vmem:[#allocation5 + $0x158] sm:$0xff]
    %v166 = vld [vmem:[#allocation5 + $0x160] sm:$0xff]
    %v167 = vld [vmem:[#allocation5 + $0x168] sm:$0xff]
    %v168 = vld [vmem:[#allocation5 + $0x170] sm:$0xff]
    %v169 = vld [vmem:[#allocation5 + $0x178] sm:$0xff]
    %v170 = vld [vmem:[#allocation5 + $0x180] sm:$0xff]
    %v171 = vld [vmem:[#allocation5 + $0x188] sm:$0xff]
    %v172 = vld [vmem:[#allocation5 + $0x190] sm:$0xff]
    %v173 = vld [vmem:[#allocation5 + $0x198] sm:$0xff]
    %v174 = vld [vmem:[#allocation5 + $0x1a0] sm:$0xff]
    %v175 = vld [vmem:[#allocation5 + $0x1a8] sm:$0xff]
    %v176 = vld [vmem:[#allocation5 + $0x1b0] sm:$0xff]
    %v177 = vld [vmem:[#allocation5 + $0x1b8] sm:$0xff]
    %v178 = vld [vmem:[#allocation5 + $0x1c0] sm:$0xff]
    %v179 = vld [vmem:[#allocation5 + $0x1c8] sm:$0xff]
    %v180 = vld [vmem:[#allocation5 + $0x1d0] sm:$0xff]
    %v181 = vld [vmem:[#allocation5 + $0x1d8] sm:$0xff]
    %v182 = vld [vmem:[#allocation5 + $0x1e0] sm:$0xff]
    %v183 = vld [vmem:[#allocation5 + $0x1e8] sm:$0xff]
    %v184 = vld [vmem:[#allocation5 + $0x1f0] sm:$0xff]
    %v185 = vld [vmem:[#allocation5 + $0x1f8] sm:$0xff]
    %v186 = vld [vmem:[#allocation5 + $0x200] sm:$0xff]
    %v187 = vld [vmem:[#allocation5 + $0x208] sm:$0xff]
    %v188 = vld [vmem:[#allocation5 + $0x210] sm:$0xff]
    %v189 = vld [vmem:[#allocation5 + $0x218] sm:$0xff]
    %v190 = vld [vmem:[#allocation5 + $0x220] sm:$0xff]
    %v191 = vld [vmem:[#allocation5 + $0x228] sm:$0xff]
    %v192 = vld [vmem:[#allocation5 + $0x230] sm:$0xff]
    %v193 = vld [vmem:[#allocation5 + $0x238] sm:$0xff]
    %v194 = vld [vmem:[#allocation5 + $0x240] sm:$0xff]
    %v195 = vld [vmem:[#allocation5 + $0x248] sm:$0xff]
    %v196 = vld [vmem:[#allocation5 + $0x250] sm:$0xff]
    %v197 = vld [vmem:[#allocation5 + $0x258] sm:$0xff]
    %v198 = vld [vmem:[#allocation5 + $0x260] sm:$0xff]
    %v199 = vld [vmem:[#allocation5 + $0x268] sm:$0xff]
    %v200 = vld [vmem:[#allocation5 + $0x270] sm:$0xff]
    %v201 = vld [vmem:[#allocation5 + $0x278] sm:$0xff]
    %v202 = vld [vmem:[#allocation5 + $0x280] sm:$0xff]
    %v203 = vld [vmem:[#allocation5 + $0x288] sm:$0xff]
    %v204 = vld [vmem:[#allocation5 + $0x290] sm:$0xff]
    %v205 = vld [vmem:[#allocation5 + $0x298] sm:$0xff]
    %v206 = vld [vmem:[#allocation5 + $0x2a0] sm:$0xff]
    %v207 = vld [vmem:[#allocation5 + $0x2a8] sm:$0xff]
    %v208 = vld [vmem:[#allocation5 + $0x2b0] sm:$0xff]
    %v209 = vld [vmem:[#allocation5 + $0x2b8] sm:$0xff]
    %v210 = vld [vmem:[#allocation5 + $0x2c0] sm:$0xff]
    %v211 = vld [vmem:[#allocation5 + $0x2c8] sm:$0xff]
    %v212 = vld [vmem:[#allocation5 + $0x2d0] sm:$0xff]
    %v213 = vld [vmem:[#allocation5 + $0x2d8] sm:$0xff]
    %v214 = vld [vmem:[#allocation5 + $0x2e0] sm:$0xff]
    %v215 = vld [vmem:[#allocation5 + $0x2e8] sm:$0xff]
    %v216 = vld [vmem:[#allocation5 + $0x2f0] sm:$0xff]
    %v217 = vld [vmem:[#allocation5 + $0x2f8] sm:$0xff]
    %v218 = vld [vmem:[#allocation5 + $0x300] sm:$0xff]
    %v219 = vld [vmem:[#allocation5 + $0x308] sm:$0xff]
    %v220 = vld [vmem:[#allocation5 + $0x310] sm:$0xff]
    %v221 = vld [vmem:[#allocation5 + $0x318] sm:$0xff]
    %v222 = vld [vmem:[#allocation5 + $0x320] sm:$0xff]
    %v223 = vld [vmem:[#allocation5 + $0x328] sm:$0xff]
    %v224 = vld [vmem:[#allocation5 + $0x330] sm:$0xff]
    %v225 = vld [vmem:[#allocation5 + $0x338] sm:$0xff]
    %v226 = vld [vmem:[#allocation5 + $0x340] sm:$0xff]
    %v227 = vld [vmem:[#allocation5 + $0x348] sm:$0xff]
    %v228 = vld [vmem:[#allocation5 + $0x350] sm:$0xff]
    %v229 = vld [vmem:[#allocation5 + $0x358] sm:$0xff]
    %v230 = vld [vmem:[#allocation5 + $0x360] sm:$0xff]
    %v231 = vld [vmem:[#allocation5 + $0x368] sm:$0xff]
    %v232 = vld [vmem:[#allocation5 + $0x370] sm:$0xff]
    %v233 = vld [vmem:[#allocation5 + $0x378] sm:$0xff]
    %v234 = vld [vmem:[#allocation5 + $0x380] sm:$0xff]
    %v235 = vld [vmem:[#allocation5 + $0x388] sm:$0xff]
    %v236 = vld [vmem:[#allocation5 + $0x390] sm:$0xff]
    %v237 = vld [vmem:[#allocation5 + $0x398] sm:$0xff]
    %v238 = vld [vmem:[#allocation5 + $0x3a0] sm:$0xff]
    %v239 = vld [vmem:[#allocation5 + $0x3a8] sm:$0xff]
    %v240 = vld [vmem:[#allocation5 + $0x3b0] sm:$0xff]
    %v241 = vld [vmem:[#allocation5 + $0x3b8] sm:$0xff]
    %v242 = vld [vmem:[#allocation5 + $0x3c0] sm:$0xff]
    %v243 = vld [vmem:[#allocation5 + $0x3c8] sm:$0xff]
    %v244 = vld [vmem:[#allocation5 + $0x3d0] sm:$0xff]
    %v245 = vld [vmem:[#allocation5 + $0x3d8] sm:$0xff]
    %v246 = vld [vmem:[#allocation5 + $0x3e0] sm:$0xff]
    %v247 = vld [vmem:[#allocation5 + $0x3e8] sm:$0xff]
    %v248 = vld [vmem:[#allocation5 + $0x3f0] sm:$0xff]
    %v249 = vld [vmem:[#allocation5 + $0x3f8] sm:$0xff]
    %v250 = vld [vmem:[#allocation5 + $0x400] sm:$0xff]
    %v251 = vld [vmem:[#allocation5 + $0x408] sm:$0xff]
    %v252 = vld [vmem:[#allocation5 + $0x410] sm:$0xff]
    %v253 = vld [vmem:[#allocation5 + $0x418] sm:$0xff]
    %v254 = vld [vmem:[#allocation5 + $0x420] sm:$0xff]
    %v255 = vld [vmem:[#allocation5 + $0x428] sm:$0xff]
    %v256 = vld [vmem:[#allocation5 + $0x430] sm:$0xff]
    %v257 = vld [vmem:[#allocation5 + $0x438] sm:$0xff]
    %v258 = vld [vmem:[#allocation5 + $0x440] sm:$0xff]
    %v259 = vld [vmem:[#allocation5 + $0x448] sm:$0xff]
    %v260 = vld [vmem:[#allocation5 + $0x450] sm:$0xff]
    %v261 = vld [vmem:[#allocation5 + $0x458] sm:$0xff]
    %v262 = vld [vmem:[#allocation5 + $0x460] sm:$0xff]
    %v263 = vld [vmem:[#allocation5 + $0x468] sm:$0xff]
    %v264 = vld [vmem:[#allocation5 + $0x470] sm:$0xff]
    %v265 = vld [vmem:[#allocation5 + $0x478] sm:$0xff]
    %v266 = vld [vmem:[#allocation5 + $0x480] sm:$0xff]
    %v267 = vld [vmem:[#allocation5 + $0x488] sm:$0xff]
    %v268 = vld [vmem:[#allocation5 + $0x490] sm:$0xff]
    %v269 = vld [vmem:[#allocation5 + $0x498] sm:$0xff]
    %v270 = vld [vmem:[#allocation5 + $0x4a0] sm:$0xff]
    %v271 = vld [vmem:[#allocation5 + $0x4a8] sm:$0xff]
    %v272 = vld [vmem:[#allocation5 + $0x4b0] sm:$0xff]
    %v273 = vld [vmem:[#allocation5 + $0x4b8] sm:$0xff]
    %v274 = vld [vmem:[#allocation5 + $0x4c0] sm:$0xff]
    %v275 = vld [vmem:[#allocation5 + $0x4c8] sm:$0xff]
    %v276 = vld [vmem:[#allocation5 + $0x4d0] sm:$0xff]
    %v277 = vld [vmem:[#allocation5 + $0x4d8] sm:$0xff]
    %v278 = vld [vmem:[#allocation5 + $0x4e0] sm:$0xff]
    %v279 = vld [vmem:[#allocation5 + $0x4e8] sm:$0xff]
    %v280 = vld [vmem:[#allocation5 + $0x4f0] sm:$0xff]
    %v281 = vld [vmem:[#allocation5 + $0x4f8] sm:$0xff]
    %v282 = vld [vmem:[#allocation5 + $0x500] sm:$0xff]
    %v283 = vld [vmem:[#allocation5 + $0x508] sm:$0xff]
    %v284 = vld [vmem:[#allocation5 + $0x510] sm:$0xff]
    %v285 = vld [vmem:[#allocation5 + $0x518] sm:$0xff]
    %v286 = vld [vmem:[#allocation5 + $0x520] sm:$0xff]
    %v287 = vld [vmem:[#allocation5 + $0x528] sm:$0xff]
    %v288 = vld [vmem:[#allocation5 + $0x530] sm:$0xff]
    %v289 = vld [vmem:[#allocation5 + $0x538] sm:$0xff]
    %v290 = vld [vmem:[#allocation5 + $0x540] sm:$0xff]
    %v291 = vld [vmem:[#allocation5 + $0x548] sm:$0xff]
    %v292 = vld [vmem:[#allocation5 + $0x550] sm:$0xff]
    %v293 = vld [vmem:[#allocation5 + $0x558] sm:$0xff]
    %v294 = vld [vmem:[#allocation5 + $0x560] sm:$0xff]
    %v295 = vld [vmem:[#allocation5 + $0x568] sm:$0xff]
    %v296 = vld [vmem:[#allocation5 + $0x570] sm:$0xff]
    %v297 = vld [vmem:[#allocation5 + $0x578] sm:$0xff]
    %v298 = vld [vmem:[#allocation5 + $0x580] sm:$0xff]
    %v299 = vld [vmem:[#allocation5 + $0x588] sm:$0xff]
    %v300 = vld [vmem:[#allocation5 + $0x590] sm:$0xff]
    %v301 = vld [vmem:[#allocation5 + $0x598] sm:$0xff]
    %v302 = vld [vmem:[#allocation5 + $0x5a0] sm:$0xff]
    %v303 = vld [vmem:[#allocation5 + $0x5a8] sm:$0xff]
    %v304 = vld [vmem:[#allocation5 + $0x5b0] sm:$0xff]
    %v305 = vld [vmem:[#allocation5 + $0x5b8] sm:$0xff]
    %v306 = vld [vmem:[#allocation5 + $0x5c0] sm:$0xff]
    %v307 = vld [vmem:[#allocation5 + $0x5c8] sm:$0xff]
    %v308 = vld [vmem:[#allocation5 + $0x5d0] sm:$0xff]
    %v309 = vld [vmem:[#allocation5 + $0x5d8] sm:$0xff]
    %v310 = vld [vmem:[#allocation5 + $0x5e0] sm:$0xff]
    %v311 = vld [vmem:[#allocation5 + $0x5e8] sm:$0xff]
    %v312 = vld [vmem:[#allocation5 + $0x5f0] sm:$0xff]
    %v313 = vld [vmem:[#allocation5 + $0x5f8] sm:$0xff]
    %v314 = vld [vmem:[#allocation5 + $0x600] sm:$0xff]
    %v315 = vld [vmem:[#allocation5 + $0x608] sm:$0xff]
    %v316 = vld [vmem:[#allocation5 + $0x610] sm:$0xff]
    %v317 = vld [vmem:[#allocation5 + $0x618] sm:$0xff]
    %v318 = vld [vmem:[#allocation5 + $0x620] sm:$0xff]
    %v319 = vld [vmem:[#allocation5 + $0x628] sm:$0xff]
    %v320 = vld [vmem:[#allocation5 + $0x630] sm:$0xff]
    %v321 = vld [vmem:[#allocation5 + $0x638] sm:$0xff]
    %v322 = vld [vmem:[#allocation5 + $0x640] sm:$0xff]
    %v323 = vld [vmem:[#allocation5 + $0x648] sm:$0xff]
    %v324 = vld [vmem:[#allocation5 + $0x650] sm:$0xff]
    %v325 = vld [vmem:[#allocation5 + $0x658] sm:$0xff]
    %v326 = vld [vmem:[#allocation5 + $0x660] sm:$0xff]
    %v327 = vld [vmem:[#allocation5 + $0x668] sm:$0xff]
    %v328 = vld [vmem:[#allocation5 + $0x670] sm:$0xff]
    %v329 = vld [vmem:[#allocation5 + $0x678] sm:$0xff]
    %v330 = vld [vmem:[#allocation5 + $0x680] sm:$0xff]
    %v331 = vld [vmem:[#allocation5 + $0x688] sm:$0xff]
    %v332 = vld [vmem:[#allocation5 + $0x690] sm:$0xff]
    %v333 = vld [vmem:[#allocation5 + $0x698] sm:$0xff]
    %v334 = vld [vmem:[#allocation5 + $0x6a0] sm:$0xff]
    %v335 = vld [vmem:[#allocation5 + $0x6a8] sm:$0xff]
    %v336 = vld [vmem:[#allocation5 + $0x6b0] sm:$0xff]
    %v337 = vld [vmem:[#allocation5 + $0x6b8] sm:$0xff]
    %v338 = vld [vmem:[#allocation5 + $0x6c0] sm:$0xff]
    %v339 = vld [vmem:[#allocation5 + $0x6c8] sm:$0xff]
    %v340 = vld [vmem:[#allocation5 + $0x6d0] sm:$0xff]
    %v341 = vld [vmem:[#allocation5 + $0x6d8] sm:$0xff]
    %v342 = vld [vmem:[#allocation5 + $0x6e0] sm:$0xff]
    %v343 = vld [vmem:[#allocation5 + $0x6e8] sm:$0xff]
    %v344 = vld [vmem:[#allocation5 + $0x6f0] sm:$0xff]
    %v345 = vld [vmem:[#allocation5 + $0x6f8] sm:$0xff]
    %v346 = vld [vmem:[#allocation5 + $0x700] sm:$0xff]
    %v347 = vld [vmem:[#allocation5 + $0x708] sm:$0xff]
    %v348 = vld [vmem:[#allocation5 + $0x710] sm:$0xff]
    %v349 = vld [vmem:[#allocation5 + $0x718] sm:$0xff]
    %v350 = vld [vmem:[#allocation5 + $0x720] sm:$0xff]
    %v351 = vld [vmem:[#allocation5 + $0x728] sm:$0xff]
    %v352 = vld [vmem:[#allocation5 + $0x730] sm:$0xff]
    %v353 = vld [vmem:[#allocation5 + $0x738] sm:$0xff]
    %v354 = vld [vmem:[#allocation5 + $0x740] sm:$0xff]
    %v355 = vld [vmem:[#allocation5 + $0x748] sm:$0xff]
    %v356 = vld [vmem:[#allocation5 + $0x750] sm:$0xff]
    %v357 = vld [vmem:[#allocation5 + $0x758] sm:$0xff]
    %v358 = vld [vmem:[#allocation5 + $0x760] sm:$0xff]
    %v359 = vld [vmem:[#allocation5 + $0x768] sm:$0xff]
    %v360 = vld [vmem:[#allocation5 + $0x770] sm:$0xff]
    %v361 = vld [vmem:[#allocation5 + $0x778] sm:$0xff]
    %v362 = vld [vmem:[#allocation5 + $0x780] sm:$0xff]
    %v363 = vld [vmem:[#allocation5 + $0x788] sm:$0xff]
    %v364 = vld [vmem:[#allocation5 + $0x790] sm:$0xff]
    %v365 = vld [vmem:[#allocation5 + $0x798] sm:$0xff]
    %v366 = vld [vmem:[#allocation5 + $0x7a0] sm:$0xff]
    %v367 = vld [vmem:[#allocation5 + $0x7a8] sm:$0xff]
    %v368 = vld [vmem:[#allocation5 + $0x7b0] sm:$0xff]
    %v369 = vld [vmem:[#allocation5 + $0x7b8] sm:$0xff]
    %v370 = vld [vmem:[#allocation5 + $0x7c0] sm:$0xff]
    %v371 = vld [vmem:[#allocation5 + $0x7c8] sm:$0xff]
    %v372 = vld [vmem:[#allocation5 + $0x7d0] sm:$0xff]
    %v373 = vld [vmem:[#allocation5 + $0x7d8] sm:$0xff]
    %v374 = vld [vmem:[#allocation5 + $0x7e0] sm:$0xff]
    %v375 = vld [vmem:[#allocation5 + $0x7e8] sm:$0xff]
    %v376 = vld [vmem:[#allocation5 + $0x7f0] sm:$0xff]
    %v377 = vld [vmem:[#allocation5 + $0x7f8] sm:$0xff]
    %v378 = vld [vmem:[#allocation5 + $0x800] sm:$0xff]
    %v379 = vld [vmem:[#allocation5 + $0x808] sm:$0xff]
    %v380 = vld [vmem:[#allocation5 + $0x810] sm:$0xff]
    %v381 = vld [vmem:[#allocation5 + $0x818] sm:$0xff]
    %v382 = vld [vmem:[#allocation5 + $0x820] sm:$0xff]
    %v383 = vld [vmem:[#allocation5 + $0x828] sm:$0xff]
    %v384 = vld [vmem:[#allocation5 + $0x830] sm:$0xff]
    %v385 = vld [vmem:[#allocation5 + $0x838] sm:$0xff]
    %v386 = vld [vmem:[#allocation5 + $0x840] sm:$0xff]
    %v387 = vld [vmem:[#allocation5 + $0x848] sm:$0xff]
    %v388 = vld [vmem:[#allocation5 + $0x850] sm:$0xff]
    %v389 = vld [vmem:[#allocation5 + $0x858] sm:$0xff]
    %v390 = vld [vmem:[#allocation5 + $0x860] sm:$0xff]
    %v391 = vld [vmem:[#allocation5 + $0x868] sm:$0xff]
    %v392 = vld [vmem:[#allocation5 + $0x870] sm:$0xff]
    %v393 = vld [vmem:[#allocation5 + $0x878] sm:$0xff]
    %v394 = vld [vmem:[#allocation5 + $0x880] sm:$0xff]
    %v395 = vld [vmem:[#allocation5 + $0x888] sm:$0xff]
    %v396 = vld [vmem:[#allocation5 + $0x890] sm:$0xff]
    %v397 = vld [vmem:[#allocation5 + $0x898] sm:$0xff]
    %v398 = vld [vmem:[#allocation5 + $0x8a0] sm:$0xff]
    %v399 = vld [vmem:[#allocation5 + $0x8a8] sm:$0xff]
    %v400 = vld [vmem:[#allocation5 + $0x8b0] sm:$0xff]
    %v401 = vld [vmem:[#allocation5 + $0x8b8] sm:$0xff]
    %v402 = vld [vmem:[#allocation5 + $0x8c0] sm:$0xff]
    %v403 = vld [vmem:[#allocation5 + $0x8c8] sm:$0xff]
    %v404 = vld [vmem:[#allocation5 + $0x8d0] sm:$0xff]
    %v405 = vld [vmem:[#allocation5 + $0x8d8] sm:$0xff]
    %v406 = vld [vmem:[#allocation5 + $0x8e0] sm:$0xff]
    %v407 = vld [vmem:[#allocation5 + $0x8e8] sm:$0xff]
    %v408 = vld [vmem:[#allocation5 + $0x8f0] sm:$0xff]
    %v409 = vld [vmem:[#allocation5 + $0x8f8] sm:$0xff]
    %v410 = vld [vmem:[#allocation5 + $0x900] sm:$0xff]
    %v411 = vld [vmem:[#allocation5 + $0x908] sm:$0xff]
    %v412 = vld [vmem:[#allocation5 + $0x910] sm:$0xff]
    %v413 = vld [vmem:[#allocation5 + $0x918] sm:$0xff]
    %v414 = vld [vmem:[#allocation5 + $0x920] sm:$0xff]
    %v415 = vld [vmem:[#allocation5 + $0x928] sm:$0xff]
    %v416 = vld [vmem:[#allocation5 + $0x930] sm:$0xff]
    %v417 = vld [vmem:[#allocation5 + $0x938] sm:$0xff]
    %v418 = vld [vmem:[#allocation5 + $0x940] sm:$0xff]
    %v419 = vld [vmem:[#allocation5 + $0x948] sm:$0xff]
    %v420 = vld [vmem:[#allocation5 + $0x950] sm:$0xff]
    %v421 = vld [vmem:[#allocation5 + $0x958] sm:$0xff]
    %v422 = vld [vmem:[#allocation5 + $0x960] sm:$0xff]
    %v423 = vld [vmem:[#allocation5 + $0x968] sm:$0xff]
    %v424 = vld [vmem:[#allocation5 + $0x970] sm:$0xff]
    %v425 = vld [vmem:[#allocation5 + $0x978] sm:$0xff]
    %v426 = vld [vmem:[#allocation5 + $0x980] sm:$0xff]
    %v427 = vld [vmem:[#allocation5 + $0x988] sm:$0xff]
    %v428 = vld [vmem:[#allocation5 + $0x990] sm:$0xff]
    %v429 = vld [vmem:[#allocation5 + $0x998] sm:$0xff]
    %v430 = vld [vmem:[#allocation5 + $0x9a0] sm:$0xff]
    %v431 = vld [vmem:[#allocation5 + $0x9a8] sm:$0xff]
    %v432 = vld [vmem:[#allocation5 + $0x9b0] sm:$0xff]
    %v433 = vld [vmem:[#allocation5 + $0x9b8] sm:$0xff]
    %v434 = vld [vmem:[#allocation5 + $0x9c0] sm:$0xff]
    %v435 = vld [vmem:[#allocation5 + $0x9c8] sm:$0xff]
    %v436 = vld [vmem:[#allocation5 + $0x9d0] sm:$0xff]
    %v437 = vld [vmem:[#allocation5 + $0x9d8] sm:$0xff]
    %v438 = vld [vmem:[#allocation5 + $0x9e0] sm:$0xff]
    %v439 = vld [vmem:[#allocation5 + $0x9e8] sm:$0xff]
    %v440 = vld [vmem:[#allocation5 + $0x9f0] sm:$0xff]
    %v441 = vld [vmem:[#allocation5 + $0x9f8] sm:$0xff]
    %v442 = vld [vmem:[#allocation5 + $0xa00] sm:$0xff]
    %v443 = vld [vmem:[#allocation5 + $0xa08] sm:$0xff]
    %v444 = vld [vmem:[#allocation5 + $0xa10] sm:$0xff]
    %v445 = vld [vmem:[#allocation5 + $0xa18] sm:$0xff]
    %v446 = vld [vmem:[#allocation5 + $0xa20] sm:$0xff]
    %v447 = vld [vmem:[#allocation5 + $0xa28] sm:$0xff]
    %v448 = vld [vmem:[#allocation5 + $0xa30] sm:$0xff]
    %v449 = vld [vmem:[#allocation5 + $0xa38] sm:$0xff]
    %v450 = vld [vmem:[#allocation5 + $0xa40] sm:$0xff]
    %v451 = vld [vmem:[#allocation5 + $0xa48] sm:$0xff]
    %v452 = vld [vmem:[#allocation5 + $0xa50] sm:$0xff]
    %v453 = vld [vmem:[#allocation5 + $0xa58] sm:$0xff]
    %v454 = vld [vmem:[#allocation5 + $0xa60] sm:$0xff]
    %v455 = vld [vmem:[#allocation5 + $0xa68] sm:$0xff]
    %v456 = vld [vmem:[#allocation5 + $0xa70] sm:$0xff]
    %v457 = vld [vmem:[#allocation5 + $0xa78] sm:$0xff]
    %v458 = vld [vmem:[#allocation5 + $0xa80] sm:$0xff]
    %v459 = vld [vmem:[#allocation5 + $0xa88] sm:$0xff]
    %v460 = vld [vmem:[#allocation5 + $0xa90] sm:$0xff]
    %v461 = vld [vmem:[#allocation5 + $0xa98] sm:$0xff]
    %v462 = vld [vmem:[#allocation5 + $0xaa0] sm:$0xff]
    %v463 = vld [vmem:[#allocation5 + $0xaa8] sm:$0xff]
    %v464 = vld [vmem:[#allocation5 + $0xab0] sm:$0xff]
    %v465 = vld [vmem:[#allocation5 + $0xab8] sm:$0xff]
    %v466 = vld [vmem:[#allocation5 + $0xac0] sm:$0xff]
    %v467 = vld [vmem:[#allocation5 + $0xac8] sm:$0xff]
    %v468 = vld [vmem:[#allocation5 + $0xad0] sm:$0xff]
    %v469 = vld [vmem:[#allocation5 + $0xad8] sm:$0xff]
    %v470 = vld [vmem:[#allocation5 + $0xae0] sm:$0xff]
    %v471 = vld [vmem:[#allocation5 + $0xae8] sm:$0xff]
    %v472 = vld [vmem:[#allocation5 + $0xaf0] sm:$0xff]
    %v473 = vld [vmem:[#allocation5 + $0xaf8] sm:$0xff]
    %v474 = vld [vmem:[#allocation5 + $0xb00] sm:$0xff]
    %v475 = vld [vmem:[#allocation5 + $0xb08] sm:$0xff]
    %v476 = vld [vmem:[#allocation5 + $0xb10] sm:$0xff]
    %v477 = vld [vmem:[#allocation5 + $0xb18] sm:$0xff]
    %v478 = vld [vmem:[#allocation5 + $0xb20] sm:$0xff]
    %v479 = vld [vmem:[#allocation5 + $0xb28] sm:$0xff]
    %v480 = vld [vmem:[#allocation5 + $0xb30] sm:$0xff]
    %v481 = vld [vmem:[#allocation5 + $0xb38] sm:$0xff]
    %v482 = vld [vmem:[#allocation5 + $0xb40] sm:$0xff]
    %v483 = vld [vmem:[#allocation5 + $0xb48] sm:$0xff]
    %v484 = vld [vmem:[#allocation5 + $0xb50] sm:$0xff]
    %v485 = vld [vmem:[#allocation5 + $0xb58] sm:$0xff]
    %v486 = vld [vmem:[#allocation5 + $0xb60] sm:$0xff]
    %v487 = vld [vmem:[#allocation5 + $0xb68] sm:$0xff]
    %v488 = vld [vmem:[#allocation5 + $0xb70] sm:$0xff]
    %v489 = vld [vmem:[#allocation5 + $0xb78] sm:$0xff]
    %v490 = vld [vmem:[#allocation5 + $0xb80] sm:$0xff]
    %v491 = vld [vmem:[#allocation5 + $0xb88] sm:$0xff]
    %v492 = vld [vmem:[#allocation5 + $0xb90] sm:$0xff]
    %v493 = vld [vmem:[#allocation5 + $0xb98] sm:$0xff]
    %v494 = vld [vmem:[#allocation5 + $0xba0] sm:$0xff]
    %v495 = vld [vmem:[#allocation5 + $0xba8] sm:$0xff]
    %v496 = vld [vmem:[#allocation5 + $0xbb0] sm:$0xff]
    %v497 = vld [vmem:[#allocation5 + $0xbb8] sm:$0xff]
    %v498 = vld [vmem:[#allocation5 + $0xbc0] sm:$0xff]
    %v499 = vld [vmem:[#allocation5 + $0xbc8] sm:$0xff]
    %v500 = vld [vmem:[#allocation5 + $0xbd0] sm:$0xff]
    %v501 = vld [vmem:[#allocation5 + $0xbd8] sm:$0xff]
    %v502 = vld [vmem:[#allocation5 + $0xbe0] sm:$0xff]
    %v503 = vld [vmem:[#allocation5 + $0xbe8] sm:$0xff]
    %v504 = vld [vmem:[#allocation5 + $0xbf0] sm:$0xff]
    %v505 = vld [vmem:[#allocation5 + $0xbf8] sm:$0xff]
    %v506 = vld [vmem:[#allocation5 + $0xc00] sm:$0xff]
    %v507 = vld [vmem:[#allocation5 + $0xc08] sm:$0xff]
    %v508 = vld [vmem:[#allocation5 + $0xc10] sm:$0xff]
    %v509 = vld [vmem:[#allocation5 + $0xc18] sm:$0xff]
    %v510 = vld [vmem:[#allocation5 + $0xc20] sm:$0xff]
    %v511 = vld [vmem:[#allocation5 + $0xc28] sm:$0xff]
    %v512 = vld [vmem:[#allocation5 + $0xc30] sm:$0xff]
    %v513 = vld [vmem:[#allocation5 + $0xc38] sm:$0xff]
    %v514 = vld [vmem:[#allocation5 + $0xc40] sm:$0xff]
    %v515 = vld [vmem:[#allocation5 + $0xc48] sm:$0xff]
    %v516 = vld [vmem:[#allocation5 + $0xc50] sm:$0xff]
    %v517 = vld [vmem:[#allocation5 + $0xc58] sm:$0xff]
    %v518 = vld [vmem:[#allocation5 + $0xc60] sm:$0xff]
    %v519 = vld [vmem:[#allocation5 + $0xc68] sm:$0xff]
    %v520 = vld [vmem:[#allocation5 + $0xc70] sm:$0xff]
    %v521 = vld [vmem:[#allocation5 + $0xc78] sm:$0xff]
    %v522 = vld [vmem:[#allocation5 + $0xc80] sm:$0xff]
    %v523 = vld [vmem:[#allocation5 + $0xc88] sm:$0xff]
    %v524 = vld [vmem:[#allocation5 + $0xc90] sm:$0xff]
    %v525 = vld [vmem:[#allocation5 + $0xc98] sm:$0xff]
    %v526 = vld [vmem:[#allocation5 + $0xca0] sm:$0xff]
    %v527 = vld [vmem:[#allocation5 + $0xca8] sm:$0xff]
    %v528 = vld [vmem:[#allocation5 + $0xcb0] sm:$0xff]
    %v529 = vld [vmem:[#allocation5 + $0xcb8] sm:$0xff]
    %v530 = vld [vmem:[#allocation5 + $0xcc0] sm:$0xff]
    %v531 = vld [vmem:[#allocation5 + $0xcc8] sm:$0xff]
    %v532 = vld [vmem:[#allocation5 + $0xcd0] sm:$0xff]
    %v533 = vld [vmem:[#allocation5 + $0xcd8] sm:$0xff]
    %v534 = vld [vmem:[#allocation5 + $0xce0] sm:$0xff]
    %v535 = vld [vmem:[#allocation5 + $0xce8] sm:$0xff]
    %v536 = vld [vmem:[#allocation5 + $0xcf0] sm:$0xff]
    %v537 = vld [vmem:[#allocation5 + $0xcf8] sm:$0xff]
    %v538 = vld [vmem:[#allocation5 + $0xd00] sm:$0xff]
    %v539 = vld [vmem:[#allocation5 + $0xd08] sm:$0xff]
    %v540 = vld [vmem:[#allocation5 + $0xd10] sm:$0xff]
    %v541 = vld [vmem:[#allocation5 + $0xd18] sm:$0xff]
    %v542 = vld [vmem:[#allocation5 + $0xd20] sm:$0xff]
    %v543 = vld [vmem:[#allocation5 + $0xd28] sm:$0xff]
    %v544 = vld [vmem:[#allocation5 + $0xd30] sm:$0xff]
    %v545 = vld [vmem:[#allocation5 + $0xd38] sm:$0xff]
    %v546 = vld [vmem:[#allocation5 + $0xd40] sm:$0xff]
    %v547 = vld [vmem:[#allocation5 + $0xd48] sm:$0xff]
    %v548 = vld [vmem:[#allocation5 + $0xd50] sm:$0xff]
    %v549 = vld [vmem:[#allocation5 + $0xd58] sm:$0xff]
    %v550 = vld [vmem:[#allocation5 + $0xd60] sm:$0xff]
    %v551 = vld [vmem:[#allocation5 + $0xd68] sm:$0xff]
    %v552 = vld [vmem:[#allocation5 + $0xd70] sm:$0xff]
    %v553 = vld [vmem:[#allocation5 + $0xd78] sm:$0xff]
    %v554 = vld [vmem:[#allocation5 + $0xd80] sm:$0xff]
    %v555 = vld [vmem:[#allocation5 + $0xd88] sm:$0xff]
    %v556 = vld [vmem:[#allocation5 + $0xd90] sm:$0xff]
    %v557 = vld [vmem:[#allocation5 + $0xd98] sm:$0xff]
    %v558 = vld [vmem:[#allocation5 + $0xda0] sm:$0xff]
    %v559 = vld [vmem:[#allocation5 + $0xda8] sm:$0xff]
    %v560 = vld [vmem:[#allocation5 + $0xdb0] sm:$0xff]
    %v561 = vld [vmem:[#allocation5 + $0xdb8] sm:$0xff]
    %v562 = vld [vmem:[#allocation5 + $0xdc0] sm:$0xff]
    %v563 = vld [vmem:[#allocation5 + $0xdc8] sm:$0xff]
    %v564 = vld [vmem:[#allocation5 + $0xdd0] sm:$0xff]
    %v565 = vld [vmem:[#allocation5 + $0xdd8] sm:$0xff]
    %v566 = vld [vmem:[#allocation5 + $0xde0] sm:$0xff]
    %v567 = vld [vmem:[#allocation5 + $0xde8] sm:$0xff]
    %v568 = vld [vmem:[#allocation5 + $0xdf0] sm:$0xff]
    %v569 = vld [vmem:[#allocation5 + $0xdf8] sm:$0xff]
    %v570 = vld [vmem:[#allocation5 + $0xe00] sm:$0xff]
    %v571 = vld [vmem:[#allocation5 + $0xe08] sm:$0xff]
    %v572 = vld [vmem:[#allocation5 + $0xe10] sm:$0xff]
    %v573 = vld [vmem:[#allocation5 + $0xe18] sm:$0xff]
    %v574 = vld [vmem:[#allocation5 + $0xe20] sm:$0xff]
    %v575 = vld [vmem:[#allocation5 + $0xe28] sm:$0xff]
    %v576 = vld [vmem:[#allocation5 + $0xe30] sm:$0xff]
    %v577 = vld [vmem:[#allocation5 + $0xe38] sm:$0xff]
    %v578 = vld [vmem:[#allocation5 + $0xe40] sm:$0xff]
    %v579 = vld [vmem:[#allocation5 + $0xe48] sm:$0xff]
    %v580 = vld [vmem:[#allocation5 + $0xe50] sm:$0xff]
    %v581 = vld [vmem:[#allocation5 + $0xe58] sm:$0xff]
    %v582 = vld [vmem:[#allocation5 + $0xe60] sm:$0xff]
    %v583 = vld [vmem:[#allocation5 + $0xe68] sm:$0xff]
    %v584 = vld [vmem:[#allocation5 + $0xe70] sm:$0xff]
    %v585 = vld [vmem:[#allocation5 + $0xe78] sm:$0xff]
    %v586 = vld [vmem:[#allocation5 + $0xe80] sm:$0xff]
    %v587 = vld [vmem:[#allocation5 + $0xe88] sm:$0xff]
    %v588 = vld [vmem:[#allocation5 + $0xe90] sm:$0xff]
    %v589 = vld [vmem:[#allocation5 + $0xe98] sm:$0xff]
    %v590 = vld [vmem:[#allocation5 + $0xea0] sm:$0xff]
    %v591 = vld [vmem:[#allocation5 + $0xea8] sm:$0xff]
    %v592 = vld [vmem:[#allocation5 + $0xeb0] sm:$0xff]
    %v593 = vld [vmem:[#allocation5 + $0xeb8] sm:$0xff]
    %v594 = vld [vmem:[#allocation5 + $0xec0] sm:$0xff]
    %v595 = vld [vmem:[#allocation5 + $0xec8] sm:$0xff]
    %v596 = vld [vmem:[#allocation5 + $0xed0] sm:$0xff]
    %v597 = vld [vmem:[#allocation5 + $0xed8] sm:$0xff]
    %v598 = vld [vmem:[#allocation5 + $0xee0] sm:$0xff]
    %v599 = vld [vmem:[#allocation5 + $0xee8] sm:$0xff]
    %v600 = vld [vmem:[#allocation5 + $0xef0] sm:$0xff]
    %v601 = vld [vmem:[#allocation5 + $0xef8] sm:$0xff]
    %v602 = vld [vmem:[#allocation5 + $0xf00] sm:$0xff]
    %v603 = vld [vmem:[#allocation5 + $0xf08] sm:$0xff]
    %v604 = vld [vmem:[#allocation5 + $0xf10] sm:$0xff]
    %v605 = vld [vmem:[#allocation5 + $0xf18] sm:$0xff]
    %v606 = vld [vmem:[#allocation5 + $0xf20] sm:$0xff]
    %v607 = vld [vmem:[#allocation5 + $0xf28] sm:$0xff]
    %v608 = vld [vmem:[#allocation5 + $0xf30] sm:$0xff]
    %v609 = vld [vmem:[#allocation5 + $0xf38] sm:$0xff]
    %v610 = vld [vmem:[#allocation5 + $0xf40] sm:$0xff]
    %v611 = vld [vmem:[#allocation5 + $0xf48] sm:$0xff]
    %v612 = vld [vmem:[#allocation5 + $0xf50] sm:$0xff]
    %v613 = vld [vmem:[#allocation5 + $0xf58] sm:$0xff]
    %v614 = vld [vmem:[#allocation5 + $0xf60] sm:$0xff]
    %v615 = vld [vmem:[#allocation5 + $0xf68] sm:$0xff]
    %v616 = vld [vmem:[#allocation5 + $0xf70] sm:$0xff]
    %v617 = vld [vmem:[#allocation5 + $0xf78] sm:$0xff]
    %v618 = vld [vmem:[#allocation5 + $0xf80] sm:$0xff]
    %v619 = vld [vmem:[#allocation5 + $0xf88] sm:$0xff]
    %v620 = vld [vmem:[#allocation5 + $0xf90] sm:$0xff]
    %v621 = vld [vmem:[#allocation5 + $0xf98] sm:$0xff]
    %v622 = vld [vmem:[#allocation5 + $0xfa0] sm:$0xff]
    %v623 = vld [vmem:[#allocation5 + $0xfa8] sm:$0xff]
    %v624 = vld [vmem:[#allocation5 + $0xfb0] sm:$0xff]
    %v625 = vld [vmem:[#allocation5 + $0xfb8] sm:$0xff]
    %v626 = vld [vmem:[#allocation5 + $0xfc0] sm:$0xff]
    %v627 = vld [vmem:[#allocation5 + $0xfc8] sm:$0xff]
    %v628 = vld [vmem:[#allocation5 + $0xfd0] sm:$0xff]
    %v629 = vld [vmem:[#allocation5 + $0xfd8] sm:$0xff]
    %v630 = vld [vmem:[#allocation5 + $0xfe0] sm:$0xff]
    %v631 = vld [vmem:[#allocation5 + $0xfe8] sm:$0xff]
    %v632 = vld [vmem:[#allocation5 + $0xff0] sm:$0xff]
    %v633 = vld [vmem:[#allocation5 + $0xff8] sm:$0xff]
    %v634 = vld [vmem:[#allocation7] sm:$0xff]
    %v636 = vperm.slane %v634, 0
    %v637 = vperm.slane %v634, 1
    %v638 = vperm.slane %v634, 2
    %v639 = vperm.slane %v634, 3
    %v640 = vperm.slane %v634, 4
    %v641 = vperm.slane %v634, 5
    %v642 = vperm.slane %v634, 6
    %v643 = vperm.slane %v634, 7
    %v1164 = vunpack.c.l.b16 %v122
    %v1165 = vunpack.c.h.b16 %v122
    %v1166 = vunpack.c.l.b16 %v123
    %v1167 = vunpack.c.h.b16 %v123
    %v1168 = vunpack.c.l.b16 %v124
    %v1169 = vunpack.c.h.b16 %v124
    %v1170 = vunpack.c.l.b16 %v125
    %v1171 = vunpack.c.h.b16 %v125
    %v1172 = vunpack.c.l.b16 %v126
    %v1173 = vunpack.c.h.b16 %v126
    %v1174 = vunpack.c.l.b16 %v127
    %v1175 = vunpack.c.h.b16 %v127
    %v1176 = vunpack.c.l.b16 %v128
    %v1177 = vunpack.c.h.b16 %v128
    %v1178 = vunpack.c.l.b16 %v129
    %v1179 = vunpack.c.h.b16 %v129
    %v1180 = vunpack.c.l.b16 %v130
    %v1181 = vunpack.c.h.b16 %v130
    %v1182 = vunpack.c.l.b16 %v131
    %v1183 = vunpack.c.h.b16 %v131
    %v1184 = vunpack.c.l.b16 %v132
    %v1185 = vunpack.c.h.b16 %v132
    %v1186 = vunpack.c.l.b16 %v133
    %v1187 = vunpack.c.h.b16 %v133
    %v1188 = vunpack.c.l.b16 %v134
    %v1189 = vunpack.c.h.b16 %v134
    %v1190 = vunpack.c.l.b16 %v135
    %v1191 = vunpack.c.h.b16 %v135
    %v1192 = vunpack.c.l.b16 %v136
    %v1193 = vunpack.c.h.b16 %v136
    %v1194 = vunpack.c.l.b16 %v137
    %v1195 = vunpack.c.h.b16 %v137
    %v1196 = vunpack.c.l.b16 %v138
    %v1197 = vunpack.c.h.b16 %v138
    %v1198 = vunpack.c.l.b16 %v139
    %v1199 = vunpack.c.h.b16 %v139
    %v1200 = vunpack.c.l.b16 %v140
    %v1201 = vunpack.c.h.b16 %v140
    %v1202 = vunpack.c.l.b16 %v141
    %v1203 = vunpack.c.h.b16 %v141
    %v1204 = vunpack.c.l.b16 %v142
    %v1205 = vunpack.c.h.b16 %v142
    %v1206 = vunpack.c.l.b16 %v143
    %v1207 = vunpack.c.h.b16 %v143
    %v1208 = vunpack.c.l.b16 %v144
    %v1209 = vunpack.c.h.b16 %v144
    %v1210 = vunpack.c.l.b16 %v145
    %v1211 = vunpack.c.h.b16 %v145
    %v1212 = vunpack.c.l.b16 %v146
    %v1213 = vunpack.c.h.b16 %v146
    %v1214 = vunpack.c.l.b16 %v147
    %v1215 = vunpack.c.h.b16 %v147
    %v1216 = vunpack.c.l.b16 %v148
    %v1217 = vunpack.c.h.b16 %v148
    %v1218 = vunpack.c.l.b16 %v149
    %v1219 = vunpack.c.h.b16 %v149
    %v1220 = vunpack.c.l.b16 %v150
    %v1221 = vunpack.c.h.b16 %v150
    %v1222 = vunpack.c.l.b16 %v151
    %v1223 = vunpack.c.h.b16 %v151
    %v1224 = vunpack.c.l.b16 %v152
    %v1225 = vunpack.c.h.b16 %v152
    %v1226 = vunpack.c.l.b16 %v153
    %v1227 = vunpack.c.h.b16 %v153
    %v1228 = vunpack.c.l.b16 %v154
    %v1229 = vunpack.c.h.b16 %v154
    %v1230 = vunpack.c.l.b16 %v155
    %v1231 = vunpack.c.h.b16 %v155
    %v1232 = vunpack.c.l.b16 %v156
    %v1233 = vunpack.c.h.b16 %v156
    %v1234 = vunpack.c.l.b16 %v157
    %v1235 = vunpack.c.h.b16 %v157
    %v1236 = vunpack.c.l.b16 %v158
    %v1237 = vunpack.c.h.b16 %v158
    %v1238 = vunpack.c.l.b16 %v159
    %v1239 = vunpack.c.h.b16 %v159
    %v1240 = vunpack.c.l.b16 %v160
    %v1241 = vunpack.c.h.b16 %v160
    %v1242 = vunpack.c.l.b16 %v161
    %v1243 = vunpack.c.h.b16 %v161
    %v1244 = vunpack.c.l.b16 %v162
    %v1245 = vunpack.c.h.b16 %v162
    %v1246 = vunpack.c.l.b16 %v163
    %v1247 = vunpack.c.h.b16 %v163
    %v1248 = vunpack.c.l.b16 %v164
    %v1249 = vunpack.c.h.b16 %v164
    %v1250 = vunpack.c.l.b16 %v165
    %v1251 = vunpack.c.h.b16 %v165
    %v1252 = vunpack.c.l.b16 %v166
    %v1253 = vunpack.c.h.b16 %v166
    %v1254 = vunpack.c.l.b16 %v167
    %v1255 = vunpack.c.h.b16 %v167
    %v1256 = vunpack.c.l.b16 %v168
    %v1257 = vunpack.c.h.b16 %v168
    %v1258 = vunpack.c.l.b16 %v169
    %v1259 = vunpack.c.h.b16 %v169
    %v1260 = vunpack.c.l.b16 %v170
    %v1261 = vunpack.c.h.b16 %v170
    %v1262 = vunpack.c.l.b16 %v171
    %v1263 = vunpack.c.h.b16 %v171
    %v1264 = vunpack.c.l.b16 %v172
    %v1265 = vunpack.c.h.b16 %v172
    %v1266 = vunpack.c.l.b16 %v173
    %v1267 = vunpack.c.h.b16 %v173
    %v1268 = vunpack.c.l.b16 %v174
    %v1269 = vunpack.c.h.b16 %v174
    %v1270 = vunpack.c.l.b16 %v175
    %v1271 = vunpack.c.h.b16 %v175
    %v1272 = vunpack.c.l.b16 %v176
    %v1273 = vunpack.c.h.b16 %v176
    %v1274 = vunpack.c.l.b16 %v177
    %v1275 = vunpack.c.h.b16 %v177
    %v1276 = vunpack.c.l.b16 %v178
    %v1277 = vunpack.c.h.b16 %v178
    %v1278 = vunpack.c.l.b16 %v179
    %v1279 = vunpack.c.h.b16 %v179
    %v1280 = vunpack.c.l.b16 %v180
    %v1281 = vunpack.c.h.b16 %v180
    %v1282 = vunpack.c.l.b16 %v181
    %v1283 = vunpack.c.h.b16 %v181
    %v1284 = vunpack.c.l.b16 %v182
    %v1285 = vunpack.c.h.b16 %v182
    %v1286 = vunpack.c.l.b16 %v183
    %v1287 = vunpack.c.h.b16 %v183
    %v1288 = vunpack.c.l.b16 %v184
    %v1289 = vunpack.c.h.b16 %v184
    %v1290 = vunpack.c.l.b16 %v185
    %v1291 = vunpack.c.h.b16 %v185
    %v1292 = vunpack.c.l.b16 %v186
    %v1293 = vunpack.c.h.b16 %v186
    %v1294 = vunpack.c.l.b16 %v187
    %v1295 = vunpack.c.h.b16 %v187
    %v1296 = vunpack.c.l.b16 %v188
    %v1297 = vunpack.c.h.b16 %v188
    %v1298 = vunpack.c.l.b16 %v189
    %v1299 = vunpack.c.h.b16 %v189
    %v1300 = vunpack.c.l.b16 %v190
    %v1301 = vunpack.c.h.b16 %v190
    %v1302 = vunpack.c.l.b16 %v191
    %v1303 = vunpack.c.h.b16 %v191
    %v1304 = vunpack.c.l.b16 %v192
    %v1305 = vunpack.c.h.b16 %v192
    %v1306 = vunpack.c.l.b16 %v193
    %v1307 = vunpack.c.h.b16 %v193
    %v1308 = vunpack.c.l.b16 %v194
    %v1309 = vunpack.c.h.b16 %v194
    %v1310 = vunpack.c.l.b16 %v195
    %v1311 = vunpack.c.h.b16 %v195
    %v1312 = vunpack.c.l.b16 %v196
    %v1313 = vunpack.c.h.b16 %v196
    %v1314 = vunpack.c.l.b16 %v197
    %v1315 = vunpack.c.h.b16 %v197
    %v1316 = vunpack.c.l.b16 %v198
    %v1317 = vunpack.c.h.b16 %v198
    %v1318 = vunpack.c.l.b16 %v199
    %v1319 = vunpack.c.h.b16 %v199
    %v1320 = vunpack.c.l.b16 %v200
    %v1321 = vunpack.c.h.b16 %v200
    %v1322 = vunpack.c.l.b16 %v201
    %v1323 = vunpack.c.h.b16 %v201
    %v1324 = vunpack.c.l.b16 %v202
    %v1325 = vunpack.c.h.b16 %v202
    %v1326 = vunpack.c.l.b16 %v203
    %v1327 = vunpack.c.h.b16 %v203
    %v1328 = vunpack.c.l.b16 %v204
    %v1329 = vunpack.c.h.b16 %v204
    %v1330 = vunpack.c.l.b16 %v205
    %v1331 = vunpack.c.h.b16 %v205
    %v1332 = vunpack.c.l.b16 %v206
    %v1333 = vunpack.c.h.b16 %v206
    %v1334 = vunpack.c.l.b16 %v207
    %v1335 = vunpack.c.h.b16 %v207
    %v1336 = vunpack.c.l.b16 %v208
    %v1337 = vunpack.c.h.b16 %v208
    %v1338 = vunpack.c.l.b16 %v209
    %v1339 = vunpack.c.h.b16 %v209
    %v1340 = vunpack.c.l.b16 %v210
    %v1341 = vunpack.c.h.b16 %v210
    %v1342 = vunpack.c.l.b16 %v211
    %v1343 = vunpack.c.h.b16 %v211
    %v1344 = vunpack.c.l.b16 %v212
    %v1345 = vunpack.c.h.b16 %v212
    %v1346 = vunpack.c.l.b16 %v213
    %v1347 = vunpack.c.h.b16 %v213
    %v1348 = vunpack.c.l.b16 %v214
    %v1349 = vunpack.c.h.b16 %v214
    %v1350 = vunpack.c.l.b16 %v215
    %v1351 = vunpack.c.h.b16 %v215
    %v1352 = vunpack.c.l.b16 %v216
    %v1353 = vunpack.c.h.b16 %v216
    %v1354 = vunpack.c.l.b16 %v217
    %v1355 = vunpack.c.h.b16 %v217
    %v1356 = vunpack.c.l.b16 %v218
    %v1357 = vunpack.c.h.b16 %v218
    %v1358 = vunpack.c.l.b16 %v219
    %v1359 = vunpack.c.h.b16 %v219
    %v1360 = vunpack.c.l.b16 %v220
    %v1361 = vunpack.c.h.b16 %v220
    %v1362 = vunpack.c.l.b16 %v221
    %v1363 = vunpack.c.h.b16 %v221
    %v1364 = vunpack.c.l.b16 %v222
    %v1365 = vunpack.c.h.b16 %v222
    %v1366 = vunpack.c.l.b16 %v223
    %v1367 = vunpack.c.h.b16 %v223
    %v1368 = vunpack.c.l.b16 %v224
    %v1369 = vunpack.c.h.b16 %v224
    %v1370 = vunpack.c.l.b16 %v225
    %v1371 = vunpack.c.h.b16 %v225
    %v1372 = vunpack.c.l.b16 %v226
    %v1373 = vunpack.c.h.b16 %v226
    %v1374 = vunpack.c.l.b16 %v227
    %v1375 = vunpack.c.h.b16 %v227
    %v1376 = vunpack.c.l.b16 %v228
    %v1377 = vunpack.c.h.b16 %v228
    %v1378 = vunpack.c.l.b16 %v229
    %v1379 = vunpack.c.h.b16 %v229
    %v1380 = vunpack.c.l.b16 %v230
    %v1381 = vunpack.c.h.b16 %v230
    %v1382 = vunpack.c.l.b16 %v231
    %v1383 = vunpack.c.h.b16 %v231
    %v1384 = vunpack.c.l.b16 %v232
    %v1385 = vunpack.c.h.b16 %v232
    %v1386 = vunpack.c.l.b16 %v233
    %v1387 = vunpack.c.h.b16 %v233
    %v1388 = vunpack.c.l.b16 %v234
    %v1389 = vunpack.c.h.b16 %v234
    %v1390 = vunpack.c.l.b16 %v235
    %v1391 = vunpack.c.h.b16 %v235
    %v1392 = vunpack.c.l.b16 %v236
    %v1393 = vunpack.c.h.b16 %v236
    %v1394 = vunpack.c.l.b16 %v237
    %v1395 = vunpack.c.h.b16 %v237
    %v1396 = vunpack.c.l.b16 %v238
    %v1397 = vunpack.c.h.b16 %v238
    %v1398 = vunpack.c.l.b16 %v239
    %v1399 = vunpack.c.h.b16 %v239
    %v1400 = vunpack.c.l.b16 %v240
    %v1401 = vunpack.c.h.b16 %v240
    %v1402 = vunpack.c.l.b16 %v241
    %v1403 = vunpack.c.h.b16 %v241
    %v1404 = vunpack.c.l.b16 %v242
    %v1405 = vunpack.c.h.b16 %v242
    %v1406 = vunpack.c.l.b16 %v243
    %v1407 = vunpack.c.h.b16 %v243
    %v1408 = vunpack.c.l.b16 %v244
    %v1409 = vunpack.c.h.b16 %v244
    %v1410 = vunpack.c.l.b16 %v245
    %v1411 = vunpack.c.h.b16 %v245
    %v1412 = vunpack.c.l.b16 %v246
    %v1413 = vunpack.c.h.b16 %v246
    %v1414 = vunpack.c.l.b16 %v247
    %v1415 = vunpack.c.h.b16 %v247
    %v1416 = vunpack.c.l.b16 %v248
    %v1417 = vunpack.c.h.b16 %v248
    %v1418 = vunpack.c.l.b16 %v249
    %v1419 = vunpack.c.h.b16 %v249
    %v1420 = vunpack.c.l.b16 %v250
    %v1421 = vunpack.c.h.b16 %v250
    %v1422 = vunpack.c.l.b16 %v251
    %v1423 = vunpack.c.h.b16 %v251
    %v1424 = vunpack.c.l.b16 %v252
    %v1425 = vunpack.c.h.b16 %v252
    %v1426 = vunpack.c.l.b16 %v253
    %v1427 = vunpack.c.h.b16 %v253
    %v1428 = vunpack.c.l.b16 %v254
    %v1429 = vunpack.c.h.b16 %v254
    %v1430 = vunpack.c.l.b16 %v255
    %v1431 = vunpack.c.h.b16 %v255
    %v1432 = vunpack.c.l.b16 %v256
    %v1433 = vunpack.c.h.b16 %v256
    %v1434 = vunpack.c.l.b16 %v257
    %v1435 = vunpack.c.h.b16 %v257
    %v1436 = vunpack.c.l.b16 %v258
    %v1437 = vunpack.c.h.b16 %v258
    %v1438 = vunpack.c.l.b16 %v259
    %v1439 = vunpack.c.h.b16 %v259
    %v1440 = vunpack.c.l.b16 %v260
    %v1441 = vunpack.c.h.b16 %v260
    %v1442 = vunpack.c.l.b16 %v261
    %v1443 = vunpack.c.h.b16 %v261
    %v1444 = vunpack.c.l.b16 %v262
    %v1445 = vunpack.c.h.b16 %v262
    %v1446 = vunpack.c.l.b16 %v263
    %v1447 = vunpack.c.h.b16 %v263
    %v1448 = vunpack.c.l.b16 %v264
    %v1449 = vunpack.c.h.b16 %v264
    %v1450 = vunpack.c.l.b16 %v265
    %v1451 = vunpack.c.h.b16 %v265
    %v1452 = vunpack.c.l.b16 %v266
    %v1453 = vunpack.c.h.b16 %v266
    %v1454 = vunpack.c.l.b16 %v267
    %v1455 = vunpack.c.h.b16 %v267
    %v1456 = vunpack.c.l.b16 %v268
    %v1457 = vunpack.c.h.b16 %v268
    %v1458 = vunpack.c.l.b16 %v269
    %v1459 = vunpack.c.h.b16 %v269
    %v1460 = vunpack.c.l.b16 %v270
    %v1461 = vunpack.c.h.b16 %v270
    %v1462 = vunpack.c.l.b16 %v271
    %v1463 = vunpack.c.h.b16 %v271
    %v1464 = vunpack.c.l.b16 %v272
    %v1465 = vunpack.c.h.b16 %v272
    %v1466 = vunpack.c.l.b16 %v273
    %v1467 = vunpack.c.h.b16 %v273
    %v1468 = vunpack.c.l.b16 %v274
    %v1469 = vunpack.c.h.b16 %v274
    %v1470 = vunpack.c.l.b16 %v275
    %v1471 = vunpack.c.h.b16 %v275
    %v1472 = vunpack.c.l.b16 %v276
    %v1473 = vunpack.c.h.b16 %v276
    %v1474 = vunpack.c.l.b16 %v277
    %v1475 = vunpack.c.h.b16 %v277
    %v1476 = vunpack.c.l.b16 %v278
    %v1477 = vunpack.c.h.b16 %v278
    %v1478 = vunpack.c.l.b16 %v279
    %v1479 = vunpack.c.h.b16 %v279
    %v1480 = vunpack.c.l.b16 %v280
    %v1481 = vunpack.c.h.b16 %v280
    %v1482 = vunpack.c.l.b16 %v281
    %v1483 = vunpack.c.h.b16 %v281
    %v1484 = vunpack.c.l.b16 %v282
    %v1485 = vunpack.c.h.b16 %v282
    %v1486 = vunpack.c.l.b16 %v283
    %v1487 = vunpack.c.h.b16 %v283
    %v1488 = vunpack.c.l.b16 %v284
    %v1489 = vunpack.c.h.b16 %v284
    %v1490 = vunpack.c.l.b16 %v285
    %v1491 = vunpack.c.h.b16 %v285
    %v1492 = vunpack.c.l.b16 %v286
    %v1493 = vunpack.c.h.b16 %v286
    %v1494 = vunpack.c.l.b16 %v287
    %v1495 = vunpack.c.h.b16 %v287
    %v1496 = vunpack.c.l.b16 %v288
    %v1497 = vunpack.c.h.b16 %v288
    %v1498 = vunpack.c.l.b16 %v289
    %v1499 = vunpack.c.h.b16 %v289
    %v1500 = vunpack.c.l.b16 %v290
    %v1501 = vunpack.c.h.b16 %v290
    %v1502 = vunpack.c.l.b16 %v291
    %v1503 = vunpack.c.h.b16 %v291
    %v1504 = vunpack.c.l.b16 %v292
    %v1505 = vunpack.c.h.b16 %v292
    %v1506 = vunpack.c.l.b16 %v293
    %v1507 = vunpack.c.h.b16 %v293
    %v1508 = vunpack.c.l.b16 %v294
    %v1509 = vunpack.c.h.b16 %v294
    %v1510 = vunpack.c.l.b16 %v295
    %v1511 = vunpack.c.h.b16 %v295
    %v1512 = vunpack.c.l.b16 %v296
    %v1513 = vunpack.c.h.b16 %v296
    %v1514 = vunpack.c.l.b16 %v297
    %v1515 = vunpack.c.h.b16 %v297
    %v1516 = vunpack.c.l.b16 %v298
    %v1517 = vunpack.c.h.b16 %v298
    %v1518 = vunpack.c.l.b16 %v299
    %v1519 = vunpack.c.h.b16 %v299
    %v1520 = vunpack.c.l.b16 %v300
    %v1521 = vunpack.c.h.b16 %v300
    %v1522 = vunpack.c.l.b16 %v301
    %v1523 = vunpack.c.h.b16 %v301
    %v1524 = vunpack.c.l.b16 %v302
    %v1525 = vunpack.c.h.b16 %v302
    %v1526 = vunpack.c.l.b16 %v303
    %v1527 = vunpack.c.h.b16 %v303
    %v1528 = vunpack.c.l.b16 %v304
    %v1529 = vunpack.c.h.b16 %v304
    %v1530 = vunpack.c.l.b16 %v305
    %v1531 = vunpack.c.h.b16 %v305
    %v1532 = vunpack.c.l.b16 %v306
    %v1533 = vunpack.c.h.b16 %v306
    %v1534 = vunpack.c.l.b16 %v307
    %v1535 = vunpack.c.h.b16 %v307
    %v1536 = vunpack.c.l.b16 %v308
    %v1537 = vunpack.c.h.b16 %v308
    %v1538 = vunpack.c.l.b16 %v309
    %v1539 = vunpack.c.h.b16 %v309
    %v1540 = vunpack.c.l.b16 %v310
    %v1541 = vunpack.c.h.b16 %v310
    %v1542 = vunpack.c.l.b16 %v311
    %v1543 = vunpack.c.h.b16 %v311
    %v1544 = vunpack.c.l.b16 %v312
    %v1545 = vunpack.c.h.b16 %v312
    %v1546 = vunpack.c.l.b16 %v313
    %v1547 = vunpack.c.h.b16 %v313
    %v1548 = vunpack.c.l.b16 %v314
    %v1549 = vunpack.c.h.b16 %v314
    %v1550 = vunpack.c.l.b16 %v315
    %v1551 = vunpack.c.h.b16 %v315
    %v1552 = vunpack.c.l.b16 %v316
    %v1553 = vunpack.c.h.b16 %v316
    %v1554 = vunpack.c.l.b16 %v317
    %v1555 = vunpack.c.h.b16 %v317
    %v1556 = vunpack.c.l.b16 %v318
    %v1557 = vunpack.c.h.b16 %v318
    %v1558 = vunpack.c.l.b16 %v319
    %v1559 = vunpack.c.h.b16 %v319
    %v1560 = vunpack.c.l.b16 %v320
    %v1561 = vunpack.c.h.b16 %v320
    %v1562 = vunpack.c.l.b16 %v321
    %v1563 = vunpack.c.h.b16 %v321
    %v1564 = vunpack.c.l.b16 %v322
    %v1565 = vunpack.c.h.b16 %v322
    %v1566 = vunpack.c.l.b16 %v323
    %v1567 = vunpack.c.h.b16 %v323
    %v1568 = vunpack.c.l.b16 %v324
    %v1569 = vunpack.c.h.b16 %v324
    %v1570 = vunpack.c.l.b16 %v325
    %v1571 = vunpack.c.h.b16 %v325
    %v1572 = vunpack.c.l.b16 %v326
    %v1573 = vunpack.c.h.b16 %v326
    %v1574 = vunpack.c.l.b16 %v327
    %v1575 = vunpack.c.h.b16 %v327
    %v1576 = vunpack.c.l.b16 %v328
    %v1577 = vunpack.c.h.b16 %v328
    %v1578 = vunpack.c.l.b16 %v329
    %v1579 = vunpack.c.h.b16 %v329
    %v1580 = vunpack.c.l.b16 %v330
    %v1581 = vunpack.c.h.b16 %v330
    %v1582 = vunpack.c.l.b16 %v331
    %v1583 = vunpack.c.h.b16 %v331
    %v1584 = vunpack.c.l.b16 %v332
    %v1585 = vunpack.c.h.b16 %v332
    %v1586 = vunpack.c.l.b16 %v333
    %v1587 = vunpack.c.h.b16 %v333
    %v1588 = vunpack.c.l.b16 %v334
    %v1589 = vunpack.c.h.b16 %v334
    %v1590 = vunpack.c.l.b16 %v335
    %v1591 = vunpack.c.h.b16 %v335
    %v1592 = vunpack.c.l.b16 %v336
    %v1593 = vunpack.c.h.b16 %v336
    %v1594 = vunpack.c.l.b16 %v337
    %v1595 = vunpack.c.h.b16 %v337
    %v1596 = vunpack.c.l.b16 %v338
    %v1597 = vunpack.c.h.b16 %v338
    %v1598 = vunpack.c.l.b16 %v339
    %v1599 = vunpack.c.h.b16 %v339
    %v1600 = vunpack.c.l.b16 %v340
    %v1601 = vunpack.c.h.b16 %v340
    %v1602 = vunpack.c.l.b16 %v341
    %v1603 = vunpack.c.h.b16 %v341
    %v1604 = vunpack.c.l.b16 %v342
    %v1605 = vunpack.c.h.b16 %v342
    %v1606 = vunpack.c.l.b16 %v343
    %v1607 = vunpack.c.h.b16 %v343
    %v1608 = vunpack.c.l.b16 %v344
    %v1609 = vunpack.c.h.b16 %v344
    %v1610 = vunpack.c.l.b16 %v345
    %v1611 = vunpack.c.h.b16 %v345
    %v1612 = vunpack.c.l.b16 %v346
    %v1613 = vunpack.c.h.b16 %v346
    %v1614 = vunpack.c.l.b16 %v347
    %v1615 = vunpack.c.h.b16 %v347
    %v1616 = vunpack.c.l.b16 %v348
    %v1617 = vunpack.c.h.b16 %v348
    %v1618 = vunpack.c.l.b16 %v349
    %v1619 = vunpack.c.h.b16 %v349
    %v1620 = vunpack.c.l.b16 %v350
    %v1621 = vunpack.c.h.b16 %v350
    %v1622 = vunpack.c.l.b16 %v351
    %v1623 = vunpack.c.h.b16 %v351
    %v1624 = vunpack.c.l.b16 %v352
    %v1625 = vunpack.c.h.b16 %v352
    %v1626 = vunpack.c.l.b16 %v353
    %v1627 = vunpack.c.h.b16 %v353
    %v1628 = vunpack.c.l.b16 %v354
    %v1629 = vunpack.c.h.b16 %v354
    %v1630 = vunpack.c.l.b16 %v355
    %v1631 = vunpack.c.h.b16 %v355
    %v1632 = vunpack.c.l.b16 %v356
    %v1633 = vunpack.c.h.b16 %v356
    %v1634 = vunpack.c.l.b16 %v357
    %v1635 = vunpack.c.h.b16 %v357
    %v1636 = vunpack.c.l.b16 %v358
    %v1637 = vunpack.c.h.b16 %v358
    %v1638 = vunpack.c.l.b16 %v359
    %v1639 = vunpack.c.h.b16 %v359
    %v1640 = vunpack.c.l.b16 %v360
    %v1641 = vunpack.c.h.b16 %v360
    %v1642 = vunpack.c.l.b16 %v361
    %v1643 = vunpack.c.h.b16 %v361
    %v1644 = vunpack.c.l.b16 %v362
    %v1645 = vunpack.c.h.b16 %v362
    %v1646 = vunpack.c.l.b16 %v363
    %v1647 = vunpack.c.h.b16 %v363
    %v1648 = vunpack.c.l.b16 %v364
    %v1649 = vunpack.c.h.b16 %v364
    %v1650 = vunpack.c.l.b16 %v365
    %v1651 = vunpack.c.h.b16 %v365
    %v1652 = vunpack.c.l.b16 %v366
    %v1653 = vunpack.c.h.b16 %v366
    %v1654 = vunpack.c.l.b16 %v367
    %v1655 = vunpack.c.h.b16 %v367
    %v1656 = vunpack.c.l.b16 %v368
    %v1657 = vunpack.c.h.b16 %v368
    %v1658 = vunpack.c.l.b16 %v369
    %v1659 = vunpack.c.h.b16 %v369
    %v1660 = vunpack.c.l.b16 %v370
    %v1661 = vunpack.c.h.b16 %v370
    %v1662 = vunpack.c.l.b16 %v371
    %v1663 = vunpack.c.h.b16 %v371
    %v1664 = vunpack.c.l.b16 %v372
    %v1665 = vunpack.c.h.b16 %v372
    %v1666 = vunpack.c.l.b16 %v373
    %v1667 = vunpack.c.h.b16 %v373
    %v1668 = vunpack.c.l.b16 %v374
    %v1669 = vunpack.c.h.b16 %v374
    %v1670 = vunpack.c.l.b16 %v375
    %v1671 = vunpack.c.h.b16 %v375
    %v1672 = vunpack.c.l.b16 %v376
    %v1673 = vunpack.c.h.b16 %v376
    %v1674 = vunpack.c.l.b16 %v377
    %v1675 = vunpack.c.h.b16 %v377
    %v1676 = vunpack.c.l.b16 %v378
    %v1677 = vunpack.c.h.b16 %v378
    %v1678 = vunpack.c.l.b16 %v379
    %v1679 = vunpack.c.h.b16 %v379
    %v1680 = vunpack.c.l.b16 %v380
    %v1681 = vunpack.c.h.b16 %v380
    %v1682 = vunpack.c.l.b16 %v381
    %v1683 = vunpack.c.h.b16 %v381
    %v1684 = vunpack.c.l.b16 %v382
    %v1685 = vunpack.c.h.b16 %v382
    %v1686 = vunpack.c.l.b16 %v383
    %v1687 = vunpack.c.h.b16 %v383
    %v1688 = vunpack.c.l.b16 %v384
    %v1689 = vunpack.c.h.b16 %v384
    %v1690 = vunpack.c.l.b16 %v385
    %v1691 = vunpack.c.h.b16 %v385
    %v1692 = vunpack.c.l.b16 %v386
    %v1693 = vunpack.c.h.b16 %v386
    %v1694 = vunpack.c.l.b16 %v387
    %v1695 = vunpack.c.h.b16 %v387
    %v1696 = vunpack.c.l.b16 %v388
    %v1697 = vunpack.c.h.b16 %v388
    %v1698 = vunpack.c.l.b16 %v389
    %v1699 = vunpack.c.h.b16 %v389
    %v1700 = vunpack.c.l.b16 %v390
    %v1701 = vunpack.c.h.b16 %v390
    %v1702 = vunpack.c.l.b16 %v391
    %v1703 = vunpack.c.h.b16 %v391
    %v1704 = vunpack.c.l.b16 %v392
    %v1705 = vunpack.c.h.b16 %v392
    %v1706 = vunpack.c.l.b16 %v393
    %v1707 = vunpack.c.h.b16 %v393
    %v1708 = vunpack.c.l.b16 %v394
    %v1709 = vunpack.c.h.b16 %v394
    %v1710 = vunpack.c.l.b16 %v395
    %v1711 = vunpack.c.h.b16 %v395
    %v1712 = vunpack.c.l.b16 %v396
    %v1713 = vunpack.c.h.b16 %v396
    %v1714 = vunpack.c.l.b16 %v397
    %v1715 = vunpack.c.h.b16 %v397
    %v1716 = vunpack.c.l.b16 %v398
    %v1717 = vunpack.c.h.b16 %v398
    %v1718 = vunpack.c.l.b16 %v399
    %v1719 = vunpack.c.h.b16 %v399
    %v1720 = vunpack.c.l.b16 %v400
    %v1721 = vunpack.c.h.b16 %v400
    %v1722 = vunpack.c.l.b16 %v401
    %v1723 = vunpack.c.h.b16 %v401
    %v1724 = vunpack.c.l.b16 %v402
    %v1725 = vunpack.c.h.b16 %v402
    %v1726 = vunpack.c.l.b16 %v403
    %v1727 = vunpack.c.h.b16 %v403
    %v1728 = vunpack.c.l.b16 %v404
    %v1729 = vunpack.c.h.b16 %v404
    %v1730 = vunpack.c.l.b16 %v405
    %v1731 = vunpack.c.h.b16 %v405
    %v1732 = vunpack.c.l.b16 %v406
    %v1733 = vunpack.c.h.b16 %v406
    %v1734 = vunpack.c.l.b16 %v407
    %v1735 = vunpack.c.h.b16 %v407
    %v1736 = vunpack.c.l.b16 %v408
    %v1737 = vunpack.c.h.b16 %v408
    %v1738 = vunpack.c.l.b16 %v409
    %v1739 = vunpack.c.h.b16 %v409
    %v1740 = vunpack.c.l.b16 %v410
    %v1741 = vunpack.c.h.b16 %v410
    %v1742 = vunpack.c.l.b16 %v411
    %v1743 = vunpack.c.h.b16 %v411
    %v1744 = vunpack.c.l.b16 %v412
    %v1745 = vunpack.c.h.b16 %v412
    %v1746 = vunpack.c.l.b16 %v413
    %v1747 = vunpack.c.h.b16 %v413
    %v1748 = vunpack.c.l.b16 %v414
    %v1749 = vunpack.c.h.b16 %v414
    %v1750 = vunpack.c.l.b16 %v415
    %v1751 = vunpack.c.h.b16 %v415
    %v1752 = vunpack.c.l.b16 %v416
    %v1753 = vunpack.c.h.b16 %v416
    %v1754 = vunpack.c.l.b16 %v417
    %v1755 = vunpack.c.h.b16 %v417
    %v1756 = vunpack.c.l.b16 %v418
    %v1757 = vunpack.c.h.b16 %v418
    %v1758 = vunpack.c.l.b16 %v419
    %v1759 = vunpack.c.h.b16 %v419
    %v1760 = vunpack.c.l.b16 %v420
    %v1761 = vunpack.c.h.b16 %v420
    %v1762 = vunpack.c.l.b16 %v421
    %v1763 = vunpack.c.h.b16 %v421
    %v1764 = vunpack.c.l.b16 %v422
    %v1765 = vunpack.c.h.b16 %v422
    %v1766 = vunpack.c.l.b16 %v423
    %v1767 = vunpack.c.h.b16 %v423
    %v1768 = vunpack.c.l.b16 %v424
    %v1769 = vunpack.c.h.b16 %v424
    %v1770 = vunpack.c.l.b16 %v425
    %v1771 = vunpack.c.h.b16 %v425
    %v1772 = vunpack.c.l.b16 %v426
    %v1773 = vunpack.c.h.b16 %v426
    %v1774 = vunpack.c.l.b16 %v427
    %v1775 = vunpack.c.h.b16 %v427
    %v1776 = vunpack.c.l.b16 %v428
    %v1777 = vunpack.c.h.b16 %v428
    %v1778 = vunpack.c.l.b16 %v429
    %v1779 = vunpack.c.h.b16 %v429
    %v1780 = vunpack.c.l.b16 %v430
    %v1781 = vunpack.c.h.b16 %v430
    %v1782 = vunpack.c.l.b16 %v431
    %v1783 = vunpack.c.h.b16 %v431
    %v1784 = vunpack.c.l.b16 %v432
    %v1785 = vunpack.c.h.b16 %v432
    %v1786 = vunpack.c.l.b16 %v433
    %v1787 = vunpack.c.h.b16 %v433
    %v1788 = vunpack.c.l.b16 %v434
    %v1789 = vunpack.c.h.b16 %v434
    %v1790 = vunpack.c.l.b16 %v435
    %v1791 = vunpack.c.h.b16 %v435
    %v1792 = vunpack.c.l.b16 %v436
    %v1793 = vunpack.c.h.b16 %v436
    %v1794 = vunpack.c.l.b16 %v437
    %v1795 = vunpack.c.h.b16 %v437
    %v1796 = vunpack.c.l.b16 %v438
    %v1797 = vunpack.c.h.b16 %v438
    %v1798 = vunpack.c.l.b16 %v439
    %v1799 = vunpack.c.h.b16 %v439
    %v1800 = vunpack.c.l.b16 %v440
    %v1801 = vunpack.c.h.b16 %v440
    %v1802 = vunpack.c.l.b16 %v441
    %v1803 = vunpack.c.h.b16 %v441
    %v1804 = vunpack.c.l.b16 %v442
    %v1805 = vunpack.c.h.b16 %v442
    %v1806 = vunpack.c.l.b16 %v443
    %v1807 = vunpack.c.h.b16 %v443
    %v1808 = vunpack.c.l.b16 %v444
    %v1809 = vunpack.c.h.b16 %v444
    %v1810 = vunpack.c.l.b16 %v445
    %v1811 = vunpack.c.h.b16 %v445
    %v1812 = vunpack.c.l.b16 %v446
    %v1813 = vunpack.c.h.b16 %v446
    %v1814 = vunpack.c.l.b16 %v447
    %v1815 = vunpack.c.h.b16 %v447
    %v1816 = vunpack.c.l.b16 %v448
    %v1817 = vunpack.c.h.b16 %v448
    %v1818 = vunpack.c.l.b16 %v449
    %v1819 = vunpack.c.h.b16 %v449
    %v1820 = vunpack.c.l.b16 %v450
    %v1821 = vunpack.c.h.b16 %v450
    %v1822 = vunpack.c.l.b16 %v451
    %v1823 = vunpack.c.h.b16 %v451
    %v1824 = vunpack.c.l.b16 %v452
    %v1825 = vunpack.c.h.b16 %v452
    %v1826 = vunpack.c.l.b16 %v453
    %v1827 = vunpack.c.h.b16 %v453
    %v1828 = vunpack.c.l.b16 %v454
    %v1829 = vunpack.c.h.b16 %v454
    %v1830 = vunpack.c.l.b16 %v455
    %v1831 = vunpack.c.h.b16 %v455
    %v1832 = vunpack.c.l.b16 %v456
    %v1833 = vunpack.c.h.b16 %v456
    %v1834 = vunpack.c.l.b16 %v457
    %v1835 = vunpack.c.h.b16 %v457
    %v1836 = vunpack.c.l.b16 %v458
    %v1837 = vunpack.c.h.b16 %v458
    %v1838 = vunpack.c.l.b16 %v459
    %v1839 = vunpack.c.h.b16 %v459
    %v1840 = vunpack.c.l.b16 %v460
    %v1841 = vunpack.c.h.b16 %v460
    %v1842 = vunpack.c.l.b16 %v461
    %v1843 = vunpack.c.h.b16 %v461
    %v1844 = vunpack.c.l.b16 %v462
    %v1845 = vunpack.c.h.b16 %v462
    %v1846 = vunpack.c.l.b16 %v463
    %v1847 = vunpack.c.h.b16 %v463
    %v1848 = vunpack.c.l.b16 %v464
    %v1849 = vunpack.c.h.b16 %v464
    %v1850 = vunpack.c.l.b16 %v465
    %v1851 = vunpack.c.h.b16 %v465
    %v1852 = vunpack.c.l.b16 %v466
    %v1853 = vunpack.c.h.b16 %v466
    %v1854 = vunpack.c.l.b16 %v467
    %v1855 = vunpack.c.h.b16 %v467
    %v1856 = vunpack.c.l.b16 %v468
    %v1857 = vunpack.c.h.b16 %v468
    %v1858 = vunpack.c.l.b16 %v469
    %v1859 = vunpack.c.h.b16 %v469
    %v1860 = vunpack.c.l.b16 %v470
    %v1861 = vunpack.c.h.b16 %v470
    %v1862 = vunpack.c.l.b16 %v471
    %v1863 = vunpack.c.h.b16 %v471
    %v1864 = vunpack.c.l.b16 %v472
    %v1865 = vunpack.c.h.b16 %v472
    %v1866 = vunpack.c.l.b16 %v473
    %v1867 = vunpack.c.h.b16 %v473
    %v1868 = vunpack.c.l.b16 %v474
    %v1869 = vunpack.c.h.b16 %v474
    %v1870 = vunpack.c.l.b16 %v475
    %v1871 = vunpack.c.h.b16 %v475
    %v1872 = vunpack.c.l.b16 %v476
    %v1873 = vunpack.c.h.b16 %v476
    %v1874 = vunpack.c.l.b16 %v477
    %v1875 = vunpack.c.h.b16 %v477
    %v1876 = vunpack.c.l.b16 %v478
    %v1877 = vunpack.c.h.b16 %v478
    %v1878 = vunpack.c.l.b16 %v479
    %v1879 = vunpack.c.h.b16 %v479
    %v1880 = vunpack.c.l.b16 %v480
    %v1881 = vunpack.c.h.b16 %v480
    %v1882 = vunpack.c.l.b16 %v481
    %v1883 = vunpack.c.h.b16 %v481
    %v1884 = vunpack.c.l.b16 %v482
    %v1885 = vunpack.c.h.b16 %v482
    %v1886 = vunpack.c.l.b16 %v483
    %v1887 = vunpack.c.h.b16 %v483
    %v1888 = vunpack.c.l.b16 %v484
    %v1889 = vunpack.c.h.b16 %v484
    %v1890 = vunpack.c.l.b16 %v485
    %v1891 = vunpack.c.h.b16 %v485
    %v1892 = vunpack.c.l.b16 %v486
    %v1893 = vunpack.c.h.b16 %v486
    %v1894 = vunpack.c.l.b16 %v487
    %v1895 = vunpack.c.h.b16 %v487
    %v1896 = vunpack.c.l.b16 %v488
    %v1897 = vunpack.c.h.b16 %v488
    %v1898 = vunpack.c.l.b16 %v489
    %v1899 = vunpack.c.h.b16 %v489
    %v1900 = vunpack.c.l.b16 %v490
    %v1901 = vunpack.c.h.b16 %v490
    %v1902 = vunpack.c.l.b16 %v491
    %v1903 = vunpack.c.h.b16 %v491
    %v1904 = vunpack.c.l.b16 %v492
    %v1905 = vunpack.c.h.b16 %v492
    %v1906 = vunpack.c.l.b16 %v493
    %v1907 = vunpack.c.h.b16 %v493
    %v1908 = vunpack.c.l.b16 %v494
    %v1909 = vunpack.c.h.b16 %v494
    %v1910 = vunpack.c.l.b16 %v495
    %v1911 = vunpack.c.h.b16 %v495
    %v1912 = vunpack.c.l.b16 %v496
    %v1913 = vunpack.c.h.b16 %v496
    %v1914 = vunpack.c.l.b16 %v497
    %v1915 = vunpack.c.h.b16 %v497
    %v1916 = vunpack.c.l.b16 %v498
    %v1917 = vunpack.c.h.b16 %v498
    %v1918 = vunpack.c.l.b16 %v499
    %v1919 = vunpack.c.h.b16 %v499
    %v1920 = vunpack.c.l.b16 %v500
    %v1921 = vunpack.c.h.b16 %v500
    %v1922 = vunpack.c.l.b16 %v501
    %v1923 = vunpack.c.h.b16 %v501
    %v1924 = vunpack.c.l.b16 %v502
    %v1925 = vunpack.c.h.b16 %v502
    %v1926 = vunpack.c.l.b16 %v503
    %v1927 = vunpack.c.h.b16 %v503
    %v1928 = vunpack.c.l.b16 %v504
    %v1929 = vunpack.c.h.b16 %v504
    %v1930 = vunpack.c.l.b16 %v505
    %v1931 = vunpack.c.h.b16 %v505
    %v1932 = vunpack.c.l.b16 %v506
    %v1933 = vunpack.c.h.b16 %v506
    %v1934 = vunpack.c.l.b16 %v507
    %v1935 = vunpack.c.h.b16 %v507
    %v1936 = vunpack.c.l.b16 %v508
    %v1937 = vunpack.c.h.b16 %v508
    %v1938 = vunpack.c.l.b16 %v509
    %v1939 = vunpack.c.h.b16 %v509
    %v1940 = vunpack.c.l.b16 %v510
    %v1941 = vunpack.c.h.b16 %v510
    %v1942 = vunpack.c.l.b16 %v511
    %v1943 = vunpack.c.h.b16 %v511
    %v1944 = vunpack.c.l.b16 %v512
    %v1945 = vunpack.c.h.b16 %v512
    %v1946 = vunpack.c.l.b16 %v513
    %v1947 = vunpack.c.h.b16 %v513
    %v1948 = vunpack.c.l.b16 %v514
    %v1949 = vunpack.c.h.b16 %v514
    %v1950 = vunpack.c.l.b16 %v515
    %v1951 = vunpack.c.h.b16 %v515
    %v1952 = vunpack.c.l.b16 %v516
    %v1953 = vunpack.c.h.b16 %v516
    %v1954 = vunpack.c.l.b16 %v517
    %v1955 = vunpack.c.h.b16 %v517
    %v1956 = vunpack.c.l.b16 %v518
    %v1957 = vunpack.c.h.b16 %v518
    %v1958 = vunpack.c.l.b16 %v519
    %v1959 = vunpack.c.h.b16 %v519
    %v1960 = vunpack.c.l.b16 %v520
    %v1961 = vunpack.c.h.b16 %v520
    %v1962 = vunpack.c.l.b16 %v521
    %v1963 = vunpack.c.h.b16 %v521
    %v1964 = vunpack.c.l.b16 %v522
    %v1965 = vunpack.c.h.b16 %v522
    %v1966 = vunpack.c.l.b16 %v523
    %v1967 = vunpack.c.h.b16 %v523
    %v1968 = vunpack.c.l.b16 %v524
    %v1969 = vunpack.c.h.b16 %v524
    %v1970 = vunpack.c.l.b16 %v525
    %v1971 = vunpack.c.h.b16 %v525
    %v1972 = vunpack.c.l.b16 %v526
    %v1973 = vunpack.c.h.b16 %v526
    %v1974 = vunpack.c.l.b16 %v527
    %v1975 = vunpack.c.h.b16 %v527
    %v1976 = vunpack.c.l.b16 %v528
    %v1977 = vunpack.c.h.b16 %v528
    %v1978 = vunpack.c.l.b16 %v529
    %v1979 = vunpack.c.h.b16 %v529
    %v1980 = vunpack.c.l.b16 %v530
    %v1981 = vunpack.c.h.b16 %v530
    %v1982 = vunpack.c.l.b16 %v531
    %v1983 = vunpack.c.h.b16 %v531
    %v1984 = vunpack.c.l.b16 %v532
    %v1985 = vunpack.c.h.b16 %v532
    %v1986 = vunpack.c.l.b16 %v533
    %v1987 = vunpack.c.h.b16 %v533
    %v1988 = vunpack.c.l.b16 %v534
    %v1989 = vunpack.c.h.b16 %v534
    %v1990 = vunpack.c.l.b16 %v535
    %v1991 = vunpack.c.h.b16 %v535
    %v1992 = vunpack.c.l.b16 %v536
    %v1993 = vunpack.c.h.b16 %v536
    %v1994 = vunpack.c.l.b16 %v537
    %v1995 = vunpack.c.h.b16 %v537
    %v1996 = vunpack.c.l.b16 %v538
    %v1997 = vunpack.c.h.b16 %v538
    %v1998 = vunpack.c.l.b16 %v539
    %v1999 = vunpack.c.h.b16 %v539
    %v2000 = vunpack.c.l.b16 %v540
    %v2001 = vunpack.c.h.b16 %v540
    %v2002 = vunpack.c.l.b16 %v541
    %v2003 = vunpack.c.h.b16 %v541
    %v2004 = vunpack.c.l.b16 %v542
    %v2005 = vunpack.c.h.b16 %v542
    %v2006 = vunpack.c.l.b16 %v543
    %v2007 = vunpack.c.h.b16 %v543
    %v2008 = vunpack.c.l.b16 %v544
    %v2009 = vunpack.c.h.b16 %v544
    %v2010 = vunpack.c.l.b16 %v545
    %v2011 = vunpack.c.h.b16 %v545
    %v2012 = vunpack.c.l.b16 %v546
    %v2013 = vunpack.c.h.b16 %v546
    %v2014 = vunpack.c.l.b16 %v547
    %v2015 = vunpack.c.h.b16 %v547
    %v2016 = vunpack.c.l.b16 %v548
    %v2017 = vunpack.c.h.b16 %v548
    %v2018 = vunpack.c.l.b16 %v549
    %v2019 = vunpack.c.h.b16 %v549
    %v2020 = vunpack.c.l.b16 %v550
    %v2021 = vunpack.c.h.b16 %v550
    %v2022 = vunpack.c.l.b16 %v551
    %v2023 = vunpack.c.h.b16 %v551
    %v2024 = vunpack.c.l.b16 %v552
    %v2025 = vunpack.c.h.b16 %v552
    %v2026 = vunpack.c.l.b16 %v553
    %v2027 = vunpack.c.h.b16 %v553
    %v2028 = vunpack.c.l.b16 %v554
    %v2029 = vunpack.c.h.b16 %v554
    %v2030 = vunpack.c.l.b16 %v555
    %v2031 = vunpack.c.h.b16 %v555
    %v2032 = vunpack.c.l.b16 %v556
    %v2033 = vunpack.c.h.b16 %v556
    %v2034 = vunpack.c.l.b16 %v557
    %v2035 = vunpack.c.h.b16 %v557
    %v2036 = vunpack.c.l.b16 %v558
    %v2037 = vunpack.c.h.b16 %v558
    %v2038 = vunpack.c.l.b16 %v559
    %v2039 = vunpack.c.h.b16 %v559
    %v2040 = vunpack.c.l.b16 %v560
    %v2041 = vunpack.c.h.b16 %v560
    %v2042 = vunpack.c.l.b16 %v561
    %v2043 = vunpack.c.h.b16 %v561
    %v2044 = vunpack.c.l.b16 %v562
    %v2045 = vunpack.c.h.b16 %v562
    %v2046 = vunpack.c.l.b16 %v563
    %v2047 = vunpack.c.h.b16 %v563
    %v2048 = vunpack.c.l.b16 %v564
    %v2049 = vunpack.c.h.b16 %v564
    %v2050 = vunpack.c.l.b16 %v565
    %v2051 = vunpack.c.h.b16 %v565
    %v2052 = vunpack.c.l.b16 %v566
    %v2053 = vunpack.c.h.b16 %v566
    %v2054 = vunpack.c.l.b16 %v567
    %v2055 = vunpack.c.h.b16 %v567
    %v2056 = vunpack.c.l.b16 %v568
    %v2057 = vunpack.c.h.b16 %v568
    %v2058 = vunpack.c.l.b16 %v569
    %v2059 = vunpack.c.h.b16 %v569
    %v2060 = vunpack.c.l.b16 %v570
    %v2061 = vunpack.c.h.b16 %v570
    %v2062 = vunpack.c.l.b16 %v571
    %v2063 = vunpack.c.h.b16 %v571
    %v2064 = vunpack.c.l.b16 %v572
    %v2065 = vunpack.c.h.b16 %v572
    %v2066 = vunpack.c.l.b16 %v573
    %v2067 = vunpack.c.h.b16 %v573
    %v2068 = vunpack.c.l.b16 %v574
    %v2069 = vunpack.c.h.b16 %v574
    %v2070 = vunpack.c.l.b16 %v575
    %v2071 = vunpack.c.h.b16 %v575
    %v2072 = vunpack.c.l.b16 %v576
    %v2073 = vunpack.c.h.b16 %v576
    %v2074 = vunpack.c.l.b16 %v577
    %v2075 = vunpack.c.h.b16 %v577
    %v2076 = vunpack.c.l.b16 %v578
    %v2077 = vunpack.c.h.b16 %v578
    %v2078 = vunpack.c.l.b16 %v579
    %v2079 = vunpack.c.h.b16 %v579
    %v2080 = vunpack.c.l.b16 %v580
    %v2081 = vunpack.c.h.b16 %v580
    %v2082 = vunpack.c.l.b16 %v581
    %v2083 = vunpack.c.h.b16 %v581
    %v2084 = vunpack.c.l.b16 %v582
    %v2085 = vunpack.c.h.b16 %v582
    %v2086 = vunpack.c.l.b16 %v583
    %v2087 = vunpack.c.h.b16 %v583
    %v2088 = vunpack.c.l.b16 %v584
    %v2089 = vunpack.c.h.b16 %v584
    %v2090 = vunpack.c.l.b16 %v585
    %v2091 = vunpack.c.h.b16 %v585
    %v2092 = vunpack.c.l.b16 %v586
    %v2093 = vunpack.c.h.b16 %v586
    %v2094 = vunpack.c.l.b16 %v587
    %v2095 = vunpack.c.h.b16 %v587
    %v2096 = vunpack.c.l.b16 %v588
    %v2097 = vunpack.c.h.b16 %v588
    %v2098 = vunpack.c.l.b16 %v589
    %v2099 = vunpack.c.h.b16 %v589
    %v2100 = vunpack.c.l.b16 %v590
    %v2101 = vunpack.c.h.b16 %v590
    %v2102 = vunpack.c.l.b16 %v591
    %v2103 = vunpack.c.h.b16 %v591
    %v2104 = vunpack.c.l.b16 %v592
    %v2105 = vunpack.c.h.b16 %v592
    %v2106 = vunpack.c.l.b16 %v593
    %v2107 = vunpack.c.h.b16 %v593
    %v2108 = vunpack.c.l.b16 %v594
    %v2109 = vunpack.c.h.b16 %v594
    %v2110 = vunpack.c.l.b16 %v595
    %v2111 = vunpack.c.h.b16 %v595
    %v2112 = vunpack.c.l.b16 %v596
    %v2113 = vunpack.c.h.b16 %v596
    %v2114 = vunpack.c.l.b16 %v597
    %v2115 = vunpack.c.h.b16 %v597
    %v2116 = vunpack.c.l.b16 %v598
    %v2117 = vunpack.c.h.b16 %v598
    %v2118 = vunpack.c.l.b16 %v599
    %v2119 = vunpack.c.h.b16 %v599
    %v2120 = vunpack.c.l.b16 %v600
    %v2121 = vunpack.c.h.b16 %v600
    %v2122 = vunpack.c.l.b16 %v601
    %v2123 = vunpack.c.h.b16 %v601
    %v2124 = vunpack.c.l.b16 %v602
    %v2125 = vunpack.c.h.b16 %v602
    %v2126 = vunpack.c.l.b16 %v603
    %v2127 = vunpack.c.h.b16 %v603
    %v2128 = vunpack.c.l.b16 %v604
    %v2129 = vunpack.c.h.b16 %v604
    %v2130 = vunpack.c.l.b16 %v605
    %v2131 = vunpack.c.h.b16 %v605
    %v2132 = vunpack.c.l.b16 %v606
    %v2133 = vunpack.c.h.b16 %v606
    %v2134 = vunpack.c.l.b16 %v607
    %v2135 = vunpack.c.h.b16 %v607
    %v2136 = vunpack.c.l.b16 %v608
    %v2137 = vunpack.c.h.b16 %v608
    %v2138 = vunpack.c.l.b16 %v609
    %v2139 = vunpack.c.h.b16 %v609
    %v2140 = vunpack.c.l.b16 %v610
    %v2141 = vunpack.c.h.b16 %v610
    %v2142 = vunpack.c.l.b16 %v611
    %v2143 = vunpack.c.h.b16 %v611
    %v2144 = vunpack.c.l.b16 %v612
    %v2145 = vunpack.c.h.b16 %v612
    %v2146 = vunpack.c.l.b16 %v613
    %v2147 = vunpack.c.h.b16 %v613
    %v2148 = vunpack.c.l.b16 %v614
    %v2149 = vunpack.c.h.b16 %v614
    %v2150 = vunpack.c.l.b16 %v615
    %v2151 = vunpack.c.h.b16 %v615
    %v2152 = vunpack.c.l.b16 %v616
    %v2153 = vunpack.c.h.b16 %v616
    %v2154 = vunpack.c.l.b16 %v617
    %v2155 = vunpack.c.h.b16 %v617
    %v2156 = vunpack.c.l.b16 %v618
    %v2157 = vunpack.c.h.b16 %v618
    %v2158 = vunpack.c.l.b16 %v619
    %v2159 = vunpack.c.h.b16 %v619
    %v2160 = vunpack.c.l.b16 %v620
    %v2161 = vunpack.c.h.b16 %v620
    %v2162 = vunpack.c.l.b16 %v621
    %v2163 = vunpack.c.h.b16 %v621
    %v2164 = vunpack.c.l.b16 %v622
    %v2165 = vunpack.c.h.b16 %v622
    %v2166 = vunpack.c.l.b16 %v623
    %v2167 = vunpack.c.h.b16 %v623
    %v2168 = vunpack.c.l.b16 %v624
    %v2169 = vunpack.c.h.b16 %v624
    %v2170 = vunpack.c.l.b16 %v625
    %v2171 = vunpack.c.h.b16 %v625
    %v2172 = vunpack.c.l.b16 %v626
    %v2173 = vunpack.c.h.b16 %v626
    %v2174 = vunpack.c.l.b16 %v627
    %v2175 = vunpack.c.h.b16 %v627
    %v2176 = vunpack.c.l.b16 %v628
    %v2177 = vunpack.c.h.b16 %v628
    %v2178 = vunpack.c.l.b16 %v629
    %v2179 = vunpack.c.h.b16 %v629
    %v2180 = vunpack.c.l.b16 %v630
    %v2181 = vunpack.c.h.b16 %v630
    %v2182 = vunpack.c.l.b16 %v631
    %v2183 = vunpack.c.h.b16 %v631
    %v2184 = vunpack.c.l.b16 %v632
    %v2185 = vunpack.c.h.b16 %v632
    %v2186 = vunpack.c.l.b16 %v633
    %v2187 = vunpack.c.h.b16 %v633
    %v2188 = vpack.c.b16 %v1172, %v1164
    %v2189 = vpack.c.b16 %v1173, %v1165
    %v2190 = vpack.c.b16 %v1174, %v1166
    %v2191 = vpack.c.b16 %v1175, %v1167
    %v2192 = vpack.c.b16 %v1176, %v1168
    %v2193 = vpack.c.b16 %v1177, %v1169
    %v2194 = vpack.c.b16 %v1178, %v1170
    %v2195 = vpack.c.b16 %v1179, %v1171
    %v2196 = vpack.c.b16 %v1188, %v1180
    %v2197 = vpack.c.b16 %v1189, %v1181
    %v2198 = vpack.c.b16 %v1190, %v1182
    %v2199 = vpack.c.b16 %v1191, %v1183
    %v2200 = vpack.c.b16 %v1192, %v1184
    %v2201 = vpack.c.b16 %v1193, %v1185
    %v2202 = vpack.c.b16 %v1194, %v1186
    %v2203 = vpack.c.b16 %v1195, %v1187
    %v2204 = vpack.c.b16 %v1204, %v1196
    %v2205 = vpack.c.b16 %v1205, %v1197
    %v2206 = vpack.c.b16 %v1206, %v1198
    %v2207 = vpack.c.b16 %v1207, %v1199
    %v2208 = vpack.c.b16 %v1208, %v1200
    %v2209 = vpack.c.b16 %v1209, %v1201
    %v2210 = vpack.c.b16 %v1210, %v1202
    %v2211 = vpack.c.b16 %v1211, %v1203
    %v2212 = vpack.c.b16 %v1220, %v1212
    %v2213 = vpack.c.b16 %v1221, %v1213
    %v2214 = vpack.c.b16 %v1222, %v1214
    %v2215 = vpack.c.b16 %v1223, %v1215
    %v2216 = vpack.c.b16 %v1224, %v1216
    %v2217 = vpack.c.b16 %v1225, %v1217
    %v2218 = vpack.c.b16 %v1226, %v1218
    %v2219 = vpack.c.b16 %v1227, %v1219
    %v2220 = vpack.c.b16 %v1236, %v1228
    %v2221 = vpack.c.b16 %v1237, %v1229
    %v2222 = vpack.c.b16 %v1238, %v1230
    %v2223 = vpack.c.b16 %v1239, %v1231
    %v2224 = vpack.c.b16 %v1240, %v1232
    %v2225 = vpack.c.b16 %v1241, %v1233
    %v2226 = vpack.c.b16 %v1242, %v1234
    %v2227 = vpack.c.b16 %v1243, %v1235
    %v2228 = vpack.c.b16 %v1252, %v1244
    %v2229 = vpack.c.b16 %v1253, %v1245
    %v2230 = vpack.c.b16 %v1254, %v1246
    %v2231 = vpack.c.b16 %v1255, %v1247
    %v2232 = vpack.c.b16 %v1256, %v1248
    %v2233 = vpack.c.b16 %v1257, %v1249
    %v2234 = vpack.c.b16 %v1258, %v1250
    %v2235 = vpack.c.b16 %v1259, %v1251
    %v2236 = vpack.c.b16 %v1268, %v1260
    %v2237 = vpack.c.b16 %v1269, %v1261
    %v2238 = vpack.c.b16 %v1270, %v1262
    %v2239 = vpack.c.b16 %v1271, %v1263
    %v2240 = vpack.c.b16 %v1272, %v1264
    %v2241 = vpack.c.b16 %v1273, %v1265
    %v2242 = vpack.c.b16 %v1274, %v1266
    %v2243 = vpack.c.b16 %v1275, %v1267
    %v2244 = vpack.c.b16 %v1284, %v1276
    %v2245 = vpack.c.b16 %v1285, %v1277
    %v2246 = vpack.c.b16 %v1286, %v1278
    %v2247 = vpack.c.b16 %v1287, %v1279
    %v2248 = vpack.c.b16 %v1288, %v1280
    %v2249 = vpack.c.b16 %v1289, %v1281
    %v2250 = vpack.c.b16 %v1290, %v1282
    %v2251 = vpack.c.b16 %v1291, %v1283
    %v2252 = vpack.c.b16 %v1300, %v1292
    %v2253 = vpack.c.b16 %v1301, %v1293
    %v2254 = vpack.c.b16 %v1302, %v1294
    %v2255 = vpack.c.b16 %v1303, %v1295
    %v2256 = vpack.c.b16 %v1304, %v1296
    %v2257 = vpack.c.b16 %v1305, %v1297
    %v2258 = vpack.c.b16 %v1306, %v1298
    %v2259 = vpack.c.b16 %v1307, %v1299
    %v2260 = vpack.c.b16 %v1316, %v1308
    %v2261 = vpack.c.b16 %v1317, %v1309
    %v2262 = vpack.c.b16 %v1318, %v1310
    %v2263 = vpack.c.b16 %v1319, %v1311
    %v2264 = vpack.c.b16 %v1320, %v1312
    %v2265 = vpack.c.b16 %v1321, %v1313
    %v2266 = vpack.c.b16 %v1322, %v1314
    %v2267 = vpack.c.b16 %v1323, %v1315
    %v2268 = vpack.c.b16 %v1332, %v1324
    %v2269 = vpack.c.b16 %v1333, %v1325
    %v2270 = vpack.c.b16 %v1334, %v1326
    %v2271 = vpack.c.b16 %v1335, %v1327
    %v2272 = vpack.c.b16 %v1336, %v1328
    %v2273 = vpack.c.b16 %v1337, %v1329
    %v2274 = vpack.c.b16 %v1338, %v1330
    %v2275 = vpack.c.b16 %v1339, %v1331
    %v2276 = vpack.c.b16 %v1348, %v1340
    %v2277 = vpack.c.b16 %v1349, %v1341
    %v2278 = vpack.c.b16 %v1350, %v1342
    %v2279 = vpack.c.b16 %v1351, %v1343
    %v2280 = vpack.c.b16 %v1352, %v1344
    %v2281 = vpack.c.b16 %v1353, %v1345
    %v2282 = vpack.c.b16 %v1354, %v1346
    %v2283 = vpack.c.b16 %v1355, %v1347
    %v2284 = vpack.c.b16 %v1364, %v1356
    %v2285 = vpack.c.b16 %v1365, %v1357
    %v2286 = vpack.c.b16 %v1366, %v1358
    %v2287 = vpack.c.b16 %v1367, %v1359
    %v2288 = vpack.c.b16 %v1368, %v1360
    %v2289 = vpack.c.b16 %v1369, %v1361
    %v2290 = vpack.c.b16 %v1370, %v1362
    %v2291 = vpack.c.b16 %v1371, %v1363
    %v2292 = vpack.c.b16 %v1380, %v1372
    %v2293 = vpack.c.b16 %v1381, %v1373
    %v2294 = vpack.c.b16 %v1382, %v1374
    %v2295 = vpack.c.b16 %v1383, %v1375
    %v2296 = vpack.c.b16 %v1384, %v1376
    %v2297 = vpack.c.b16 %v1385, %v1377
    %v2298 = vpack.c.b16 %v1386, %v1378
    %v2299 = vpack.c.b16 %v1387, %v1379
    %v2300 = vpack.c.b16 %v1396, %v1388
    %v2301 = vpack.c.b16 %v1397, %v1389
    %v2302 = vpack.c.b16 %v1398, %v1390
    %v2303 = vpack.c.b16 %v1399, %v1391
    %v2304 = vpack.c.b16 %v1400, %v1392
    %v2305 = vpack.c.b16 %v1401, %v1393
    %v2306 = vpack.c.b16 %v1402, %v1394
    %v2307 = vpack.c.b16 %v1403, %v1395
    %v2308 = vpack.c.b16 %v1412, %v1404
    %v2309 = vpack.c.b16 %v1413, %v1405
    %v2310 = vpack.c.b16 %v1414, %v1406
    %v2311 = vpack.c.b16 %v1415, %v1407
    %v2312 = vpack.c.b16 %v1416, %v1408
    %v2313 = vpack.c.b16 %v1417, %v1409
    %v2314 = vpack.c.b16 %v1418, %v1410
    %v2315 = vpack.c.b16 %v1419, %v1411
    %v2316 = vpack.c.b16 %v1428, %v1420
    %v2317 = vpack.c.b16 %v1429, %v1421
    %v2318 = vpack.c.b16 %v1430, %v1422
    %v2319 = vpack.c.b16 %v1431, %v1423
    %v2320 = vpack.c.b16 %v1432, %v1424
    %v2321 = vpack.c.b16 %v1433, %v1425
    %v2322 = vpack.c.b16 %v1434, %v1426
    %v2323 = vpack.c.b16 %v1435, %v1427
    %v2324 = vpack.c.b16 %v1444, %v1436
    %v2325 = vpack.c.b16 %v1445, %v1437
    %v2326 = vpack.c.b16 %v1446, %v1438
    %v2327 = vpack.c.b16 %v1447, %v1439
    %v2328 = vpack.c.b16 %v1448, %v1440
    %v2329 = vpack.c.b16 %v1449, %v1441
    %v2330 = vpack.c.b16 %v1450, %v1442
    %v2331 = vpack.c.b16 %v1451, %v1443
    %v2332 = vpack.c.b16 %v1460, %v1452
    %v2333 = vpack.c.b16 %v1461, %v1453
    %v2334 = vpack.c.b16 %v1462, %v1454
    %v2335 = vpack.c.b16 %v1463, %v1455
    %v2336 = vpack.c.b16 %v1464, %v1456
    %v2337 = vpack.c.b16 %v1465, %v1457
    %v2338 = vpack.c.b16 %v1466, %v1458
    %v2339 = vpack.c.b16 %v1467, %v1459
    %v2340 = vpack.c.b16 %v1476, %v1468
    %v2341 = vpack.c.b16 %v1477, %v1469
    %v2342 = vpack.c.b16 %v1478, %v1470
    %v2343 = vpack.c.b16 %v1479, %v1471
    %v2344 = vpack.c.b16 %v1480, %v1472
    %v2345 = vpack.c.b16 %v1481, %v1473
    %v2346 = vpack.c.b16 %v1482, %v1474
    %v2347 = vpack.c.b16 %v1483, %v1475
    %v2348 = vpack.c.b16 %v1492, %v1484
    %v2349 = vpack.c.b16 %v1493, %v1485
    %v2350 = vpack.c.b16 %v1494, %v1486
    %v2351 = vpack.c.b16 %v1495, %v1487
    %v2352 = vpack.c.b16 %v1496, %v1488
    %v2353 = vpack.c.b16 %v1497, %v1489
    %v2354 = vpack.c.b16 %v1498, %v1490
    %v2355 = vpack.c.b16 %v1499, %v1491
    %v2356 = vpack.c.b16 %v1508, %v1500
    %v2357 = vpack.c.b16 %v1509, %v1501
    %v2358 = vpack.c.b16 %v1510, %v1502
    %v2359 = vpack.c.b16 %v1511, %v1503
    %v2360 = vpack.c.b16 %v1512, %v1504
    %v2361 = vpack.c.b16 %v1513, %v1505
    %v2362 = vpack.c.b16 %v1514, %v1506
    %v2363 = vpack.c.b16 %v1515, %v1507
    %v2364 = vpack.c.b16 %v1524, %v1516
    %v2365 = vpack.c.b16 %v1525, %v1517
    %v2366 = vpack.c.b16 %v1526, %v1518
    %v2367 = vpack.c.b16 %v1527, %v1519
    %v2368 = vpack.c.b16 %v1528, %v1520
    %v2369 = vpack.c.b16 %v1529, %v1521
    %v2370 = vpack.c.b16 %v1530, %v1522
    %v2371 = vpack.c.b16 %v1531, %v1523
    %v2372 = vpack.c.b16 %v1540, %v1532
    %v2373 = vpack.c.b16 %v1541, %v1533
    %v2374 = vpack.c.b16 %v1542, %v1534
    %v2375 = vpack.c.b16 %v1543, %v1535
    %v2376 = vpack.c.b16 %v1544, %v1536
    %v2377 = vpack.c.b16 %v1545, %v1537
    %v2378 = vpack.c.b16 %v1546, %v1538
    %v2379 = vpack.c.b16 %v1547, %v1539
    %v2380 = vpack.c.b16 %v1556, %v1548
    %v2381 = vpack.c.b16 %v1557, %v1549
    %v2382 = vpack.c.b16 %v1558, %v1550
    %v2383 = vpack.c.b16 %v1559, %v1551
    %v2384 = vpack.c.b16 %v1560, %v1552
    %v2385 = vpack.c.b16 %v1561, %v1553
    %v2386 = vpack.c.b16 %v1562, %v1554
    %v2387 = vpack.c.b16 %v1563, %v1555
    %v2388 = vpack.c.b16 %v1572, %v1564
    %v2389 = vpack.c.b16 %v1573, %v1565
    %v2390 = vpack.c.b16 %v1574, %v1566
    %v2391 = vpack.c.b16 %v1575, %v1567
    %v2392 = vpack.c.b16 %v1576, %v1568
    %v2393 = vpack.c.b16 %v1577, %v1569
    %v2394 = vpack.c.b16 %v1578, %v1570
    %v2395 = vpack.c.b16 %v1579, %v1571
    %v2396 = vpack.c.b16 %v1588, %v1580
    %v2397 = vpack.c.b16 %v1589, %v1581
    %v2398 = vpack.c.b16 %v1590, %v1582
    %v2399 = vpack.c.b16 %v1591, %v1583
    %v2400 = vpack.c.b16 %v1592, %v1584
    %v2401 = vpack.c.b16 %v1593, %v1585
    %v2402 = vpack.c.b16 %v1594, %v1586
    %v2403 = vpack.c.b16 %v1595, %v1587
    %v2404 = vpack.c.b16 %v1604, %v1596
    %v2405 = vpack.c.b16 %v1605, %v1597
    %v2406 = vpack.c.b16 %v1606, %v1598
    %v2407 = vpack.c.b16 %v1607, %v1599
    %v2408 = vpack.c.b16 %v1608, %v1600
    %v2409 = vpack.c.b16 %v1609, %v1601
    %v2410 = vpack.c.b16 %v1610, %v1602
    %v2411 = vpack.c.b16 %v1611, %v1603
    %v2412 = vpack.c.b16 %v1620, %v1612
    %v2413 = vpack.c.b16 %v1621, %v1613
    %v2414 = vpack.c.b16 %v1622, %v1614
    %v2415 = vpack.c.b16 %v1623, %v1615
    %v2416 = vpack.c.b16 %v1624, %v1616
    %v2417 = vpack.c.b16 %v1625, %v1617
    %v2418 = vpack.c.b16 %v1626, %v1618
    %v2419 = vpack.c.b16 %v1627, %v1619
    %v2420 = vpack.c.b16 %v1636, %v1628
    %v2421 = vpack.c.b16 %v1637, %v1629
    %v2422 = vpack.c.b16 %v1638, %v1630
    %v2423 = vpack.c.b16 %v1639, %v1631
    %v2424 = vpack.c.b16 %v1640, %v1632
    %v2425 = vpack.c.b16 %v1641, %v1633
    %v2426 = vpack.c.b16 %v1642, %v1634
    %v2427 = vpack.c.b16 %v1643, %v1635
    %v2428 = vpack.c.b16 %v1652, %v1644
    %v2429 = vpack.c.b16 %v1653, %v1645
    %v2430 = vpack.c.b16 %v1654, %v1646
    %v2431 = vpack.c.b16 %v1655, %v1647
    %v2432 = vpack.c.b16 %v1656, %v1648
    %v2433 = vpack.c.b16 %v1657, %v1649
    %v2434 = vpack.c.b16 %v1658, %v1650
    %v2435 = vpack.c.b16 %v1659, %v1651
    %v2436 = vpack.c.b16 %v1668, %v1660
    %v2437 = vpack.c.b16 %v1669, %v1661
    %v2438 = vpack.c.b16 %v1670, %v1662
    %v2439 = vpack.c.b16 %v1671, %v1663
    %v2440 = vpack.c.b16 %v1672, %v1664
    %v2441 = vpack.c.b16 %v1673, %v1665
    %v2442 = vpack.c.b16 %v1674, %v1666
    %v2443 = vpack.c.b16 %v1675, %v1667
    %v2444 = vpack.c.b16 %v1684, %v1676
    %v2445 = vpack.c.b16 %v1685, %v1677
    %v2446 = vpack.c.b16 %v1686, %v1678
    %v2447 = vpack.c.b16 %v1687, %v1679
    %v2448 = vpack.c.b16 %v1688, %v1680
    %v2449 = vpack.c.b16 %v1689, %v1681
    %v2450 = vpack.c.b16 %v1690, %v1682
    %v2451 = vpack.c.b16 %v1691, %v1683
    %v2452 = vpack.c.b16 %v1700, %v1692
    %v2453 = vpack.c.b16 %v1701, %v1693
    %v2454 = vpack.c.b16 %v1702, %v1694
    %v2455 = vpack.c.b16 %v1703, %v1695
    %v2456 = vpack.c.b16 %v1704, %v1696
    %v2457 = vpack.c.b16 %v1705, %v1697
    %v2458 = vpack.c.b16 %v1706, %v1698
    %v2459 = vpack.c.b16 %v1707, %v1699
    %v2460 = vpack.c.b16 %v1716, %v1708
    %v2461 = vpack.c.b16 %v1717, %v1709
    %v2462 = vpack.c.b16 %v1718, %v1710
    %v2463 = vpack.c.b16 %v1719, %v1711
    %v2464 = vpack.c.b16 %v1720, %v1712
    %v2465 = vpack.c.b16 %v1721, %v1713
    %v2466 = vpack.c.b16 %v1722, %v1714
    %v2467 = vpack.c.b16 %v1723, %v1715
    %v2468 = vpack.c.b16 %v1732, %v1724
    %v2469 = vpack.c.b16 %v1733, %v1725
    %v2470 = vpack.c.b16 %v1734, %v1726
    %v2471 = vpack.c.b16 %v1735, %v1727
    %v2472 = vpack.c.b16 %v1736, %v1728
    %v2473 = vpack.c.b16 %v1737, %v1729
    %v2474 = vpack.c.b16 %v1738, %v1730
    %v2475 = vpack.c.b16 %v1739, %v1731
    %v2476 = vpack.c.b16 %v1748, %v1740
    %v2477 = vpack.c.b16 %v1749, %v1741
    %v2478 = vpack.c.b16 %v1750, %v1742
    %v2479 = vpack.c.b16 %v1751, %v1743
    %v2480 = vpack.c.b16 %v1752, %v1744
    %v2481 = vpack.c.b16 %v1753, %v1745
    %v2482 = vpack.c.b16 %v1754, %v1746
    %v2483 = vpack.c.b16 %v1755, %v1747
    %v2484 = vpack.c.b16 %v1764, %v1756
    %v2485 = vpack.c.b16 %v1765, %v1757
    %v2486 = vpack.c.b16 %v1766, %v1758
    %v2487 = vpack.c.b16 %v1767, %v1759
    %v2488 = vpack.c.b16 %v1768, %v1760
    %v2489 = vpack.c.b16 %v1769, %v1761
    %v2490 = vpack.c.b16 %v1770, %v1762
    %v2491 = vpack.c.b16 %v1771, %v1763
    %v2492 = vpack.c.b16 %v1780, %v1772
    %v2493 = vpack.c.b16 %v1781, %v1773
    %v2494 = vpack.c.b16 %v1782, %v1774
    %v2495 = vpack.c.b16 %v1783, %v1775
    %v2496 = vpack.c.b16 %v1784, %v1776
    %v2497 = vpack.c.b16 %v1785, %v1777
    %v2498 = vpack.c.b16 %v1786, %v1778
    %v2499 = vpack.c.b16 %v1787, %v1779
    %v2500 = vpack.c.b16 %v1796, %v1788
    %v2501 = vpack.c.b16 %v1797, %v1789
    %v2502 = vpack.c.b16 %v1798, %v1790
    %v2503 = vpack.c.b16 %v1799, %v1791
    %v2504 = vpack.c.b16 %v1800, %v1792
    %v2505 = vpack.c.b16 %v1801, %v1793
    %v2506 = vpack.c.b16 %v1802, %v1794
    %v2507 = vpack.c.b16 %v1803, %v1795
    %v2508 = vpack.c.b16 %v1812, %v1804
    %v2509 = vpack.c.b16 %v1813, %v1805
    %v2510 = vpack.c.b16 %v1814, %v1806
    %v2511 = vpack.c.b16 %v1815, %v1807
    %v2512 = vpack.c.b16 %v1816, %v1808
    %v2513 = vpack.c.b16 %v1817, %v1809
    %v2514 = vpack.c.b16 %v1818, %v1810
    %v2515 = vpack.c.b16 %v1819, %v1811
    %v2516 = vpack.c.b16 %v1828, %v1820
    %v2517 = vpack.c.b16 %v1829, %v1821
    %v2518 = vpack.c.b16 %v1830, %v1822
    %v2519 = vpack.c.b16 %v1831, %v1823
    %v2520 = vpack.c.b16 %v1832, %v1824
    %v2521 = vpack.c.b16 %v1833, %v1825
    %v2522 = vpack.c.b16 %v1834, %v1826
    %v2523 = vpack.c.b16 %v1835, %v1827
    %v2524 = vpack.c.b16 %v1844, %v1836
    %v2525 = vpack.c.b16 %v1845, %v1837
    %v2526 = vpack.c.b16 %v1846, %v1838
    %v2527 = vpack.c.b16 %v1847, %v1839
    %v2528 = vpack.c.b16 %v1848, %v1840
    %v2529 = vpack.c.b16 %v1849, %v1841
    %v2530 = vpack.c.b16 %v1850, %v1842
    %v2531 = vpack.c.b16 %v1851, %v1843
    %v2532 = vpack.c.b16 %v1860, %v1852
    %v2533 = vpack.c.b16 %v1861, %v1853
    %v2534 = vpack.c.b16 %v1862, %v1854
    %v2535 = vpack.c.b16 %v1863, %v1855
    %v2536 = vpack.c.b16 %v1864, %v1856
    %v2537 = vpack.c.b16 %v1865, %v1857
    %v2538 = vpack.c.b16 %v1866, %v1858
    %v2539 = vpack.c.b16 %v1867, %v1859
    %v2540 = vpack.c.b16 %v1876, %v1868
    %v2541 = vpack.c.b16 %v1877, %v1869
    %v2542 = vpack.c.b16 %v1878, %v1870
    %v2543 = vpack.c.b16 %v1879, %v1871
    %v2544 = vpack.c.b16 %v1880, %v1872
    %v2545 = vpack.c.b16 %v1881, %v1873
    %v2546 = vpack.c.b16 %v1882, %v1874
    %v2547 = vpack.c.b16 %v1883, %v1875
    %v2548 = vpack.c.b16 %v1892, %v1884
    %v2549 = vpack.c.b16 %v1893, %v1885
    %v2550 = vpack.c.b16 %v1894, %v1886
    %v2551 = vpack.c.b16 %v1895, %v1887
    %v2552 = vpack.c.b16 %v1896, %v1888
    %v2553 = vpack.c.b16 %v1897, %v1889
    %v2554 = vpack.c.b16 %v1898, %v1890
    %v2555 = vpack.c.b16 %v1899, %v1891
    %v2556 = vpack.c.b16 %v1908, %v1900
    %v2557 = vpack.c.b16 %v1909, %v1901
    %v2558 = vpack.c.b16 %v1910, %v1902
    %v2559 = vpack.c.b16 %v1911, %v1903
    %v2560 = vpack.c.b16 %v1912, %v1904
    %v2561 = vpack.c.b16 %v1913, %v1905
    %v2562 = vpack.c.b16 %v1914, %v1906
    %v2563 = vpack.c.b16 %v1915, %v1907
    %v2564 = vpack.c.b16 %v1924, %v1916
    %v2565 = vpack.c.b16 %v1925, %v1917
    %v2566 = vpack.c.b16 %v1926, %v1918
    %v2567 = vpack.c.b16 %v1927, %v1919
    %v2568 = vpack.c.b16 %v1928, %v1920
    %v2569 = vpack.c.b16 %v1929, %v1921
    %v2570 = vpack.c.b16 %v1930, %v1922
    %v2571 = vpack.c.b16 %v1931, %v1923
    %v2572 = vpack.c.b16 %v1940, %v1932
    %v2573 = vpack.c.b16 %v1941, %v1933
    %v2574 = vpack.c.b16 %v1942, %v1934
    %v2575 = vpack.c.b16 %v1943, %v1935
    %v2576 = vpack.c.b16 %v1944, %v1936
    %v2577 = vpack.c.b16 %v1945, %v1937
    %v2578 = vpack.c.b16 %v1946, %v1938
    %v2579 = vpack.c.b16 %v1947, %v1939
    %v2580 = vpack.c.b16 %v1956, %v1948
    %v2581 = vpack.c.b16 %v1957, %v1949
    %v2582 = vpack.c.b16 %v1958, %v1950
    %v2583 = vpack.c.b16 %v1959, %v1951
    %v2584 = vpack.c.b16 %v1960, %v1952
    %v2585 = vpack.c.b16 %v1961, %v1953
    %v2586 = vpack.c.b16 %v1962, %v1954
    %v2587 = vpack.c.b16 %v1963, %v1955
    %v2588 = vpack.c.b16 %v1972, %v1964
    %v2589 = vpack.c.b16 %v1973, %v1965
    %v2590 = vpack.c.b16 %v1974, %v1966
    %v2591 = vpack.c.b16 %v1975, %v1967
    %v2592 = vpack.c.b16 %v1976, %v1968
    %v2593 = vpack.c.b16 %v1977, %v1969
    %v2594 = vpack.c.b16 %v1978, %v1970
    %v2595 = vpack.c.b16 %v1979, %v1971
    %v2596 = vpack.c.b16 %v1988, %v1980
    %v2597 = vpack.c.b16 %v1989, %v1981
    %v2598 = vpack.c.b16 %v1990, %v1982
    %v2599 = vpack.c.b16 %v1991, %v1983
    %v2600 = vpack.c.b16 %v1992, %v1984
    %v2601 = vpack.c.b16 %v1993, %v1985
    %v2602 = vpack.c.b16 %v1994, %v1986
    %v2603 = vpack.c.b16 %v1995, %v1987
    %v2604 = vpack.c.b16 %v2004, %v1996
    %v2605 = vpack.c.b16 %v2005, %v1997
    %v2606 = vpack.c.b16 %v2006, %v1998
    %v2607 = vpack.c.b16 %v2007, %v1999
    %v2608 = vpack.c.b16 %v2008, %v2000
    %v2609 = vpack.c.b16 %v2009, %v2001
    %v2610 = vpack.c.b16 %v2010, %v2002
    %v2611 = vpack.c.b16 %v2011, %v2003
    %v2612 = vpack.c.b16 %v2020, %v2012
    %v2613 = vpack.c.b16 %v2021, %v2013
    %v2614 = vpack.c.b16 %v2022, %v2014
    %v2615 = vpack.c.b16 %v2023, %v2015
    %v2616 = vpack.c.b16 %v2024, %v2016
    %v2617 = vpack.c.b16 %v2025, %v2017
    %v2618 = vpack.c.b16 %v2026, %v2018
    %v2619 = vpack.c.b16 %v2027, %v2019
    %v2620 = vpack.c.b16 %v2036, %v2028
    %v2621 = vpack.c.b16 %v2037, %v2029
    %v2622 = vpack.c.b16 %v2038, %v2030
    %v2623 = vpack.c.b16 %v2039, %v2031
    %v2624 = vpack.c.b16 %v2040, %v2032
    %v2625 = vpack.c.b16 %v2041, %v2033
    %v2626 = vpack.c.b16 %v2042, %v2034
    %v2627 = vpack.c.b16 %v2043, %v2035
    %v2628 = vpack.c.b16 %v2052, %v2044
    %v2629 = vpack.c.b16 %v2053, %v2045
    %v2630 = vpack.c.b16 %v2054, %v2046
    %v2631 = vpack.c.b16 %v2055, %v2047
    %v2632 = vpack.c.b16 %v2056, %v2048
    %v2633 = vpack.c.b16 %v2057, %v2049
    %v2634 = vpack.c.b16 %v2058, %v2050
    %v2635 = vpack.c.b16 %v2059, %v2051
    %v2636 = vpack.c.b16 %v2068, %v2060
    %v2637 = vpack.c.b16 %v2069, %v2061
    %v2638 = vpack.c.b16 %v2070, %v2062
    %v2639 = vpack.c.b16 %v2071, %v2063
    %v2640 = vpack.c.b16 %v2072, %v2064
    %v2641 = vpack.c.b16 %v2073, %v2065
    %v2642 = vpack.c.b16 %v2074, %v2066
    %v2643 = vpack.c.b16 %v2075, %v2067
    %v2644 = vpack.c.b16 %v2084, %v2076
    %v2645 = vpack.c.b16 %v2085, %v2077
    %v2646 = vpack.c.b16 %v2086, %v2078
    %v2647 = vpack.c.b16 %v2087, %v2079
    %v2648 = vpack.c.b16 %v2088, %v2080
    %v2649 = vpack.c.b16 %v2089, %v2081
    %v2650 = vpack.c.b16 %v2090, %v2082
    %v2651 = vpack.c.b16 %v2091, %v2083
    %v2652 = vpack.c.b16 %v2100, %v2092
    %v2653 = vpack.c.b16 %v2101, %v2093
    %v2654 = vpack.c.b16 %v2102, %v2094
    %v2655 = vpack.c.b16 %v2103, %v2095
    %v2656 = vpack.c.b16 %v2104, %v2096
    %v2657 = vpack.c.b16 %v2105, %v2097
    %v2658 = vpack.c.b16 %v2106, %v2098
    %v2659 = vpack.c.b16 %v2107, %v2099
    %v2660 = vpack.c.b16 %v2116, %v2108
    %v2661 = vpack.c.b16 %v2117, %v2109
    %v2662 = vpack.c.b16 %v2118, %v2110
    %v2663 = vpack.c.b16 %v2119, %v2111
    %v2664 = vpack.c.b16 %v2120, %v2112
    %v2665 = vpack.c.b16 %v2121, %v2113
    %v2666 = vpack.c.b16 %v2122, %v2114
    %v2667 = vpack.c.b16 %v2123, %v2115
    %v2668 = vpack.c.b16 %v2132, %v2124
    %v2669 = vpack.c.b16 %v2133, %v2125
    %v2670 = vpack.c.b16 %v2134, %v2126
    %v2671 = vpack.c.b16 %v2135, %v2127
    %v2672 = vpack.c.b16 %v2136, %v2128
    %v2673 = vpack.c.b16 %v2137, %v2129
    %v2674 = vpack.c.b16 %v2138, %v2130
    %v2675 = vpack.c.b16 %v2139, %v2131
    %v2676 = vpack.c.b16 %v2148, %v2140
    %v2677 = vpack.c.b16 %v2149, %v2141
    %v2678 = vpack.c.b16 %v2150, %v2142
    %v2679 = vpack.c.b16 %v2151, %v2143
    %v2680 = vpack.c.b16 %v2152, %v2144
    %v2681 = vpack.c.b16 %v2153, %v2145
    %v2682 = vpack.c.b16 %v2154, %v2146
    %v2683 = vpack.c.b16 %v2155, %v2147
    %v2684 = vpack.c.b16 %v2164, %v2156
    %v2685 = vpack.c.b16 %v2165, %v2157
    %v2686 = vpack.c.b16 %v2166, %v2158
    %v2687 = vpack.c.b16 %v2167, %v2159
    %v2688 = vpack.c.b16 %v2168, %v2160
    %v2689 = vpack.c.b16 %v2169, %v2161
    %v2690 = vpack.c.b16 %v2170, %v2162
    %v2691 = vpack.c.b16 %v2171, %v2163
    %v2692 = vpack.c.b16 %v2180, %v2172
    %v2693 = vpack.c.b16 %v2181, %v2173
    %v2694 = vpack.c.b16 %v2182, %v2174
    %v2695 = vpack.c.b16 %v2183, %v2175
    %v2696 = vpack.c.b16 %v2184, %v2176
    %v2697 = vpack.c.b16 %v2185, %v2177
    %v2698 = vpack.c.b16 %v2186, %v2178
    %v2699 = vpack.c.b16 %v2187, %v2179
    %3212 = vmatpush.bf16.msra.mxu0 %v2244
    %3213 = vmatpush.bf16.msra.mxu0 %v2236
    %3214 = vmatpush.bf16.msra.mxu0 %v2228
    %3215 = vmatpush.bf16.msra.mxu0 %v2220
    %3216 = vmatpush.bf16.msra.mxu0 %v2212
    %3217 = vmatpush.bf16.msra.mxu0 %v2204
    %3218 = vmatpush.bf16.msra.mxu0 %v2196
    %3219 = vmatpush.bf16.msra.mxu0 %v2188
    %3220 = vmatmul.bf16.gmra.mxu0 %v114
    %v3221 = vpop.f32.mrf.mxu0
    %v3222 = vadd.f32 %v636, %v3221
    %v3223 = vpop.f32.mrf.mxu0
    %v3224 = vadd.f32 %v636, %v3223
    %3225 = vdwg.mxu0
    %3226 = vmatpush.bf16.msra.mxu0 %v2308
    %3227 = vmatpush.bf16.msra.mxu0 %v2300
    %3228 = vmatpush.bf16.msra.mxu0 %v2292
    %3229 = vmatpush.bf16.msra.mxu0 %v2284
    %3230 = vmatpush.bf16.msra.mxu0 %v2276
    %3231 = vmatpush.bf16.msra.mxu0 %v2268
    %3232 = vmatpush.bf16.msra.mxu0 %v2260
    %3233 = vmatpush.bf16.msra.mxu0 %v2252
    %3234 = vmatmul.bf16.gmra.mxu0 %v115
    %v3235 = vpop.f32.mrf.mxu0
    %v3236 = vadd.f32 %v3222, %v3235
    %v3237 = vpop.f32.mrf.mxu0
    %v3238 = vadd.f32 %v3224, %v3237
    %3239 = vdwg.mxu0
    %3240 = vmatpush.bf16.msra.mxu0 %v2372
    %3241 = vmatpush.bf16.msra.mxu0 %v2364
    %3242 = vmatpush.bf16.msra.mxu0 %v2356
    %3243 = vmatpush.bf16.msra.mxu0 %v2348
    %3244 = vmatpush.bf16.msra.mxu0 %v2340
    %3245 = vmatpush.bf16.msra.mxu0 %v2332
    %3246 = vmatpush.bf16.msra.mxu0 %v2324
    %3247 = vmatpush.bf16.msra.mxu0 %v2316
    %3248 = vmatmul.bf16.gmra.mxu0 %v116
    %v3249 = vpop.f32.mrf.mxu0
    %v3250 = vadd.f32 %v3236, %v3249
    %v3251 = vpop.f32.mrf.mxu0
    %v3252 = vadd.f32 %v3238, %v3251
    %3253 = vdwg.mxu0
    %3254 = vmatpush.bf16.msra.mxu0 %v2436
    %3255 = vmatpush.bf16.msra.mxu0 %v2428
    %3256 = vmatpush.bf16.msra.mxu0 %v2420
    %3257 = vmatpush.bf16.msra.mxu0 %v2412
    %3258 = vmatpush.bf16.msra.mxu0 %v2404
    %3259 = vmatpush.bf16.msra.mxu0 %v2396
    %3260 = vmatpush.bf16.msra.mxu0 %v2388
    %3261 = vmatpush.bf16.msra.mxu0 %v2380
    %3262 = vmatmul.bf16.gmra.mxu0 %v117
    %v3263 = vpop.f32.mrf.mxu0
    %v3264 = vadd.f32 %v3250, %v3263
    %v3265 = vpop.f32.mrf.mxu0
    %v3266 = vadd.f32 %v3252, %v3265
    %3267 = vdwg.mxu0
    %3268 = vmatpush.bf16.msra.mxu0 %v2500
    %3269 = vmatpush.bf16.msra.mxu0 %v2492
    %3270 = vmatpush.bf16.msra.mxu0 %v2484
    %3271 = vmatpush.bf16.msra.mxu0 %v2476
    %3272 = vmatpush.bf16.msra.mxu0 %v2468
    %3273 = vmatpush.bf16.msra.mxu0 %v2460
    %3274 = vmatpush.bf16.msra.mxu0 %v2452
    %3275 = vmatpush.bf16.msra.mxu0 %v2444
    %3276 = vmatmul.bf16.gmra.mxu0 %v118
    %v3277 = vpop.f32.mrf.mxu0
    %v3278 = vadd.f32 %v3264, %v3277
    %v3279 = vpop.f32.mrf.mxu0
    %v3280 = vadd.f32 %v3266, %v3279
    %3281 = vdwg.mxu0
    %3282 = vmatpush.bf16.msra.mxu0 %v2564
    %3283 = vmatpush.bf16.msra.mxu0 %v2556
    %3284 = vmatpush.bf16.msra.mxu0 %v2548
    %3285 = vmatpush.bf16.msra.mxu0 %v2540
    %3286 = vmatpush.bf16.msra.mxu0 %v2532
    %3287 = vmatpush.bf16.msra.mxu0 %v2524
    %3288 = vmatpush.bf16.msra.mxu0 %v2516
    %3289 = vmatpush.bf16.msra.mxu0 %v2508
    %3290 = vmatmul.bf16.gmra.mxu0 %v119
    %v3291 = vpop.f32.mrf.mxu0
    %v3292 = vadd.f32 %v3278, %v3291
    %v3293 = vpop.f32.mrf.mxu0
    %v3294 = vadd.f32 %v3280, %v3293
    %3295 = vdwg.mxu0
    %3296 = vmatpush.bf16.msra.mxu0 %v2628
    %3297 = vmatpush.bf16.msra.mxu0 %v2620
    %3298 = vmatpush.bf16.msra.mxu0 %v2612
    %3299 = vmatpush.bf16.msra.mxu0 %v2604
    %3300 = vmatpush.bf16.msra.mxu0 %v2596
    %3301 = vmatpush.bf16.msra.mxu0 %v2588
    %3302 = vmatpush.bf16.msra.mxu0 %v2580
    %3303 = vmatpush.bf16.msra.mxu0 %v2572
    %3304 = vmatmul.bf16.gmra.mxu0 %v120
    %v3305 = vpop.f32.mrf.mxu0
    %v3306 = vadd.f32 %v3292, %v3305
    %v3307 = vpop.f32.mrf.mxu0
    %v3308 = vadd.f32 %v3294, %v3307
    %3309 = vdwg.mxu0
    %3310 = vmatpush.bf16.msra.mxu0 %v2692
    %3311 = vmatpush.bf16.msra.mxu0 %v2684
    %3312 = vmatpush.bf16.msra.mxu0 %v2676
    %3313 = vmatpush.bf16.msra.mxu0 %v2668
    %3314 = vmatpush.bf16.msra.mxu0 %v2660
    %3315 = vmatpush.bf16.msra.mxu0 %v2652
    %3316 = vmatpush.bf16.msra.mxu0 %v2644
    %3317 = vmatpush.bf16.msra.mxu0 %v2636
    %3318 = vmatmul.bf16.gmra.mxu0 %v121
    %v3319 = vpop.f32.mrf.mxu0
    %v3320 = vadd.f32 %v3306, %v3319
    %v3321 = vpop.f32.mrf.mxu0
    %v3322 = vadd.f32 %v3308, %v3321
    %3323 = vdwg.mxu0
    %3324 = vmatpush.bf16.msra.mxu0 %v2245
    %3325 = vmatpush.bf16.msra.mxu0 %v2237
    %3326 = vmatpush.bf16.msra.mxu0 %v2229
    %3327 = vmatpush.bf16.msra.mxu0 %v2221
    %3328 = vmatpush.bf16.msra.mxu0 %v2213
    %3329 = vmatpush.bf16.msra.mxu0 %v2205
    %3330 = vmatpush.bf16.msra.mxu0 %v2197
    %3331 = vmatpush.bf16.msra.mxu0 %v2189
    %3332 = vmatmul.bf16.gmra.mxu0 %v114
    %v3333 = vpop.f32.mrf.mxu0
    %v3334 = vadd.f32 %v637, %v3333
    %v3335 = vpop.f32.mrf.mxu0
    %v3336 = vadd.f32 %v637, %v3335
    %3337 = vdwg.mxu0
    %3338 = vmatpush.bf16.msra.mxu0 %v2309
    %3339 = vmatpush.bf16.msra.mxu0 %v2301
    %3340 = vmatpush.bf16.msra.mxu0 %v2293
    %3341 = vmatpush.bf16.msra.mxu0 %v2285
    %3342 = vmatpush.bf16.msra.mxu0 %v2277
    %3343 = vmatpush.bf16.msra.mxu0 %v2269
    %3344 = vmatpush.bf16.msra.mxu0 %v2261
    %3345 = vmatpush.bf16.msra.mxu0 %v2253
    %3346 = vmatmul.bf16.gmra.mxu0 %v115
    %v3347 = vpop.f32.mrf.mxu0
    %v3348 = vadd.f32 %v3334, %v3347
    %v3349 = vpop.f32.mrf.mxu0
    %v3350 = vadd.f32 %v3336, %v3349
    %3351 = vdwg.mxu0
    %3352 = vmatpush.bf16.msra.mxu0 %v2373
    %3353 = vmatpush.bf16.msra.mxu0 %v2365
    %3354 = vmatpush.bf16.msra.mxu0 %v2357
    %3355 = vmatpush.bf16.msra.mxu0 %v2349
    %3356 = vmatpush.bf16.msra.mxu0 %v2341
    %3357 = vmatpush.bf16.msra.mxu0 %v2333
    %3358 = vmatpush.bf16.msra.mxu0 %v2325
    %3359 = vmatpush.bf16.msra.mxu0 %v2317
    %3360 = vmatmul.bf16.gmra.mxu0 %v116
    %v3361 = vpop.f32.mrf.mxu0
    %v3362 = vadd.f32 %v3348, %v3361
    %v3363 = vpop.f32.mrf.mxu0
    %v3364 = vadd.f32 %v3350, %v3363
    %3365 = vdwg.mxu0
    %3366 = vmatpush.bf16.msra.mxu0 %v2437
    %3367 = vmatpush.bf16.msra.mxu0 %v2429
    %3368 = vmatpush.bf16.msra.mxu0 %v2421
    %3369 = vmatpush.bf16.msra.mxu0 %v2413
    %3370 = vmatpush.bf16.msra.mxu0 %v2405
    %3371 = vmatpush.bf16.msra.mxu0 %v2397
    %3372 = vmatpush.bf16.msra.mxu0 %v2389
    %3373 = vmatpush.bf16.msra.mxu0 %v2381
    %3374 = vmatmul.bf16.gmra.mxu0 %v117
    %v3375 = vpop.f32.mrf.mxu0
    %v3376 = vadd.f32 %v3362, %v3375
    %v3377 = vpop.f32.mrf.mxu0
    %v3378 = vadd.f32 %v3364, %v3377
    %3379 = vdwg.mxu0
    %3380 = vmatpush.bf16.msra.mxu0 %v2501
    %3381 = vmatpush.bf16.msra.mxu0 %v2493
    %3382 = vmatpush.bf16.msra.mxu0 %v2485
    %3383 = vmatpush.bf16.msra.mxu0 %v2477
    %3384 = vmatpush.bf16.msra.mxu0 %v2469
    %3385 = vmatpush.bf16.msra.mxu0 %v2461
    %3386 = vmatpush.bf16.msra.mxu0 %v2453
    %3387 = vmatpush.bf16.msra.mxu0 %v2445
    %3388 = vmatmul.bf16.gmra.mxu0 %v118
    %v3389 = vpop.f32.mrf.mxu0
    %v3390 = vadd.f32 %v3376, %v3389
    %v3391 = vpop.f32.mrf.mxu0
    %v3392 = vadd.f32 %v3378, %v3391
    %3393 = vdwg.mxu0
    %3394 = vmatpush.bf16.msra.mxu0 %v2565
    %3395 = vmatpush.bf16.msra.mxu0 %v2557
    %3396 = vmatpush.bf16.msra.mxu0 %v2549
    %3397 = vmatpush.bf16.msra.mxu0 %v2541
    %3398 = vmatpush.bf16.msra.mxu0 %v2533
    %3399 = vmatpush.bf16.msra.mxu0 %v2525
    %3400 = vmatpush.bf16.msra.mxu0 %v2517
    %3401 = vmatpush.bf16.msra.mxu0 %v2509
    %3402 = vmatmul.bf16.gmra.mxu0 %v119
    %v3403 = vpop.f32.mrf.mxu0
    %v3404 = vadd.f32 %v3390, %v3403
    %v3405 = vpop.f32.mrf.mxu0
    %v3406 = vadd.f32 %v3392, %v3405
    %3407 = vdwg.mxu0
    %3408 = vmatpush.bf16.msra.mxu0 %v2629
    %3409 = vmatpush.bf16.msra.mxu0 %v2621
    %3410 = vmatpush.bf16.msra.mxu0 %v2613
    %3411 = vmatpush.bf16.msra.mxu0 %v2605
    %3412 = vmatpush.bf16.msra.mxu0 %v2597
    %3413 = vmatpush.bf16.msra.mxu0 %v2589
    %3414 = vmatpush.bf16.msra.mxu0 %v2581
    %3415 = vmatpush.bf16.msra.mxu0 %v2573
    %3416 = vmatmul.bf16.gmra.mxu0 %v120
    %v3417 = vpop.f32.mrf.mxu0
    %v3418 = vadd.f32 %v3404, %v3417
    %v3419 = vpop.f32.mrf.mxu0
    %v3420 = vadd.f32 %v3406, %v3419
    %3421 = vdwg.mxu0
    %3422 = vmatpush.bf16.msra.mxu0 %v2693
    %3423 = vmatpush.bf16.msra.mxu0 %v2685
    %3424 = vmatpush.bf16.msra.mxu0 %v2677
    %3425 = vmatpush.bf16.msra.mxu0 %v2669
    %3426 = vmatpush.bf16.msra.mxu0 %v2661
    %3427 = vmatpush.bf16.msra.mxu0 %v2653
    %3428 = vmatpush.bf16.msra.mxu0 %v2645
    %3429 = vmatpush.bf16.msra.mxu0 %v2637
    %3430 = vmatmul.bf16.gmra.mxu0 %v121
    %v3431 = vpop.f32.mrf.mxu0
    %v3432 = vadd.f32 %v3418, %v3431
    %v3433 = vpop.f32.mrf.mxu0
    %v3434 = vadd.f32 %v3420, %v3433
    %3435 = vdwg.mxu0
    %3436 = vmatpush.bf16.msra.mxu0 %v2246
    %3437 = vmatpush.bf16.msra.mxu0 %v2238
    %3438 = vmatpush.bf16.msra.mxu0 %v2230
    %3439 = vmatpush.bf16.msra.mxu0 %v2222
    %3440 = vmatpush.bf16.msra.mxu0 %v2214
    %3441 = vmatpush.bf16.msra.mxu0 %v2206
    %3442 = vmatpush.bf16.msra.mxu0 %v2198
    %3443 = vmatpush.bf16.msra.mxu0 %v2190
    %3444 = vmatmul.bf16.gmra.mxu0 %v114
    %v3445 = vpop.f32.mrf.mxu0
    %v3446 = vadd.f32 %v638, %v3445
    %v3447 = vpop.f32.mrf.mxu0
    %v3448 = vadd.f32 %v638, %v3447
    %3449 = vdwg.mxu0
    %3450 = vmatpush.bf16.msra.mxu0 %v2310
    %3451 = vmatpush.bf16.msra.mxu0 %v2302
    %3452 = vmatpush.bf16.msra.mxu0 %v2294
    %3453 = vmatpush.bf16.msra.mxu0 %v2286
    %3454 = vmatpush.bf16.msra.mxu0 %v2278
    %3455 = vmatpush.bf16.msra.mxu0 %v2270
    %3456 = vmatpush.bf16.msra.mxu0 %v2262
    %3457 = vmatpush.bf16.msra.mxu0 %v2254
    %3458 = vmatmul.bf16.gmra.mxu0 %v115
    %v3459 = vpop.f32.mrf.mxu0
    %v3460 = vadd.f32 %v3446, %v3459
    %v3461 = vpop.f32.mrf.mxu0
    %v3462 = vadd.f32 %v3448, %v3461
    %3463 = vdwg.mxu0
    %3464 = vmatpush.bf16.msra.mxu0 %v2374
    %3465 = vmatpush.bf16.msra.mxu0 %v2366
    %3466 = vmatpush.bf16.msra.mxu0 %v2358
    %3467 = vmatpush.bf16.msra.mxu0 %v2350
    %3468 = vmatpush.bf16.msra.mxu0 %v2342
    %3469 = vmatpush.bf16.msra.mxu0 %v2334
    %3470 = vmatpush.bf16.msra.mxu0 %v2326
    %3471 = vmatpush.bf16.msra.mxu0 %v2318
    %3472 = vmatmul.bf16.gmra.mxu0 %v116
    %v3473 = vpop.f32.mrf.mxu0
    %v3474 = vadd.f32 %v3460, %v3473
    %v3475 = vpop.f32.mrf.mxu0
    %v3476 = vadd.f32 %v3462, %v3475
    %3477 = vdwg.mxu0
    %3478 = vmatpush.bf16.msra.mxu0 %v2438
    %3479 = vmatpush.bf16.msra.mxu0 %v2430
    %3480 = vmatpush.bf16.msra.mxu0 %v2422
    %3481 = vmatpush.bf16.msra.mxu0 %v2414
    %3482 = vmatpush.bf16.msra.mxu0 %v2406
    %3483 = vmatpush.bf16.msra.mxu0 %v2398
    %3484 = vmatpush.bf16.msra.mxu0 %v2390
    %3485 = vmatpush.bf16.msra.mxu0 %v2382
    %3486 = vmatmul.bf16.gmra.mxu0 %v117
    %v3487 = vpop.f32.mrf.mxu0
    %v3488 = vadd.f32 %v3474, %v3487
    %v3489 = vpop.f32.mrf.mxu0
    %v3490 = vadd.f32 %v3476, %v3489
    %3491 = vdwg.mxu0
    %3492 = vmatpush.bf16.msra.mxu0 %v2502
    %3493 = vmatpush.bf16.msra.mxu0 %v2494
    %3494 = vmatpush.bf16.msra.mxu0 %v2486
    %3495 = vmatpush.bf16.msra.mxu0 %v2478
    %3496 = vmatpush.bf16.msra.mxu0 %v2470
    %3497 = vmatpush.bf16.msra.mxu0 %v2462
    %3498 = vmatpush.bf16.msra.mxu0 %v2454
    %3499 = vmatpush.bf16.msra.mxu0 %v2446
    %3500 = vmatmul.bf16.gmra.mxu0 %v118
    %v3501 = vpop.f32.mrf.mxu0
    %v3502 = vadd.f32 %v3488, %v3501
    %v3503 = vpop.f32.mrf.mxu0
    %v3504 = vadd.f32 %v3490, %v3503
    %3505 = vdwg.mxu0
    %3506 = vmatpush.bf16.msra.mxu0 %v2566
    %3507 = vmatpush.bf16.msra.mxu0 %v2558
    %3508 = vmatpush.bf16.msra.mxu0 %v2550
    %3509 = vmatpush.bf16.msra.mxu0 %v2542
    %3510 = vmatpush.bf16.msra.mxu0 %v2534
    %3511 = vmatpush.bf16.msra.mxu0 %v2526
    %3512 = vmatpush.bf16.msra.mxu0 %v2518
    %3513 = vmatpush.bf16.msra.mxu0 %v2510
    %3514 = vmatmul.bf16.gmra.mxu0 %v119
    %v3515 = vpop.f32.mrf.mxu0
    %v3516 = vadd.f32 %v3502, %v3515
    %v3517 = vpop.f32.mrf.mxu0
    %v3518 = vadd.f32 %v3504, %v3517
    %3519 = vdwg.mxu0
    %3520 = vmatpush.bf16.msra.mxu0 %v2630
    %3521 = vmatpush.bf16.msra.mxu0 %v2622
    %3522 = vmatpush.bf16.msra.mxu0 %v2614
    %3523 = vmatpush.bf16.msra.mxu0 %v2606
    %3524 = vmatpush.bf16.msra.mxu0 %v2598
    %3525 = vmatpush.bf16.msra.mxu0 %v2590
    %3526 = vmatpush.bf16.msra.mxu0 %v2582
    %3527 = vmatpush.bf16.msra.mxu0 %v2574
    %3528 = vmatmul.bf16.gmra.mxu0 %v120
    %v3529 = vpop.f32.mrf.mxu0
    %v3530 = vadd.f32 %v3516, %v3529
    %v3531 = vpop.f32.mrf.mxu0
    %v3532 = vadd.f32 %v3518, %v3531
    %3533 = vdwg.mxu0
    %3534 = vmatpush.bf16.msra.mxu0 %v2694
    %3535 = vmatpush.bf16.msra.mxu0 %v2686
    %3536 = vmatpush.bf16.msra.mxu0 %v2678
    %3537 = vmatpush.bf16.msra.mxu0 %v2670
    %3538 = vmatpush.bf16.msra.mxu0 %v2662
    %3539 = vmatpush.bf16.msra.mxu0 %v2654
    %3540 = vmatpush.bf16.msra.mxu0 %v2646
    %3541 = vmatpush.bf16.msra.mxu0 %v2638
    %3542 = vmatmul.bf16.gmra.mxu0 %v121
    %v3543 = vpop.f32.mrf.mxu0
    %v3544 = vadd.f32 %v3530, %v3543
    %v3545 = vpop.f32.mrf.mxu0
    %v3546 = vadd.f32 %v3532, %v3545
    %3547 = vdwg.mxu0
    %3548 = vmatpush.bf16.msra.mxu0 %v2247
    %3549 = vmatpush.bf16.msra.mxu0 %v2239
    %3550 = vmatpush.bf16.msra.mxu0 %v2231
    %3551 = vmatpush.bf16.msra.mxu0 %v2223
    %3552 = vmatpush.bf16.msra.mxu0 %v2215
    %3553 = vmatpush.bf16.msra.mxu0 %v2207
    %3554 = vmatpush.bf16.msra.mxu0 %v2199
    %3555 = vmatpush.bf16.msra.mxu0 %v2191
    %3556 = vmatmul.bf16.gmra.mxu0 %v114
    %v3557 = vpop.f32.mrf.mxu0
    %v3558 = vadd.f32 %v639, %v3557
    %v3559 = vpop.f32.mrf.mxu0
    %v3560 = vadd.f32 %v639, %v3559
    %3561 = vdwg.mxu0
    %3562 = vmatpush.bf16.msra.mxu0 %v2311
    %3563 = vmatpush.bf16.msra.mxu0 %v2303
    %3564 = vmatpush.bf16.msra.mxu0 %v2295
    %3565 = vmatpush.bf16.msra.mxu0 %v2287
    %3566 = vmatpush.bf16.msra.mxu0 %v2279
    %3567 = vmatpush.bf16.msra.mxu0 %v2271
    %3568 = vmatpush.bf16.msra.mxu0 %v2263
    %3569 = vmatpush.bf16.msra.mxu0 %v2255
    %3570 = vmatmul.bf16.gmra.mxu0 %v115
    %v3571 = vpop.f32.mrf.mxu0
    %v3572 = vadd.f32 %v3558, %v3571
    %v3573 = vpop.f32.mrf.mxu0
    %v3574 = vadd.f32 %v3560, %v3573
    %3575 = vdwg.mxu0
    %3576 = vmatpush.bf16.msra.mxu0 %v2375
    %3577 = vmatpush.bf16.msra.mxu0 %v2367
    %3578 = vmatpush.bf16.msra.mxu0 %v2359
    %3579 = vmatpush.bf16.msra.mxu0 %v2351
    %3580 = vmatpush.bf16.msra.mxu0 %v2343
    %3581 = vmatpush.bf16.msra.mxu0 %v2335
    %3582 = vmatpush.bf16.msra.mxu0 %v2327
    %3583 = vmatpush.bf16.msra.mxu0 %v2319
    %3584 = vmatmul.bf16.gmra.mxu0 %v116
    %v3585 = vpop.f32.mrf.mxu0
    %v3586 = vadd.f32 %v3572, %v3585
    %v3587 = vpop.f32.mrf.mxu0
    %v3588 = vadd.f32 %v3574, %v3587
    %3589 = vdwg.mxu0
    %3590 = vmatpush.bf16.msra.mxu0 %v2439
    %3591 = vmatpush.bf16.msra.mxu0 %v2431
    %3592 = vmatpush.bf16.msra.mxu0 %v2423
    %3593 = vmatpush.bf16.msra.mxu0 %v2415
    %3594 = vmatpush.bf16.msra.mxu0 %v2407
    %3595 = vmatpush.bf16.msra.mxu0 %v2399
    %3596 = vmatpush.bf16.msra.mxu0 %v2391
    %3597 = vmatpush.bf16.msra.mxu0 %v2383
    %3598 = vmatmul.bf16.gmra.mxu0 %v117
    %v3599 = vpop.f32.mrf.mxu0
    %v3600 = vadd.f32 %v3586, %v3599
    %v3601 = vpop.f32.mrf.mxu0
    %v3602 = vadd.f32 %v3588, %v3601
    %3603 = vdwg.mxu0
    %3604 = vmatpush.bf16.msra.mxu0 %v2503
    %3605 = vmatpush.bf16.msra.mxu0 %v2495
    %3606 = vmatpush.bf16.msra.mxu0 %v2487
    %3607 = vmatpush.bf16.msra.mxu0 %v2479
    %3608 = vmatpush.bf16.msra.mxu0 %v2471
    %3609 = vmatpush.bf16.msra.mxu0 %v2463
    %3610 = vmatpush.bf16.msra.mxu0 %v2455
    %3611 = vmatpush.bf16.msra.mxu0 %v2447
    %3612 = vmatmul.bf16.gmra.mxu0 %v118
    %v3613 = vpop.f32.mrf.mxu0
    %v3614 = vadd.f32 %v3600, %v3613
    %v3615 = vpop.f32.mrf.mxu0
    %v3616 = vadd.f32 %v3602, %v3615
    %3617 = vdwg.mxu0
    %3618 = vmatpush.bf16.msra.mxu0 %v2567
    %3619 = vmatpush.bf16.msra.mxu0 %v2559
    %3620 = vmatpush.bf16.msra.mxu0 %v2551
    %3621 = vmatpush.bf16.msra.mxu0 %v2543
    %3622 = vmatpush.bf16.msra.mxu0 %v2535
    %3623 = vmatpush.bf16.msra.mxu0 %v2527
    %3624 = vmatpush.bf16.msra.mxu0 %v2519
    %3625 = vmatpush.bf16.msra.mxu0 %v2511
    %3626 = vmatmul.bf16.gmra.mxu0 %v119
    %v3627 = vpop.f32.mrf.mxu0
    %v3628 = vadd.f32 %v3614, %v3627
    %v3629 = vpop.f32.mrf.mxu0
    %v3630 = vadd.f32 %v3616, %v3629
    %3631 = vdwg.mxu0
    %3632 = vmatpush.bf16.msra.mxu0 %v2631
    %3633 = vmatpush.bf16.msra.mxu0 %v2623
    %3634 = vmatpush.bf16.msra.mxu0 %v2615
    %3635 = vmatpush.bf16.msra.mxu0 %v2607
    %3636 = vmatpush.bf16.msra.mxu0 %v2599
    %3637 = vmatpush.bf16.msra.mxu0 %v2591
    %3638 = vmatpush.bf16.msra.mxu0 %v2583
    %3639 = vmatpush.bf16.msra.mxu0 %v2575
    %3640 = vmatmul.bf16.gmra.mxu0 %v120
    %v3641 = vpop.f32.mrf.mxu0
    %v3642 = vadd.f32 %v3628, %v3641
    %v3643 = vpop.f32.mrf.mxu0
    %v3644 = vadd.f32 %v3630, %v3643
    %3645 = vdwg.mxu0
    %3646 = vmatpush.bf16.msra.mxu0 %v2695
    %3647 = vmatpush.bf16.msra.mxu0 %v2687
    %3648 = vmatpush.bf16.msra.mxu0 %v2679
    %3649 = vmatpush.bf16.msra.mxu0 %v2671
    %3650 = vmatpush.bf16.msra.mxu0 %v2663
    %3651 = vmatpush.bf16.msra.mxu0 %v2655
    %3652 = vmatpush.bf16.msra.mxu0 %v2647
    %3653 = vmatpush.bf16.msra.mxu0 %v2639
    %3654 = vmatmul.bf16.gmra.mxu0 %v121
    %v3655 = vpop.f32.mrf.mxu0
    %v3656 = vadd.f32 %v3642, %v3655
    %v3657 = vpop.f32.mrf.mxu0
    %v3658 = vadd.f32 %v3644, %v3657
    %3659 = vdwg.mxu0
    %3660 = vmatpush.bf16.msra.mxu0 %v2248
    %3661 = vmatpush.bf16.msra.mxu0 %v2240
    %3662 = vmatpush.bf16.msra.mxu0 %v2232
    %3663 = vmatpush.bf16.msra.mxu0 %v2224
    %3664 = vmatpush.bf16.msra.mxu0 %v2216
    %3665 = vmatpush.bf16.msra.mxu0 %v2208
    %3666 = vmatpush.bf16.msra.mxu0 %v2200
    %3667 = vmatpush.bf16.msra.mxu0 %v2192
    %3668 = vmatmul.bf16.gmra.mxu0 %v114
    %v3669 = vpop.f32.mrf.mxu0
    %v3670 = vadd.f32 %v640, %v3669
    %v3671 = vpop.f32.mrf.mxu0
    %v3672 = vadd.f32 %v640, %v3671
    %3673 = vdwg.mxu0
    %3674 = vmatpush.bf16.msra.mxu0 %v2312
    %3675 = vmatpush.bf16.msra.mxu0 %v2304
    %3676 = vmatpush.bf16.msra.mxu0 %v2296
    %3677 = vmatpush.bf16.msra.mxu0 %v2288
    %3678 = vmatpush.bf16.msra.mxu0 %v2280
    %3679 = vmatpush.bf16.msra.mxu0 %v2272
    %3680 = vmatpush.bf16.msra.mxu0 %v2264
    %3681 = vmatpush.bf16.msra.mxu0 %v2256
    %3682 = vmatmul.bf16.gmra.mxu0 %v115
    %v3683 = vpop.f32.mrf.mxu0
    %v3684 = vadd.f32 %v3670, %v3683
    %v3685 = vpop.f32.mrf.mxu0
    %v3686 = vadd.f32 %v3672, %v3685
    %3687 = vdwg.mxu0
    %3688 = vmatpush.bf16.msra.mxu0 %v2376
    %3689 = vmatpush.bf16.msra.mxu0 %v2368
    %3690 = vmatpush.bf16.msra.mxu0 %v2360
    %3691 = vmatpush.bf16.msra.mxu0 %v2352
    %3692 = vmatpush.bf16.msra.mxu0 %v2344
    %3693 = vmatpush.bf16.msra.mxu0 %v2336
    %3694 = vmatpush.bf16.msra.mxu0 %v2328
    %3695 = vmatpush.bf16.msra.mxu0 %v2320
    %3696 = vmatmul.bf16.gmra.mxu0 %v116
    %v3697 = vpop.f32.mrf.mxu0
    %v3698 = vadd.f32 %v3684, %v3697
    %v3699 = vpop.f32.mrf.mxu0
    %v3700 = vadd.f32 %v3686, %v3699
    %3701 = vdwg.mxu0
    %3702 = vmatpush.bf16.msra.mxu0 %v2440
    %3703 = vmatpush.bf16.msra.mxu0 %v2432
    %3704 = vmatpush.bf16.msra.mxu0 %v2424
    %3705 = vmatpush.bf16.msra.mxu0 %v2416
    %3706 = vmatpush.bf16.msra.mxu0 %v2408
    %3707 = vmatpush.bf16.msra.mxu0 %v2400
    %3708 = vmatpush.bf16.msra.mxu0 %v2392
    %3709 = vmatpush.bf16.msra.mxu0 %v2384
    %3710 = vmatmul.bf16.gmra.mxu0 %v117
    %v3711 = vpop.f32.mrf.mxu0
    %v3712 = vadd.f32 %v3698, %v3711
    %v3713 = vpop.f32.mrf.mxu0
    %v3714 = vadd.f32 %v3700, %v3713
    %3715 = vdwg.mxu0
    %3716 = vmatpush.bf16.msra.mxu0 %v2504
    %3717 = vmatpush.bf16.msra.mxu0 %v2496
    %3718 = vmatpush.bf16.msra.mxu0 %v2488
    %3719 = vmatpush.bf16.msra.mxu0 %v2480
    %3720 = vmatpush.bf16.msra.mxu0 %v2472
    %3721 = vmatpush.bf16.msra.mxu0 %v2464
    %3722 = vmatpush.bf16.msra.mxu0 %v2456
    %3723 = vmatpush.bf16.msra.mxu0 %v2448
    %3724 = vmatmul.bf16.gmra.mxu0 %v118
    %v3725 = vpop.f32.mrf.mxu0
    %v3726 = vadd.f32 %v3712, %v3725
    %v3727 = vpop.f32.mrf.mxu0
    %v3728 = vadd.f32 %v3714, %v3727
    %3729 = vdwg.mxu0
    %3730 = vmatpush.bf16.msra.mxu0 %v2568
    %3731 = vmatpush.bf16.msra.mxu0 %v2560
    %3732 = vmatpush.bf16.msra.mxu0 %v2552
    %3733 = vmatpush.bf16.msra.mxu0 %v2544
    %3734 = vmatpush.bf16.msra.mxu0 %v2536
    %3735 = vmatpush.bf16.msra.mxu0 %v2528
    %3736 = vmatpush.bf16.msra.mxu0 %v2520
    %3737 = vmatpush.bf16.msra.mxu0 %v2512
    %3738 = vmatmul.bf16.gmra.mxu0 %v119
    %v3739 = vpop.f32.mrf.mxu0
    %v3740 = vadd.f32 %v3726, %v3739
    %v3741 = vpop.f32.mrf.mxu0
    %v3742 = vadd.f32 %v3728, %v3741
    %3743 = vdwg.mxu0
    %3744 = vmatpush.bf16.msra.mxu0 %v2632
    %3745 = vmatpush.bf16.msra.mxu0 %v2624
    %3746 = vmatpush.bf16.msra.mxu0 %v2616
    %3747 = vmatpush.bf16.msra.mxu0 %v2608
    %3748 = vmatpush.bf16.msra.mxu0 %v2600
    %3749 = vmatpush.bf16.msra.mxu0 %v2592
    %3750 = vmatpush.bf16.msra.mxu0 %v2584
    %3751 = vmatpush.bf16.msra.mxu0 %v2576
    %3752 = vmatmul.bf16.gmra.mxu0 %v120
    %v3753 = vpop.f32.mrf.mxu0
    %v3754 = vadd.f32 %v3740, %v3753
    %v3755 = vpop.f32.mrf.mxu0
    %v3756 = vadd.f32 %v3742, %v3755
    %3757 = vdwg.mxu0
    %3758 = vmatpush.bf16.msra.mxu0 %v2696
    %3759 = vmatpush.bf16.msra.mxu0 %v2688
    %3760 = vmatpush.bf16.msra.mxu0 %v2680
    %3761 = vmatpush.bf16.msra.mxu0 %v2672
    %3762 = vmatpush.bf16.msra.mxu0 %v2664
    %3763 = vmatpush.bf16.msra.mxu0 %v2656
    %3764 = vmatpush.bf16.msra.mxu0 %v2648
    %3765 = vmatpush.bf16.msra.mxu0 %v2640
    %3766 = vmatmul.bf16.gmra.mxu0 %v121
    %v3767 = vpop.f32.mrf.mxu0
    %v3768 = vadd.f32 %v3754, %v3767
    %v3769 = vpop.f32.mrf.mxu0
    %v3770 = vadd.f32 %v3756, %v3769
    %3771 = vdwg.mxu0
    %3772 = vmatpush.bf16.msra.mxu0 %v2249
    %3773 = vmatpush.bf16.msra.mxu0 %v2241
    %3774 = vmatpush.bf16.msra.mxu0 %v2233
    %3775 = vmatpush.bf16.msra.mxu0 %v2225
    %3776 = vmatpush.bf16.msra.mxu0 %v2217
    %3777 = vmatpush.bf16.msra.mxu0 %v2209
    %3778 = vmatpush.bf16.msra.mxu0 %v2201
    %3779 = vmatpush.bf16.msra.mxu0 %v2193
    %3780 = vmatmul.bf16.gmra.mxu0 %v114
    %v3781 = vpop.f32.mrf.mxu0
    %v3782 = vadd.f32 %v641, %v3781
    %v3783 = vpop.f32.mrf.mxu0
    %v3784 = vadd.f32 %v641, %v3783
    %3785 = vdwg.mxu0
    %3786 = vmatpush.bf16.msra.mxu0 %v2313
    %3787 = vmatpush.bf16.msra.mxu0 %v2305
    %3788 = vmatpush.bf16.msra.mxu0 %v2297
    %3789 = vmatpush.bf16.msra.mxu0 %v2289
    %3790 = vmatpush.bf16.msra.mxu0 %v2281
    %3791 = vmatpush.bf16.msra.mxu0 %v2273
    %3792 = vmatpush.bf16.msra.mxu0 %v2265
    %3793 = vmatpush.bf16.msra.mxu0 %v2257
    %3794 = vmatmul.bf16.gmra.mxu0 %v115
    %v3795 = vpop.f32.mrf.mxu0
    %v3796 = vadd.f32 %v3782, %v3795
    %v3797 = vpop.f32.mrf.mxu0
    %v3798 = vadd.f32 %v3784, %v3797
    %3799 = vdwg.mxu0
    %3800 = vmatpush.bf16.msra.mxu0 %v2377
    %3801 = vmatpush.bf16.msra.mxu0 %v2369
    %3802 = vmatpush.bf16.msra.mxu0 %v2361
    %3803 = vmatpush.bf16.msra.mxu0 %v2353
    %3804 = vmatpush.bf16.msra.mxu0 %v2345
    %3805 = vmatpush.bf16.msra.mxu0 %v2337
    %3806 = vmatpush.bf16.msra.mxu0 %v2329
    %3807 = vmatpush.bf16.msra.mxu0 %v2321
    %3808 = vmatmul.bf16.gmra.mxu0 %v116
    %v3809 = vpop.f32.mrf.mxu0
    %v3810 = vadd.f32 %v3796, %v3809
    %v3811 = vpop.f32.mrf.mxu0
    %v3812 = vadd.f32 %v3798, %v3811
    %3813 = vdwg.mxu0
    %3814 = vmatpush.bf16.msra.mxu0 %v2441
    %3815 = vmatpush.bf16.msra.mxu0 %v2433
    %3816 = vmatpush.bf16.msra.mxu0 %v2425
    %3817 = vmatpush.bf16.msra.mxu0 %v2417
    %3818 = vmatpush.bf16.msra.mxu0 %v2409
    %3819 = vmatpush.bf16.msra.mxu0 %v2401
    %3820 = vmatpush.bf16.msra.mxu0 %v2393
    %3821 = vmatpush.bf16.msra.mxu0 %v2385
    %3822 = vmatmul.bf16.gmra.mxu0 %v117
    %v3823 = vpop.f32.mrf.mxu0
    %v3824 = vadd.f32 %v3810, %v3823
    %v3825 = vpop.f32.mrf.mxu0
    %v3826 = vadd.f32 %v3812, %v3825
    %3827 = vdwg.mxu0
    %3828 = vmatpush.bf16.msra.mxu0 %v2505
    %3829 = vmatpush.bf16.msra.mxu0 %v2497
    %3830 = vmatpush.bf16.msra.mxu0 %v2489
    %3831 = vmatpush.bf16.msra.mxu0 %v2481
    %3832 = vmatpush.bf16.msra.mxu0 %v2473
    %3833 = vmatpush.bf16.msra.mxu0 %v2465
    %3834 = vmatpush.bf16.msra.mxu0 %v2457
    %3835 = vmatpush.bf16.msra.mxu0 %v2449
    %3836 = vmatmul.bf16.gmra.mxu0 %v118
    %v3837 = vpop.f32.mrf.mxu0
    %v3838 = vadd.f32 %v3824, %v3837
    %v3839 = vpop.f32.mrf.mxu0
    %v3840 = vadd.f32 %v3826, %v3839
    %3841 = vdwg.mxu0
    %3842 = vmatpush.bf16.msra.mxu0 %v2569
    %3843 = vmatpush.bf16.msra.mxu0 %v2561
    %3844 = vmatpush.bf16.msra.mxu0 %v2553
    %3845 = vmatpush.bf16.msra.mxu0 %v2545
    %3846 = vmatpush.bf16.msra.mxu0 %v2537
    %3847 = vmatpush.bf16.msra.mxu0 %v2529
    %3848 = vmatpush.bf16.msra.mxu0 %v2521
    %3849 = vmatpush.bf16.msra.mxu0 %v2513
    %3850 = vmatmul.bf16.gmra.mxu0 %v119
    %v3851 = vpop.f32.mrf.mxu0
    %v3852 = vadd.f32 %v3838, %v3851
    %v3853 = vpop.f32.mrf.mxu0
    %v3854 = vadd.f32 %v3840, %v3853
    %3855 = vdwg.mxu0
    %3856 = vmatpush.bf16.msra.mxu0 %v2633
    %3857 = vmatpush.bf16.msra.mxu0 %v2625
    %3858 = vmatpush.bf16.msra.mxu0 %v2617
    %3859 = vmatpush.bf16.msra.mxu0 %v2609
    %3860 = vmatpush.bf16.msra.mxu0 %v2601
    %3861 = vmatpush.bf16.msra.mxu0 %v2593
    %3862 = vmatpush.bf16.msra.mxu0 %v2585
    %3863 = vmatpush.bf16.msra.mxu0 %v2577
    %3864 = vmatmul.bf16.gmra.mxu0 %v120
    %v3865 = vpop.f32.mrf.mxu0
    %v3866 = vadd.f32 %v3852, %v3865
    %v3867 = vpop.f32.mrf.mxu0
    %v3868 = vadd.f32 %v3854, %v3867
    %3869 = vdwg.mxu0
    %3870 = vmatpush.bf16.msra.mxu0 %v2697
    %3871 = vmatpush.bf16.msra.mxu0 %v2689
    %3872 = vmatpush.bf16.msra.mxu0 %v2681
    %3873 = vmatpush.bf16.msra.mxu0 %v2673
    %3874 = vmatpush.bf16.msra.mxu0 %v2665
    %3875 = vmatpush.bf16.msra.mxu0 %v2657
    %3876 = vmatpush.bf16.msra.mxu0 %v2649
    %3877 = vmatpush.bf16.msra.mxu0 %v2641
    %3878 = vmatmul.bf16.gmra.mxu0 %v121
    %v3879 = vpop.f32.mrf.mxu0
    %v3880 = vadd.f32 %v3866, %v3879
    %v3881 = vpop.f32.mrf.mxu0
    %v3882 = vadd.f32 %v3868, %v3881
    %3883 = vdwg.mxu0
    %3884 = vmatpush.bf16.msra.mxu0 %v2250
    %3885 = vmatpush.bf16.msra.mxu0 %v2242
    %3886 = vmatpush.bf16.msra.mxu0 %v2234
    %3887 = vmatpush.bf16.msra.mxu0 %v2226
    %3888 = vmatpush.bf16.msra.mxu0 %v2218
    %3889 = vmatpush.bf16.msra.mxu0 %v2210
    %3890 = vmatpush.bf16.msra.mxu0 %v2202
    %3891 = vmatpush.bf16.msra.mxu0 %v2194
    %3892 = vmatmul.bf16.gmra.mxu0 %v114
    %v3893 = vpop.f32.mrf.mxu0
    %v3894 = vadd.f32 %v642, %v3893
    %v3895 = vpop.f32.mrf.mxu0
    %v3896 = vadd.f32 %v642, %v3895
    %3897 = vdwg.mxu0
    %3898 = vmatpush.bf16.msra.mxu0 %v2314
    %3899 = vmatpush.bf16.msra.mxu0 %v2306
    %3900 = vmatpush.bf16.msra.mxu0 %v2298
    %3901 = vmatpush.bf16.msra.mxu0 %v2290
    %3902 = vmatpush.bf16.msra.mxu0 %v2282
    %3903 = vmatpush.bf16.msra.mxu0 %v2274
    %3904 = vmatpush.bf16.msra.mxu0 %v2266
    %3905 = vmatpush.bf16.msra.mxu0 %v2258
    %3906 = vmatmul.bf16.gmra.mxu0 %v115
    %v3907 = vpop.f32.mrf.mxu0
    %v3908 = vadd.f32 %v3894, %v3907
    %v3909 = vpop.f32.mrf.mxu0
    %v3910 = vadd.f32 %v3896, %v3909
    %3911 = vdwg.mxu0
    %3912 = vmatpush.bf16.msra.mxu0 %v2378
    %3913 = vmatpush.bf16.msra.mxu0 %v2370
    %3914 = vmatpush.bf16.msra.mxu0 %v2362
    %3915 = vmatpush.bf16.msra.mxu0 %v2354
    %3916 = vmatpush.bf16.msra.mxu0 %v2346
    %3917 = vmatpush.bf16.msra.mxu0 %v2338
    %3918 = vmatpush.bf16.msra.mxu0 %v2330
    %3919 = vmatpush.bf16.msra.mxu0 %v2322
    %3920 = vmatmul.bf16.gmra.mxu0 %v116
    %v3921 = vpop.f32.mrf.mxu0
    %v3922 = vadd.f32 %v3908, %v3921
    %v3923 = vpop.f32.mrf.mxu0
    %v3924 = vadd.f32 %v3910, %v3923
    %3925 = vdwg.mxu0
    %3926 = vmatpush.bf16.msra.mxu0 %v2442
    %3927 = vmatpush.bf16.msra.mxu0 %v2434
    %3928 = vmatpush.bf16.msra.mxu0 %v2426
    %3929 = vmatpush.bf16.msra.mxu0 %v2418
    %3930 = vmatpush.bf16.msra.mxu0 %v2410
    %3931 = vmatpush.bf16.msra.mxu0 %v2402
    %3932 = vmatpush.bf16.msra.mxu0 %v2394
    %3933 = vmatpush.bf16.msra.mxu0 %v2386
    %3934 = vmatmul.bf16.gmra.mxu0 %v117
    %v3935 = vpop.f32.mrf.mxu0
    %v3936 = vadd.f32 %v3922, %v3935
    %v3937 = vpop.f32.mrf.mxu0
    %v3938 = vadd.f32 %v3924, %v3937
    %3939 = vdwg.mxu0
    %3940 = vmatpush.bf16.msra.mxu0 %v2506
    %3941 = vmatpush.bf16.msra.mxu0 %v2498
    %3942 = vmatpush.bf16.msra.mxu0 %v2490
    %3943 = vmatpush.bf16.msra.mxu0 %v2482
    %3944 = vmatpush.bf16.msra.mxu0 %v2474
    %3945 = vmatpush.bf16.msra.mxu0 %v2466
    %3946 = vmatpush.bf16.msra.mxu0 %v2458
    %3947 = vmatpush.bf16.msra.mxu0 %v2450
    %3948 = vmatmul.bf16.gmra.mxu0 %v118
    %v3949 = vpop.f32.mrf.mxu0
    %v3950 = vadd.f32 %v3936, %v3949
    %v3951 = vpop.f32.mrf.mxu0
    %v3952 = vadd.f32 %v3938, %v3951
    %3953 = vdwg.mxu0
    %3954 = vmatpush.bf16.msra.mxu0 %v2570
    %3955 = vmatpush.bf16.msra.mxu0 %v2562
    %3956 = vmatpush.bf16.msra.mxu0 %v2554
    %3957 = vmatpush.bf16.msra.mxu0 %v2546
    %3958 = vmatpush.bf16.msra.mxu0 %v2538
    %3959 = vmatpush.bf16.msra.mxu0 %v2530
    %3960 = vmatpush.bf16.msra.mxu0 %v2522
    %3961 = vmatpush.bf16.msra.mxu0 %v2514
    %3962 = vmatmul.bf16.gmra.mxu0 %v119
    %v3963 = vpop.f32.mrf.mxu0
    %v3964 = vadd.f32 %v3950, %v3963
    %v3965 = vpop.f32.mrf.mxu0
    %v3966 = vadd.f32 %v3952, %v3965
    %3967 = vdwg.mxu0
    %3968 = vmatpush.bf16.msra.mxu0 %v2634
    %3969 = vmatpush.bf16.msra.mxu0 %v2626
    %3970 = vmatpush.bf16.msra.mxu0 %v2618
    %3971 = vmatpush.bf16.msra.mxu0 %v2610
    %3972 = vmatpush.bf16.msra.mxu0 %v2602
    %3973 = vmatpush.bf16.msra.mxu0 %v2594
    %3974 = vmatpush.bf16.msra.mxu0 %v2586
    %3975 = vmatpush.bf16.msra.mxu0 %v2578
    %3976 = vmatmul.bf16.gmra.mxu0 %v120
    %v3977 = vpop.f32.mrf.mxu0
    %v3978 = vadd.f32 %v3964, %v3977
    %v3979 = vpop.f32.mrf.mxu0
    %v3980 = vadd.f32 %v3966, %v3979
    %3981 = vdwg.mxu0
    %3982 = vmatpush.bf16.msra.mxu0 %v2698
    %3983 = vmatpush.bf16.msra.mxu0 %v2690
    %3984 = vmatpush.bf16.msra.mxu0 %v2682
    %3985 = vmatpush.bf16.msra.mxu0 %v2674
    %3986 = vmatpush.bf16.msra.mxu0 %v2666
    %3987 = vmatpush.bf16.msra.mxu0 %v2658
    %3988 = vmatpush.bf16.msra.mxu0 %v2650
    %3989 = vmatpush.bf16.msra.mxu0 %v2642
    %3990 = vmatmul.bf16.gmra.mxu0 %v121
    %v3991 = vpop.f32.mrf.mxu0
    %v3992 = vadd.f32 %v3978, %v3991
    %v3993 = vpop.f32.mrf.mxu0
    %v3994 = vadd.f32 %v3980, %v3993
    %3995 = vdwg.mxu0
    %3996 = vmatpush.bf16.msra.mxu0 %v2251
    %3997 = vmatpush.bf16.msra.mxu0 %v2243
    %3998 = vmatpush.bf16.msra.mxu0 %v2235
    %3999 = vmatpush.bf16.msra.mxu0 %v2227
    %4000 = vmatpush.bf16.msra.mxu0 %v2219
    %4001 = vmatpush.bf16.msra.mxu0 %v2211
    %4002 = vmatpush.bf16.msra.mxu0 %v2203
    %4003 = vmatpush.bf16.msra.mxu0 %v2195
    %4004 = vmatmul.bf16.gmra.mxu0 %v114
    %v4005 = vpop.f32.mrf.mxu0
    %v4006 = vadd.f32 %v643, %v4005
    %v4007 = vpop.f32.mrf.mxu0
    %v4008 = vadd.f32 %v643, %v4007
    %4009 = vdwg.mxu0
    %4010 = vmatpush.bf16.msra.mxu0 %v2315
    %4011 = vmatpush.bf16.msra.mxu0 %v2307
    %4012 = vmatpush.bf16.msra.mxu0 %v2299
    %4013 = vmatpush.bf16.msra.mxu0 %v2291
    %4014 = vmatpush.bf16.msra.mxu0 %v2283
    %4015 = vmatpush.bf16.msra.mxu0 %v2275
    %4016 = vmatpush.bf16.msra.mxu0 %v2267
    %4017 = vmatpush.bf16.msra.mxu0 %v2259
    %4018 = vmatmul.bf16.gmra.mxu0 %v115
    %v4019 = vpop.f32.mrf.mxu0
    %v4020 = vadd.f32 %v4006, %v4019
    %v4021 = vpop.f32.mrf.mxu0
    %v4022 = vadd.f32 %v4008, %v4021
    %4023 = vdwg.mxu0
    %4024 = vmatpush.bf16.msra.mxu0 %v2379
    %4025 = vmatpush.bf16.msra.mxu0 %v2371
    %4026 = vmatpush.bf16.msra.mxu0 %v2363
    %4027 = vmatpush.bf16.msra.mxu0 %v2355
    %4028 = vmatpush.bf16.msra.mxu0 %v2347
    %4029 = vmatpush.bf16.msra.mxu0 %v2339
    %4030 = vmatpush.bf16.msra.mxu0 %v2331
    %4031 = vmatpush.bf16.msra.mxu0 %v2323
    %4032 = vmatmul.bf16.gmra.mxu0 %v116
    %v4033 = vpop.f32.mrf.mxu0
    %v4034 = vadd.f32 %v4020, %v4033
    %v4035 = vpop.f32.mrf.mxu0
    %v4036 = vadd.f32 %v4022, %v4035
    %4037 = vdwg.mxu0
    %4038 = vmatpush.bf16.msra.mxu0 %v2443
    %4039 = vmatpush.bf16.msra.mxu0 %v2435
    %4040 = vmatpush.bf16.msra.mxu0 %v2427
    %4041 = vmatpush.bf16.msra.mxu0 %v2419
    %4042 = vmatpush.bf16.msra.mxu0 %v2411
    %4043 = vmatpush.bf16.msra.mxu0 %v2403
    %4044 = vmatpush.bf16.msra.mxu0 %v2395
    %4045 = vmatpush.bf16.msra.mxu0 %v2387
    %4046 = vmatmul.bf16.gmra.mxu0 %v117
    %v4047 = vpop.f32.mrf.mxu0
    %v4048 = vadd.f32 %v4034, %v4047
    %v4049 = vpop.f32.mrf.mxu0
    %v4050 = vadd.f32 %v4036, %v4049
    %4051 = vdwg.mxu0
    %4052 = vmatpush.bf16.msra.mxu0 %v2507
    %4053 = vmatpush.bf16.msra.mxu0 %v2499
    %4054 = vmatpush.bf16.msra.mxu0 %v2491
    %4055 = vmatpush.bf16.msra.mxu0 %v2483
    %4056 = vmatpush.bf16.msra.mxu0 %v2475
    %4057 = vmatpush.bf16.msra.mxu0 %v2467
    %4058 = vmatpush.bf16.msra.mxu0 %v2459
    %4059 = vmatpush.bf16.msra.mxu0 %v2451
    %4060 = vmatmul.bf16.gmra.mxu0 %v118
    %v4061 = vpop.f32.mrf.mxu0
    %v4062 = vadd.f32 %v4048, %v4061
    %v4063 = vpop.f32.mrf.mxu0
    %v4064 = vadd.f32 %v4050, %v4063
    %4065 = vdwg.mxu0
    %4066 = vmatpush.bf16.msra.mxu0 %v2571
    %4067 = vmatpush.bf16.msra.mxu0 %v2563
    %4068 = vmatpush.bf16.msra.mxu0 %v2555
    %4069 = vmatpush.bf16.msra.mxu0 %v2547
    %4070 = vmatpush.bf16.msra.mxu0 %v2539
    %4071 = vmatpush.bf16.msra.mxu0 %v2531
    %4072 = vmatpush.bf16.msra.mxu0 %v2523
    %4073 = vmatpush.bf16.msra.mxu0 %v2515
    %4074 = vmatmul.bf16.gmra.mxu0 %v119
    %v4075 = vpop.f32.mrf.mxu0
    %v4076 = vadd.f32 %v4062, %v4075
    %v4077 = vpop.f32.mrf.mxu0
    %v4078 = vadd.f32 %v4064, %v4077
    %4079 = vdwg.mxu0
    %4080 = vmatpush.bf16.msra.mxu0 %v2635
    %4081 = vmatpush.bf16.msra.mxu0 %v2627
    %4082 = vmatpush.bf16.msra.mxu0 %v2619
    %4083 = vmatpush.bf16.msra.mxu0 %v2611
    %4084 = vmatpush.bf16.msra.mxu0 %v2603
    %4085 = vmatpush.bf16.msra.mxu0 %v2595
    %4086 = vmatpush.bf16.msra.mxu0 %v2587
    %4087 = vmatpush.bf16.msra.mxu0 %v2579
    %4088 = vmatmul.bf16.gmra.mxu0 %v120
    %v4089 = vpop.f32.mrf.mxu0
    %v4090 = vadd.f32 %v4076, %v4089
    %v4091 = vpop.f32.mrf.mxu0
    %v4092 = vadd.f32 %v4078, %v4091
    %4093 = vdwg.mxu0
    %4094 = vmatpush.bf16.msra.mxu0 %v2699
    %4095 = vmatpush.bf16.msra.mxu0 %v2691
    %4096 = vmatpush.bf16.msra.mxu0 %v2683
    %4097 = vmatpush.bf16.msra.mxu0 %v2675
    %4098 = vmatpush.bf16.msra.mxu0 %v2667
    %4099 = vmatpush.bf16.msra.mxu0 %v2659
    %4100 = vmatpush.bf16.msra.mxu0 %v2651
    %4101 = vmatpush.bf16.msra.mxu0 %v2643
    %4102 = vmatmul.bf16.gmra.mxu0 %v121
    %v4103 = vpop.f32.mrf.mxu0
    %v4104 = vadd.f32 %v4090, %v4103
    %v4105 = vpop.f32.mrf.mxu0
    %v4106 = vadd.f32 %v4092, %v4105
    %4107 = vdwg.mxu0
    %v4108 = vtanh.pop %v3320
    %v4109 = vtanh.pop %v3432
    %v4110 = vtanh.pop %v3544
    %v4111 = vtanh.pop %v3656
    %v4112 = vtanh.pop %v3768
    %v4113 = vtanh.pop %v3880
    %v4114 = vtanh.pop %v3992
    %v4115 = vtanh.pop %v4104
    %v4116 = vtanh.pop %v3322
    %v4117 = vtanh.pop %v3434
    %v4118 = vtanh.pop %v3546
    %v4119 = vtanh.pop %v3658
    %v4120 = vtanh.pop %v3770
    %v4121 = vtanh.pop %v3882
    %v4122 = vtanh.pop %v3994
    %v4123 = vtanh.pop %v4106
    %4124 = vst [vmem:[#allocation11] sm:$0xff] %v4108
    %4125 = vst [vmem:[#allocation11 + $0x8] sm:$0xff] %v4109
    %4126 = vst [vmem:[#allocation11 + $0x10] sm:$0xff] %v4110
    %4127 = vst [vmem:[#allocation11 + $0x18] sm:$0xff] %v4111
    %4128 = vst [vmem:[#allocation11 + $0x20] sm:$0xff] %v4112
    %4129 = vst [vmem:[#allocation11 + $0x28] sm:$0xff] %v4113
    %4130 = vst [vmem:[#allocation11 + $0x30] sm:$0xff] %v4114
    %4131 = vst [vmem:[#allocation11 + $0x38] sm:$0xff] %v4115
    %4132 = vst [vmem:[#allocation11 + $0x40] sm:$0xff] %v4116
    %4133 = vst [vmem:[#allocation11 + $0x48] sm:$0xff] %v4117
    %4134 = vst [vmem:[#allocation11 + $0x50] sm:$0xff] %v4118
    %4135 = vst [vmem:[#allocation11 + $0x58] sm:$0xff] %v4119
    %4136 = vst [vmem:[#allocation11 + $0x60] sm:$0xff] %v4120
    %4137 = vst [vmem:[#allocation11 + $0x68] sm:$0xff] %v4121
    %4138 = vst [vmem:[#allocation11 + $0x70] sm:$0xff] %v4122
    %4139 = vst [vmem:[#allocation11 + $0x78] sm:$0xff] %v4123
    %v4140 = vpack.c.bf16 %v4116, %v4108
    %v4141 = vpack.c.bf16 %v4117, %v4109
    %v4142 = vpack.c.bf16 %v4118, %v4110
    %v4143 = vpack.c.bf16 %v4119, %v4111
    %v4144 = vpack.c.bf16 %v4120, %v4112
    %v4145 = vpack.c.bf16 %v4121, %v4113
    %v4146 = vpack.c.bf16 %v4122, %v4114
    %v4147 = vpack.c.bf16 %v4123, %v4115
    %v4148 = vld [vmem:[#allocation8] sm:$0xf]
    %v4149 = vld [vmem:[#allocation8 + $0x4] sm:$0xf]
    %v4150 = vld [vmem:[#allocation8 + $0x8] sm:$0xf]
    %v4151 = vld [vmem:[#allocation8 + $0xc] sm:$0xf]
    %v4152 = vld [vmem:[#allocation8 + $0x10] sm:$0xf]
    %v4153 = vld [vmem:[#allocation8 + $0x14] sm:$0xf]
    %v4154 = vld [vmem:[#allocation8 + $0x18] sm:$0xf]
    %v4155 = vld [vmem:[#allocation8 + $0x1c] sm:$0xf]
    %v4156 = vld [vmem:[#allocation8 + $0x20] sm:$0xf]
    %v4157 = vld [vmem:[#allocation8 + $0x24] sm:$0xf]
    %v4158 = vld [vmem:[#allocation8 + $0x28] sm:$0xf]
    %v4159 = vld [vmem:[#allocation8 + $0x2c] sm:$0xf]
    %v4160 = vld [vmem:[#allocation8 + $0x30] sm:$0xf]
    %v4161 = vld [vmem:[#allocation8 + $0x34] sm:$0xf]
    %v4162 = vld [vmem:[#allocation8 + $0x38] sm:$0xf]
    %v4163 = vld [vmem:[#allocation8 + $0x3c] sm:$0xf]
    %v4164 = vld [vmem:[#allocation8 + $0x40] sm:$0xf]
    %v4165 = vld [vmem:[#allocation8 + $0x44] sm:$0xf]
    %v4166 = vld [vmem:[#allocation8 + $0x48] sm:$0xf]
    %v4167 = vld [vmem:[#allocation8 + $0x4c] sm:$0xf]
    %v4168 = vld [vmem:[#allocation8 + $0x50] sm:$0xf]
    %v4169 = vld [vmem:[#allocation8 + $0x54] sm:$0xf]
    %v4170 = vld [vmem:[#allocation8 + $0x58] sm:$0xf]
    %v4171 = vld [vmem:[#allocation8 + $0x5c] sm:$0xf]
    %v4172 = vld [vmem:[#allocation8 + $0x60] sm:$0xf]
    %v4173 = vld [vmem:[#allocation8 + $0x64] sm:$0xf]
    %v4174 = vld [vmem:[#allocation8 + $0x68] sm:$0xf]
    %v4175 = vld [vmem:[#allocation8 + $0x6c] sm:$0xf]
    %v4176 = vld [vmem:[#allocation8 + $0x70] sm:$0xf]
    %v4177 = vld [vmem:[#allocation8 + $0x74] sm:$0xf]
    %v4178 = vld [vmem:[#allocation8 + $0x78] sm:$0xf]
    %v4179 = vld [vmem:[#allocation8 + $0x7c] sm:$0xf]
    %v4180 = vld [vmem:[#allocation8 + $0x80] sm:$0xf]
    %v4181 = vld [vmem:[#allocation8 + $0x84] sm:$0xf]
    %v4182 = vld [vmem:[#allocation8 + $0x88] sm:$0xf]
    %v4183 = vld [vmem:[#allocation8 + $0x8c] sm:$0xf]
    %v4184 = vld [vmem:[#allocation8 + $0x90] sm:$0xf]
    %v4185 = vld [vmem:[#allocation8 + $0x94] sm:$0xf]
    %v4186 = vld [vmem:[#allocation8 + $0x98] sm:$0xf]
    %v4187 = vld [vmem:[#allocation8 + $0x9c] sm:$0xf]
    %v4188 = vld [vmem:[#allocation8 + $0xa0] sm:$0xf]
    %v4189 = vld [vmem:[#allocation8 + $0xa4] sm:$0xf]
    %v4190 = vld [vmem:[#allocation8 + $0xa8] sm:$0xf]
    %v4191 = vld [vmem:[#allocation8 + $0xac] sm:$0xf]
    %v4192 = vld [vmem:[#allocation8 + $0xb0] sm:$0xf]
    %v4193 = vld [vmem:[#allocation8 + $0xb4] sm:$0xf]
    %v4194 = vld [vmem:[#allocation8 + $0xb8] sm:$0xf]
    %v4195 = vld [vmem:[#allocation8 + $0xbc] sm:$0xf]
    %v4196 = vld [vmem:[#allocation8 + $0xc0] sm:$0xf]
    %v4197 = vld [vmem:[#allocation8 + $0xc4] sm:$0xf]
    %v4198 = vld [vmem:[#allocation8 + $0xc8] sm:$0xf]
    %v4199 = vld [vmem:[#allocation8 + $0xcc] sm:$0xf]
    %v4200 = vld [vmem:[#allocation8 + $0xd0] sm:$0xf]
    %v4201 = vld [vmem:[#allocation8 + $0xd4] sm:$0xf]
    %v4202 = vld [vmem:[#allocation8 + $0xd8] sm:$0xf]
    %v4203 = vld [vmem:[#allocation8 + $0xdc] sm:$0xf]
    %v4204 = vld [vmem:[#allocation8 + $0xe0] sm:$0xf]
    %v4205 = vld [vmem:[#allocation8 + $0xe4] sm:$0xf]
    %v4206 = vld [vmem:[#allocation8 + $0xe8] sm:$0xf]
    %v4207 = vld [vmem:[#allocation8 + $0xec] sm:$0xf]
    %v4208 = vld [vmem:[#allocation8 + $0xf0] sm:$0xf]
    %v4209 = vld [vmem:[#allocation8 + $0xf4] sm:$0xf]
    %v4210 = vld [vmem:[#allocation8 + $0xf8] sm:$0xf]
    %v4211 = vld [vmem:[#allocation8 + $0xfc] sm:$0xf]
    %v4212 = vld [vmem:[#allocation8 + $0x100] sm:$0xf]
    %v4213 = vld [vmem:[#allocation8 + $0x104] sm:$0xf]
    %v4214 = vld [vmem:[#allocation8 + $0x108] sm:$0xf]
    %v4215 = vld [vmem:[#allocation8 + $0x10c] sm:$0xf]
    %v4216 = vld [vmem:[#allocation8 + $0x110] sm:$0xf]
    %v4217 = vld [vmem:[#allocation8 + $0x114] sm:$0xf]
    %v4218 = vld [vmem:[#allocation8 + $0x118] sm:$0xf]
    %v4219 = vld [vmem:[#allocation8 + $0x11c] sm:$0xf]
    %v4220 = vld [vmem:[#allocation8 + $0x120] sm:$0xf]
    %v4221 = vld [vmem:[#allocation8 + $0x124] sm:$0xf]
    %v4222 = vld [vmem:[#allocation8 + $0x128] sm:$0xf]
    %v4223 = vld [vmem:[#allocation8 + $0x12c] sm:$0xf]
    %v4224 = vld [vmem:[#allocation8 + $0x130] sm:$0xf]
    %v4225 = vld [vmem:[#allocation8 + $0x134] sm:$0xf]
    %v4226 = vld [vmem:[#allocation8 + $0x138] sm:$0xf]
    %v4227 = vld [vmem:[#allocation8 + $0x13c] sm:$0xf]
    %v4228 = vld [vmem:[#allocation8 + $0x140] sm:$0xf]
    %v4229 = vld [vmem:[#allocation8 + $0x144] sm:$0xf]
    %v4230 = vld [vmem:[#allocation8 + $0x148] sm:$0xf]
    %v4231 = vld [vmem:[#allocation8 + $0x14c] sm:$0xf]
    %v4232 = vld [vmem:[#allocation8 + $0x150] sm:$0xf]
    %v4233 = vld [vmem:[#allocation8 + $0x154] sm:$0xf]
    %v4234 = vld [vmem:[#allocation8 + $0x158] sm:$0xf]
    %v4235 = vld [vmem:[#allocation8 + $0x15c] sm:$0xf]
    %v4236 = vld [vmem:[#allocation8 + $0x160] sm:$0xf]
    %v4237 = vld [vmem:[#allocation8 + $0x164] sm:$0xf]
    %v4238 = vld [vmem:[#allocation8 + $0x168] sm:$0xf]
    %v4239 = vld [vmem:[#allocation8 + $0x16c] sm:$0xf]
    %v4240 = vld [vmem:[#allocation8 + $0x170] sm:$0xf]
    %v4241 = vld [vmem:[#allocation8 + $0x174] sm:$0xf]
    %v4242 = vld [vmem:[#allocation8 + $0x178] sm:$0xf]
    %v4243 = vld [vmem:[#allocation8 + $0x17c] sm:$0xf]
    %v4244 = vld [vmem:[#allocation8 + $0x180] sm:$0xf]
    %v4245 = vld [vmem:[#allocation8 + $0x184] sm:$0xf]
    %v4246 = vld [vmem:[#allocation8 + $0x188] sm:$0xf]
    %v4247 = vld [vmem:[#allocation8 + $0x18c] sm:$0xf]
    %v4248 = vld [vmem:[#allocation8 + $0x190] sm:$0xf]
    %v4249 = vld [vmem:[#allocation8 + $0x194] sm:$0xf]
    %v4250 = vld [vmem:[#allocation8 + $0x198] sm:$0xf]
    %v4251 = vld [vmem:[#allocation8 + $0x19c] sm:$0xf]
    %v4252 = vld [vmem:[#allocation8 + $0x1a0] sm:$0xf]
    %v4253 = vld [vmem:[#allocation8 + $0x1a4] sm:$0xf]
    %v4254 = vld [vmem:[#allocation8 + $0x1a8] sm:$0xf]
    %v4255 = vld [vmem:[#allocation8 + $0x1ac] sm:$0xf]
    %v4256 = vld [vmem:[#allocation8 + $0x1b0] sm:$0xf]
    %v4257 = vld [vmem:[#allocation8 + $0x1b4] sm:$0xf]
    %v4258 = vld [vmem:[#allocation8 + $0x1b8] sm:$0xf]
    %v4259 = vld [vmem:[#allocation8 + $0x1bc] sm:$0xf]
    %v4260 = vld [vmem:[#allocation8 + $0x1c0] sm:$0xf]
    %v4261 = vld [vmem:[#allocation8 + $0x1c4] sm:$0xf]
    %v4262 = vld [vmem:[#allocation8 + $0x1c8] sm:$0xf]
    %v4263 = vld [vmem:[#allocation8 + $0x1cc] sm:$0xf]
    %v4264 = vld [vmem:[#allocation8 + $0x1d0] sm:$0xf]
    %v4265 = vld [vmem:[#allocation8 + $0x1d4] sm:$0xf]
    %v4266 = vld [vmem:[#allocation8 + $0x1d8] sm:$0xf]
    %v4267 = vld [vmem:[#allocation8 + $0x1dc] sm:$0xf]
    %v4268 = vld [vmem:[#allocation8 + $0x1e0] sm:$0xf]
    %v4269 = vld [vmem:[#allocation8 + $0x1e4] sm:$0xf]
    %v4270 = vld [vmem:[#allocation8 + $0x1e8] sm:$0xf]
    %v4271 = vld [vmem:[#allocation8 + $0x1ec] sm:$0xf]
    %v4272 = vld [vmem:[#allocation8 + $0x1f0] sm:$0xf]
    %v4273 = vld [vmem:[#allocation8 + $0x1f4] sm:$0xf]
    %v4274 = vld [vmem:[#allocation8 + $0x1f8] sm:$0xf]
    %v4275 = vld [vmem:[#allocation8 + $0x1fc] sm:$0xf]
    %v4276 = vld [vmem:[#allocation10] sm:$0x1]
    %v4278 = vperm.slane %v4276, 0
    %v4408 = vunpack.c.l.b16 %v4148
    %v4409 = vunpack.c.l.b16 %v4149
    %v4410 = vunpack.c.l.b16 %v4150
    %v4411 = vunpack.c.l.b16 %v4151
    %v4412 = vunpack.c.l.b16 %v4152
    %v4413 = vunpack.c.l.b16 %v4153
    %v4414 = vunpack.c.l.b16 %v4154
    %v4415 = vunpack.c.l.b16 %v4155
    %v4416 = vunpack.c.l.b16 %v4156
    %v4417 = vunpack.c.l.b16 %v4157
    %v4418 = vunpack.c.l.b16 %v4158
    %v4419 = vunpack.c.l.b16 %v4159
    %v4420 = vunpack.c.l.b16 %v4160
    %v4421 = vunpack.c.l.b16 %v4161
    %v4422 = vunpack.c.l.b16 %v4162
    %v4423 = vunpack.c.l.b16 %v4163
    %v4424 = vunpack.c.l.b16 %v4164
    %v4425 = vunpack.c.l.b16 %v4165
    %v4426 = vunpack.c.l.b16 %v4166
    %v4427 = vunpack.c.l.b16 %v4167
    %v4428 = vunpack.c.l.b16 %v4168
    %v4429 = vunpack.c.l.b16 %v4169
    %v4430 = vunpack.c.l.b16 %v4170
    %v4431 = vunpack.c.l.b16 %v4171
    %v4432 = vunpack.c.l.b16 %v4172
    %v4433 = vunpack.c.l.b16 %v4173
    %v4434 = vunpack.c.l.b16 %v4174
    %v4435 = vunpack.c.l.b16 %v4175
    %v4436 = vunpack.c.l.b16 %v4176
    %v4437 = vunpack.c.l.b16 %v4177
    %v4438 = vunpack.c.l.b16 %v4178
    %v4439 = vunpack.c.l.b16 %v4179
    %v4440 = vunpack.c.l.b16 %v4180
    %v4441 = vunpack.c.l.b16 %v4181
    %v4442 = vunpack.c.l.b16 %v4182
    %v4443 = vunpack.c.l.b16 %v4183
    %v4444 = vunpack.c.l.b16 %v4184
    %v4445 = vunpack.c.l.b16 %v4185
    %v4446 = vunpack.c.l.b16 %v4186
    %v4447 = vunpack.c.l.b16 %v4187
    %v4448 = vunpack.c.l.b16 %v4188
    %v4449 = vunpack.c.l.b16 %v4189
    %v4450 = vunpack.c.l.b16 %v4190
    %v4451 = vunpack.c.l.b16 %v4191
    %v4452 = vunpack.c.l.b16 %v4192
    %v4453 = vunpack.c.l.b16 %v4193
    %v4454 = vunpack.c.l.b16 %v4194
    %v4455 = vunpack.c.l.b16 %v4195
    %v4456 = vunpack.c.l.b16 %v4196
    %v4457 = vunpack.c.l.b16 %v4197
    %v4458 = vunpack.c.l.b16 %v4198
    %v4459 = vunpack.c.l.b16 %v4199
    %v4460 = vunpack.c.l.b16 %v4200
    %v4461 = vunpack.c.l.b16 %v4201
    %v4462 = vunpack.c.l.b16 %v4202
    %v4463 = vunpack.c.l.b16 %v4203
    %v4464 = vunpack.c.l.b16 %v4204
    %v4465 = vunpack.c.l.b16 %v4205
    %v4466 = vunpack.c.l.b16 %v4206
    %v4467 = vunpack.c.l.b16 %v4207
    %v4468 = vunpack.c.l.b16 %v4208
    %v4469 = vunpack.c.l.b16 %v4209
    %v4470 = vunpack.c.l.b16 %v4210
    %v4471 = vunpack.c.l.b16 %v4211
    %v4472 = vunpack.c.l.b16 %v4212
    %v4473 = vunpack.c.l.b16 %v4213
    %v4474 = vunpack.c.l.b16 %v4214
    %v4475 = vunpack.c.l.b16 %v4215
    %v4476 = vunpack.c.l.b16 %v4216
    %v4477 = vunpack.c.l.b16 %v4217
    %v4478 = vunpack.c.l.b16 %v4218
    %v4479 = vunpack.c.l.b16 %v4219
    %v4480 = vunpack.c.l.b16 %v4220
    %v4481 = vunpack.c.l.b16 %v4221
    %v4482 = vunpack.c.l.b16 %v4222
    %v4483 = vunpack.c.l.b16 %v4223
    %v4484 = vunpack.c.l.b16 %v4224
    %v4485 = vunpack.c.l.b16 %v4225
    %v4486 = vunpack.c.l.b16 %v4226
    %v4487 = vunpack.c.l.b16 %v4227
    %v4488 = vunpack.c.l.b16 %v4228
    %v4489 = vunpack.c.l.b16 %v4229
    %v4490 = vunpack.c.l.b16 %v4230
    %v4491 = vunpack.c.l.b16 %v4231
    %v4492 = vunpack.c.l.b16 %v4232
    %v4493 = vunpack.c.l.b16 %v4233
    %v4494 = vunpack.c.l.b16 %v4234
    %v4495 = vunpack.c.l.b16 %v4235
    %v4496 = vunpack.c.l.b16 %v4236
    %v4497 = vunpack.c.l.b16 %v4237
    %v4498 = vunpack.c.l.b16 %v4238
    %v4499 = vunpack.c.l.b16 %v4239
    %v4500 = vunpack.c.l.b16 %v4240
    %v4501 = vunpack.c.l.b16 %v4241
    %v4502 = vunpack.c.l.b16 %v4242
    %v4503 = vunpack.c.l.b16 %v4243
    %v4504 = vunpack.c.l.b16 %v4244
    %v4505 = vunpack.c.l.b16 %v4245
    %v4506 = vunpack.c.l.b16 %v4246
    %v4507 = vunpack.c.l.b16 %v4247
    %v4508 = vunpack.c.l.b16 %v4248
    %v4509 = vunpack.c.l.b16 %v4249
    %v4510 = vunpack.c.l.b16 %v4250
    %v4511 = vunpack.c.l.b16 %v4251
    %v4512 = vunpack.c.l.b16 %v4252
    %v4513 = vunpack.c.l.b16 %v4253
    %v4514 = vunpack.c.l.b16 %v4254
    %v4515 = vunpack.c.l.b16 %v4255
    %v4516 = vunpack.c.l.b16 %v4256
    %v4517 = vunpack.c.l.b16 %v4257
    %v4518 = vunpack.c.l.b16 %v4258
    %v4519 = vunpack.c.l.b16 %v4259
    %v4520 = vunpack.c.l.b16 %v4260
    %v4521 = vunpack.c.l.b16 %v4261
    %v4522 = vunpack.c.l.b16 %v4262
    %v4523 = vunpack.c.l.b16 %v4263
    %v4524 = vunpack.c.l.b16 %v4264
    %v4525 = vunpack.c.l.b16 %v4265
    %v4526 = vunpack.c.l.b16 %v4266
    %v4527 = vunpack.c.l.b16 %v4267
    %v4528 = vunpack.c.l.b16 %v4268
    %v4529 = vunpack.c.l.b16 %v4269
    %v4530 = vunpack.c.l.b16 %v4270
    %v4531 = vunpack.c.l.b16 %v4271
    %v4532 = vunpack.c.l.b16 %v4272
    %v4533 = vunpack.c.l.b16 %v4273
    %v4534 = vunpack.c.l.b16 %v4274
    %v4535 = vunpack.c.l.b16 %v4275
    %v4536 = vpack.c.b16 %v4409, %v4408
    %v4537 = vpack.c.b16 %v4411, %v4410
    %v4538 = vpack.c.b16 %v4413, %v4412
    %v4539 = vpack.c.b16 %v4415, %v4414
    %v4540 = vpack.c.b16 %v4417, %v4416
    %v4541 = vpack.c.b16 %v4419, %v4418
    %v4542 = vpack.c.b16 %v4421, %v4420
    %v4543 = vpack.c.b16 %v4423, %v4422
    %v4544 = vpack.c.b16 %v4425, %v4424
    %v4545 = vpack.c.b16 %v4427, %v4426
    %v4546 = vpack.c.b16 %v4429, %v4428
    %v4547 = vpack.c.b16 %v4431, %v4430
    %v4548 = vpack.c.b16 %v4433, %v4432
    %v4549 = vpack.c.b16 %v4435, %v4434
    %v4550 = vpack.c.b16 %v4437, %v4436
    %v4551 = vpack.c.b16 %v4439, %v4438
    %v4552 = vpack.c.b16 %v4441, %v4440
    %v4553 = vpack.c.b16 %v4443, %v4442
    %v4554 = vpack.c.b16 %v4445, %v4444
    %v4555 = vpack.c.b16 %v4447, %v4446
    %v4556 = vpack.c.b16 %v4449, %v4448
    %v4557 = vpack.c.b16 %v4451, %v4450
    %v4558 = vpack.c.b16 %v4453, %v4452
    %v4559 = vpack.c.b16 %v4455, %v4454
    %v4560 = vpack.c.b16 %v4457, %v4456
    %v4561 = vpack.c.b16 %v4459, %v4458
    %v4562 = vpack.c.b16 %v4461, %v4460
    %v4563 = vpack.c.b16 %v4463, %v4462
    %v4564 = vpack.c.b16 %v4465, %v4464
    %v4565 = vpack.c.b16 %v4467, %v4466
    %v4566 = vpack.c.b16 %v4469, %v4468
    %v4567 = vpack.c.b16 %v4471, %v4470
    %v4568 = vpack.c.b16 %v4473, %v4472
    %v4569 = vpack.c.b16 %v4475, %v4474
    %v4570 = vpack.c.b16 %v4477, %v4476
    %v4571 = vpack.c.b16 %v4479, %v4478
    %v4572 = vpack.c.b16 %v4481, %v4480
    %v4573 = vpack.c.b16 %v4483, %v4482
    %v4574 = vpack.c.b16 %v4485, %v4484
    %v4575 = vpack.c.b16 %v4487, %v4486
    %v4576 = vpack.c.b16 %v4489, %v4488
    %v4577 = vpack.c.b16 %v4491, %v4490
    %v4578 = vpack.c.b16 %v4493, %v4492
    %v4579 = vpack.c.b16 %v4495, %v4494
    %v4580 = vpack.c.b16 %v4497, %v4496
    %v4581 = vpack.c.b16 %v4499, %v4498
    %v4582 = vpack.c.b16 %v4501, %v4500
    %v4583 = vpack.c.b16 %v4503, %v4502
    %v4584 = vpack.c.b16 %v4505, %v4504
    %v4585 = vpack.c.b16 %v4507, %v4506
    %v4586 = vpack.c.b16 %v4509, %v4508
    %v4587 = vpack.c.b16 %v4511, %v4510
    %v4588 = vpack.c.b16 %v4513, %v4512
    %v4589 = vpack.c.b16 %v4515, %v4514
    %v4590 = vpack.c.b16 %v4517, %v4516
    %v4591 = vpack.c.b16 %v4519, %v4518
    %v4592 = vpack.c.b16 %v4521, %v4520
    %v4593 = vpack.c.b16 %v4523, %v4522
    %v4594 = vpack.c.b16 %v4525, %v4524
    %v4595 = vpack.c.b16 %v4527, %v4526
    %v4596 = vpack.c.b16 %v4529, %v4528
    %v4597 = vpack.c.b16 %v4531, %v4530
    %v4598 = vpack.c.b16 %v4533, %v4532
    %v4599 = vpack.c.b16 %v4535, %v4534
    %4664 = vmatpush.bf16.msra.mxu0 %v4543
    %4665 = vmatpush.bf16.msra.mxu0 %v4542
    %4666 = vmatpush.bf16.msra.mxu0 %v4541
    %4667 = vmatpush.bf16.msra.mxu0 %v4540
    %4668 = vmatpush.bf16.msra.mxu0 %v4539
    %4669 = vmatpush.bf16.msra.mxu0 %v4538
    %4670 = vmatpush.bf16.msra.mxu0 %v4537
    %4671 = vmatpush.bf16.msra.mxu0 %v4536
    %4672 = vmatmul.bf16.gmra.mxu0 %v4140
    %v4673 = vpop.f32.mrf.mxu0
    %v4674 = vadd.f32 %v4278, %v4673
    %v4675 = vpop.f32.mrf.mxu0
    %v4676 = vadd.f32 %v4278, %v4675
    %4677 = vdwg.mxu0
    %4678 = vmatpush.bf16.msra.mxu0 %v4551
    %4679 = vmatpush.bf16.msra.mxu0 %v4550
    %4680 = vmatpush.bf16.msra.mxu0 %v4549
    %4681 = vmatpush.bf16.msra.mxu0 %v4548
    %4682 = vmatpush.bf16.msra.mxu0 %v4547
    %4683 = vmatpush.bf16.msra.mxu0 %v4546
    %4684 = vmatpush.bf16.msra.mxu0 %v4545
    %4685 = vmatpush.bf16.msra.mxu0 %v4544
    %4686 = vmatmul.bf16.gmra.mxu0 %v4141
    %v4687 = vpop.f32.mrf.mxu0
    %v4688 = vadd.f32 %v4674, %v4687
    %v4689 = vpop.f32.mrf.mxu0
    %v4690 = vadd.f32 %v4676, %v4689
    %4691 = vdwg.mxu0
    %4692 = vmatpush.bf16.msra.mxu0 %v4559
    %4693 = vmatpush.bf16.msra.mxu0 %v4558
    %4694 = vmatpush.bf16.msra.mxu0 %v4557
    %4695 = vmatpush.bf16.msra.mxu0 %v4556
    %4696 = vmatpush.bf16.msra.mxu0 %v4555
    %4697 = vmatpush.bf16.msra.mxu0 %v4554
    %4698 = vmatpush.bf16.msra.mxu0 %v4553
    %4699 = vmatpush.bf16.msra.mxu0 %v4552
    %4700 = vmatmul.bf16.gmra.mxu0 %v4142
    %v4701 = vpop.f32.mrf.mxu0
    %v4702 = vadd.f32 %v4688, %v4701
    %v4703 = vpop.f32.mrf.mxu0
    %v4704 = vadd.f32 %v4690, %v4703
    %4705 = vdwg.mxu0
    %4706 = vmatpush.bf16.msra.mxu0 %v4567
    %4707 = vmatpush.bf16.msra.mxu0 %v4566
    %4708 = vmatpush.bf16.msra.mxu0 %v4565
    %4709 = vmatpush.bf16.msra.mxu0 %v4564
    %4710 = vmatpush.bf16.msra.mxu0 %v4563
    %4711 = vmatpush.bf16.msra.mxu0 %v4562
    %4712 = vmatpush.bf16.msra.mxu0 %v4561
    %4713 = vmatpush.bf16.msra.mxu0 %v4560
    %4714 = vmatmul.bf16.gmra.mxu0 %v4143
    %v4715 = vpop.f32.mrf.mxu0
    %v4716 = vadd.f32 %v4702, %v4715
    %v4717 = vpop.f32.mrf.mxu0
    %v4718 = vadd.f32 %v4704, %v4717
    %4719 = vdwg.mxu0
    %4720 = vmatpush.bf16.msra.mxu0 %v4575
    %4721 = vmatpush.bf16.msra.mxu0 %v4574
    %4722 = vmatpush.bf16.msra.mxu0 %v4573
    %4723 = vmatpush.bf16.msra.mxu0 %v4572
    %4724 = vmatpush.bf16.msra.mxu0 %v4571
    %4725 = vmatpush.bf16.msra.mxu0 %v4570
    %4726 = vmatpush.bf16.msra.mxu0 %v4569
    %4727 = vmatpush.bf16.msra.mxu0 %v4568
    %4728 = vmatmul.bf16.gmra.mxu0 %v4144
    %v4729 = vpop.f32.mrf.mxu0
    %v4730 = vadd.f32 %v4716, %v4729
    %v4731 = vpop.f32.mrf.mxu0
    %v4732 = vadd.f32 %v4718, %v4731
    %4733 = vdwg.mxu0
    %4734 = vmatpush.bf16.msra.mxu0 %v4583
    %4735 = vmatpush.bf16.msra.mxu0 %v4582
    %4736 = vmatpush.bf16.msra.mxu0 %v4581
    %4737 = vmatpush.bf16.msra.mxu0 %v4580
    %4738 = vmatpush.bf16.msra.mxu0 %v4579
    %4739 = vmatpush.bf16.msra.mxu0 %v4578
    %4740 = vmatpush.bf16.msra.mxu0 %v4577
    %4741 = vmatpush.bf16.msra.mxu0 %v4576
    %4742 = vmatmul.bf16.gmra.mxu0 %v4145
    %v4743 = vpop.f32.mrf.mxu0
    %v4744 = vadd.f32 %v4730, %v4743
    %v4745 = vpop.f32.mrf.mxu0
    %v4746 = vadd.f32 %v4732, %v4745
    %4747 = vdwg.mxu0
    %4748 = vmatpush.bf16.msra.mxu0 %v4591
    %4749 = vmatpush.bf16.msra.mxu0 %v4590
    %4750 = vmatpush.bf16.msra.mxu0 %v4589
    %4751 = vmatpush.bf16.msra.mxu0 %v4588
    %4752 = vmatpush.bf16.msra.mxu0 %v4587
    %4753 = vmatpush.bf16.msra.mxu0 %v4586
    %4754 = vmatpush.bf16.msra.mxu0 %v4585
    %4755 = vmatpush.bf16.msra.mxu0 %v4584
    %4756 = vmatmul.bf16.gmra.mxu0 %v4146
    %v4757 = vpop.f32.mrf.mxu0
    %v4758 = vadd.f32 %v4744, %v4757
    %v4759 = vpop.f32.mrf.mxu0
    %v4760 = vadd.f32 %v4746, %v4759
    %4761 = vdwg.mxu0
    %4762 = vmatpush.bf16.msra.mxu0 %v4599
    %4763 = vmatpush.bf16.msra.mxu0 %v4598
    %4764 = vmatpush.bf16.msra.mxu0 %v4597
    %4765 = vmatpush.bf16.msra.mxu0 %v4596
    %4766 = vmatpush.bf16.msra.mxu0 %v4595
    %4767 = vmatpush.bf16.msra.mxu0 %v4594
    %4768 = vmatpush.bf16.msra.mxu0 %v4593
    %4769 = vmatpush.bf16.msra.mxu0 %v4592
    %4770 = vmatmul.bf16.gmra.mxu0 %v4147
    %v4771 = vpop.f32.mrf.mxu0
    %v4772 = vadd.f32 %v4758, %v4771
    %v4773 = vpop.f32.mrf.mxu0
    %v4774 = vadd.f32 %v4760, %v4773
    %4775 = vdwg.mxu0
    %4776 = vst [vmem:[#allocation12] sm:$0xff] %v4772
    %4777 = vst [vmem:[#allocation12 + $0x8] sm:$0xff] %v4774
    // Predicated region
    $region42: #{tpu_custom_call.1} parent=1 // pred_check
      _
    $region43: #{tpu_custom_call.1} parent=1 // pred_check_branch
      %4779 = sbr.rel (0) target = $region45
    $region44: #{tpu_custom_call.1} parent=1 // pred_region
      %4781 = vsyncadd [#allocation4], 0
      %s4782 = sshll.u32 [#allocation11], 4
      %s4783 = int_to_ptr.vmem [resolvable:$true] %s4782
      %s4784 = sshll.u32 %s5, 4
      %s4785 = int_to_ptr.hbm [resolvable:$true] %s4784
      %4790 = dma.vmem_to_hbm [thread:$0]  %s4783, 2048, %s4785, [#allocation4], 1024, 1024, 64
    $region45: #{tpu_custom_call.1} parent=1 // pred_fallthru
      _
    // Predicated region
    $region46: #{tpu_custom_call.1} parent=1 // pred_check
      _
    $region47: #{tpu_custom_call.1} parent=1 // pred_check_branch
      %4792 = sbr.rel (0) target = $region49
    $region48: #{tpu_custom_call.1} parent=1 // pred_region
      %4794 = vsyncadd [#allocation13], 0
      %s4795 = sshll.u32 [#allocation12], 4
      %s4796 = int_to_ptr.vmem [resolvable:$true] %s4795
      %s4797 = sshll.u32 %s6, 4
      %s4798 = int_to_ptr.hbm [resolvable:$true] %s4797
      %4803 = dma.vmem_to_hbm [thread:$0]  %s4796, 256, %s4798, [#allocation13], 128, 128, 8
    $region49: #{tpu_custom_call.1} parent=1 // pred_fallthru
      _
    // Predicated region
    $region50: #{tpu_custom_call.1} parent=1 // pred_check
      _
    $region51: #{tpu_custom_call.1} parent=1 // pred_check_branch
      %4805 = sbr.rel (0) target = $region53
    $region52: #{tpu_custom_call.1} parent=1 // pred_region
      %4807 = dma.done [#allocation4], 2048
    $region53: #{tpu_custom_call.1} parent=1 // pred_fallthru
      _
    // Predicated region
    $region54: #{tpu_custom_call.1} parent=1 // pred_check
      _
    $region55: #{tpu_custom_call.1} parent=1 // pred_check_branch
      %4809 = sbr.rel (0) target = $region57
    $region56: #{tpu_custom_call.1} parent=1 // pred_region
      %4811 = dma.done [#allocation13], 256
    $region57: #{tpu_custom_call.1} parent=1 // pred_fallthru
      _
    %4812 = vsyncpa [#allocation3], 1
    %4813 = vsyncpa [#allocation6], 1
    %4814 = vsyncpa [#allocation9], 1
    %4815 = vsyncpa [#allocation4], 1
    %4816 = vsyncpa [#allocation13], 1

</llo_original>
